<compile_context>
chip_gen: v6e
topology: v6e:2x2x1
jax: 0.10.0
libtpu: 0.0.40
codegen_flags: <defaults>
</compile_context>

<pallas_src>
import functools

import numpy as np
import jax
import jax.numpy as jnp
from jax.experimental import pallas as pl
from jax.experimental.pallas import tpu as pltpu


# ---------------------------------------------------------------------------
# Fully fused DenseBlock kernel (one grid step = one batch sample).
# ---------------------------------------------------------------------------
def _make_dense_block_kernel(L, D, H, W, C0, C1, C2):
    WC0, WC1, WC2 = W * C0, W * C1, W * C2
    DH = D * H

    def kernel(*refs):
        x_ref = refs[0]                                 # (D*H, W*C0) bf16
        layer_refs = [refs[1 + 4 * l: 1 + 4 * (l + 1)] for l in range(L)]
        o_ref = refs[1 + 4 * L]                         # (D*H, W*C2) f32
        act = refs[1 + 4 * L + 1]                       # (D*H, WC0+(L-1)*WC2) bf16
        h_pad = refs[1 + 4 * L + 2]                     # (D+2, H+2, W*C1) f32

        # Zero-padding halo for the 3x3x3 conv along D and H.  The interior
        # [1:D+1, 1:H+1, :] is fully overwritten by every layer's Phase 1, so
        # zeroing once per grid step keeps the border correct for all layers
        # (and stays correct under megacore 'parallel' since each grid step
        # re-zeros its own scratch).
        h_pad[...] = jnp.zeros_like(h_pad)

        # Fused activation buffer, column order: [ block input | y_0 | y_1 | ...].
        # The stacked bottleneck weights are built host-side in the same order,
        # so torch.cat([new_x, x], dim=1) never needs to be materialized.
        act[:, 0:WC0] = x_ref[...]

        for l in range(L):
            w1_ref, b1_ref, m_ref, b2_ref = layer_refs[l]
            Kl = WC0 + l * WC2

            # ---- Phase 1: 1x1x1 conv (+BN folded) + ReLU — one MXU dot,
            #      M = D*H, K = all input pieces concatenated, N = W*C1 = 128.
            h = jnp.dot(act[:, 0:Kl], w1_ref[...],
                        preferred_element_type=jnp.float32)
            h = jnp.maximum(h + b1_ref[...], 0.0)       # (D*H, W*C1) f32

            # Scatter the bottleneck activation into the padded scratch.
            for d in range(D):
                h_pad[d + 1, 1:H + 1, :] = h[d * H:(d + 1) * H, :]

            # ---- Phase 2: 3x3x3 conv (pad=1, +BN folded) + ReLU as 9 banded
            #      matmuls with M = D*H = 64, K = W*C1 = 128, N = W*C2.
            acc = jnp.zeros((DH, WC2), jnp.float32)
            for kd in range(3):
                for kh in range(3):
                    lhs = h_pad[kd:kd + D, kh:kh + H, :].reshape(DH, WC1)
                    acc = acc + jnp.dot(lhs.astype(jnp.bfloat16),
                                        m_ref[kd, kh],
                                        preferred_element_type=jnp.float32)
            y = jnp.maximum(acc + b2_ref[...], 0.0)     # (D*H, W*C2) f32

            if l < L - 1:
                # Append the new piece (bf16, VMEM only — never hits HBM).
                act[:, WC0 + l * WC2: WC0 + (l + 1) * WC2] = y.astype(jnp.bfloat16)
            else:
                o_ref[...] = y.astype(o_ref.dtype)

    return kernel


def dense_block_forward(x_ncdhw, layer_params, *, num_layers, growth_rate):
    """x_ncdhw: (N, C, D, H, W) like PyTorch; returns (N, growth_rate, D, H, W)."""
    N, C0, D, H, W = x_ncdhw.shape
    g = growth_rate
    C1 = 4 * g
    WC0, WC1, WG = W * C0, W * C1, W * g

    # (N, D, H, W, C) -> (N, D*H, W*C) lane layout (lanes hold (w, c) jointly).
    x = jnp.transpose(x_ncdhw, (0, 2, 3, 4, 1)).reshape(N, D * H, WC0)
    x = x.astype(jnp.bfloat16)

    kernel = _make_dense_block_kernel(num_layers, D, H, W, C0, C1, g)

    in_specs = [pl.BlockSpec((None, D * H, WC0), lambda n: (n, 0, 0))]
    operands = [x]
    for l in range(num_layers):
        lp = layer_params[l]
        Kl = WC0 + l * WG
        in_specs += [
            pl.BlockSpec((Kl, WC1), lambda n: (0, 0)),
            pl.BlockSpec((1, WC1), lambda n: (0, 0)),
            pl.BlockSpec((3, 3, WC1, WG), lambda n: (0, 0, 0, 0)),
            pl.BlockSpec((1, WG), lambda n: (0, 0)),
        ]
        operands += [lp["w1"], lp["b1"], lp["M"], lp["b2"]]

    out_spec = pl.BlockSpec((None, D * H, WG), lambda n: (n, 0, 0))

    act_cols = WC0 + (num_layers - 1) * WG
    out = pl.pallas_call(
        kernel,
        out_shape=jax.ShapeDtypeStruct((N, D * H, WG), jnp.float32),
        grid_spec=pltpu.PrefetchScalarGridSpec(
            num_scalar_prefetch=0,
            grid=(N,),
            in_specs=in_specs,
            out_specs=out_spec,
            scratch_shapes=[
                pltpu.VMEM((D * H, act_cols), jnp.bfloat16),   # fused activations
                pltpu.VMEM((D + 2, H + 2, WC1), jnp.float32),  # padded bottleneck
            ],
        ),
        compiler_params=pltpu.CompilerParams(
            dimension_semantics=("parallel",)),
    )(*operands)

    # TODO(synk): Dropout3d is identity in eval mode; training-mode RNG
    # dropout is not implemented.
    out = out.reshape(N, D, H, W, g)
    return jnp.transpose(out, (0, 4, 1, 2, 3))          # -> NCDHW


# ---------------------------------------------------------------------------
# Parameter construction (host-side): fold BN, build the stacked block-diagonal
# bottleneck weights and banded 3x3x3 matrices in the (w, c)-flattened layout.
# ---------------------------------------------------------------------------
def _fold_bn(gamma, beta, mean, var, eps=1e-5):
    scale = gamma / np.sqrt(var + eps)
    bias = beta - mean * scale
    return scale, bias


def init_dense_block_params(key, in_features, num_layers, growth_rate):
    """Synthetic inference-mode parameters mirroring the PyTorch module shapes."""
    raw = []
    g = growth_rate
    for idx in range(num_layers):
        cin = in_features + idx * g
        mid = 4 * g
        keys = jax.random.split(jax.random.fold_in(key, idx), 10)
        w1 = 0.1 * jax.random.normal(keys[0], (cin, mid), jnp.float32)
        g1 = 1.0 + 0.1 * jax.random.normal(keys[1], (mid,), jnp.float32)
        b1 = 0.1 * jax.random.normal(keys[2], (mid,), jnp.float32)
        m1 = 0.1 * jax.random.normal(keys[3], (mid,), jnp.float32)
        v1 = jax.nn.softplus(jax.random.normal(keys[4], (mid,), jnp.float32)) + 0.5
        w2 = 0.1 * jax.random.normal(keys[5], (3, 3, 3, mid, g), jnp.float32)
        g2 = 1.0 + 0.1 * jax.random.normal(keys[6], (g,), jnp.float32)
        b2 = 0.1 * jax.random.normal(keys[7], (g,), jnp.float32)
        m2 = 0.1 * jax.random.normal(keys[8], (g,), jnp.float32)
        v2 = jax.nn.softplus(jax.random.normal(keys[9], (g,), jnp.float32)) + 0.5
        raw.append(dict(w1=w1, g1=g1, b1=b1, m1=m1, v1=v1,
                        w2=w2, g2=g2, b2=b2, m2=m2, v2=v2))
    return raw


def prepare_kernel_params(raw, in_features, num_layers, growth_rate, W):
    g = growth_rate
    C0 = in_features
    layers = []
    eye = np.eye(W, dtype=np.float32)
    for idx in range(num_layers):
        r = {k: np.asarray(v, np.float32) for k, v in raw[idx].items()}
        C1, C2 = 4 * g, g
        s1, bb1 = _fold_bn(r["g1"], r["b1"], r["m1"], r["v1"])
        s2, bb2 = _fold_bn(r["g2"], r["b2"], r["m2"], r["v2"])
        w1f = r["w1"] * s1[None, :]                      # (Cin, C1), BN folded
        w2f = r["w2"] * s2[None, None, None, None, :]    # (3,3,3,C1,C2)

        # Stacked block-diagonal bottleneck weights in the kernel's fused
        # activation column order: [ block input x0 | y_0 | y_1 | ... ].
        # In torch cat order (newest first, input last) at layer idx:
        #   y_p occupies channel rows [(idx-1-p)*g, (idx-p)*g),
        #   x0  occupies channel rows [idx*g, idx*g + C0).
        blocks = [np.kron(eye, w1f[idx * g: idx * g + C0, :])]       # x0
        for p in range(idx):
            blocks.append(np.kron(eye, w1f[(idx - 1 - p) * g:(idx - p) * g, :]))
        w1stack = np.concatenate(blocks, axis=0)         # (W*C0 + idx*W*g, W*C1)

        # Band matrices: fold the kw taps and the W zero-padding of the 3x3x3
        # conv into a dense (W*C1, W*C2) matrix per (kd, kh).
        band = np.zeros((3, 3, W * C1, W * C2), np.float32)
        for kd in range(3):
            for kh in range(3):
                for kw in range(3):
                    for wo in range(W):
                        wi = wo + kw - 1
                        if 0 <= wi < W:
                            band[kd, kh,
                                 wi * C1:(wi + 1) * C1,
                                 wo * C2:(wo + 1) * C2] = w2f[kd, kh, kw]

        layers.append(dict(
            w1=jnp.asarray(w1stack, jnp.bfloat16),
            b1=jnp.asarray(np.tile(bb1, W)[None, :], jnp.float32),
            M=jnp.asarray(band, jnp.bfloat16),
            b2=jnp.asarray(np.tile(bb2, W)[None, :], jnp.float32),
        ))
    return layers


# ---------------------------------------------------------------------------
# Pure-JAX f32 reference (lax.conv) for a correctness check
# ---------------------------------------------------------------------------
def _ref_forward(x_ncdhw, raw, num_layers):
    dn = ("NDHWC", "DHWIO", "NDHWC")
    x = jnp.transpose(x_ncdhw, (0, 2, 3, 4, 1))
    for idx in range(num_layers):
        r = raw[idx]
        s1, bb1 = _fold_bn(np.asarray(r["g1"]), np.asarray(r["b1"]),
                           np.asarray(r["m1"]), np.asarray(r["v1"]))
        s2, bb2 = _fold_bn(np.asarray(r["g2"]), np.asarray(r["b2"]),
                           np.asarray(r["m2"]), np.asarray(r["v2"]))
        w1 = r["w1"][None, None, None]                   # (1,1,1,Cin,C1)
        h = jax.lax.conv_general_dilated(x, w1, (1, 1, 1), "VALID",
                                         dimension_numbers=dn)
        h = jnp.maximum(h * s1 + bb1, 0.0)
        y = jax.lax.conv_general_dilated(h, r["w2"], (1, 1, 1),
                                         [(1, 1)] * 3, dimension_numbers=dn)
        y = jnp.maximum(y * s2 + bb2, 0.0)
        x = jnp.concatenate([y, x], axis=-1) if idx < num_layers - 1 else y
    return jnp.transpose(x, (0, 4, 1, 2, 3))


if __name__ == "__main__":
    # DenseBlock(in_features=4, num_layers=3, growth_rate=4, drop_rate=0.1)
    # on input (N=2, C=4, D=H=W=8), eval mode.
    in_features, num_layers, growth_rate = 4, 3, 4
    N, D, H, W = 2, 8, 8, 8

    key = jax.random.PRNGKey(0)
    kx, kp = jax.random.split(key)
    x = jax.random.normal(kx, (N, in_features, D, H, W), jnp.float32)
    raw = init_dense_block_params(kp, in_features, num_layers, growth_rate)
    layers = prepare_kernel_params(raw, in_features, num_layers, growth_rate, W)

    fwd = jax.jit(functools.partial(dense_block_forward,
                                    num_layers=num_layers,
                                    growth_rate=growth_rate))
    out = fwd(x, layers)
    jax.block_until_ready(out)

    assert out.shape == (N, growth_rate, D, H, W), out.shape

    ref = _ref_forward(x, raw, num_layers)
    max_err = float(jnp.max(jnp.abs(out - ref)))
    # bf16 matmul operands (f32 accumulation) -> loosened tolerance.
    assert jnp.allclose(out, ref, atol=5e-2, rtol=5e-2), max_err

    print("KERNEL_OK")
</pallas_src>

<mosaic_0001>
module attributes {stable_mosaic.version = 11 : i64} {
  func.func @kernel(%arg0: i32, %arg1: memref<1x64x32xbf16, #tpu.memory_space<vmem>>, %arg2: memref<32x128xbf16, #tpu.memory_space<vmem>>, %arg3: memref<1x128xf32, #tpu.memory_space<vmem>>, %arg4: memref<3x3x128x32xbf16, #tpu.memory_space<vmem>>, %arg5: memref<1x32xf32, #tpu.memory_space<vmem>>, %arg6: memref<64x128xbf16, #tpu.memory_space<vmem>>, %arg7: memref<1x128xf32, #tpu.memory_space<vmem>>, %arg8: memref<3x3x128x32xbf16, #tpu.memory_space<vmem>>, %arg9: memref<1x32xf32, #tpu.memory_space<vmem>>, %arg10: memref<96x128xbf16, #tpu.memory_space<vmem>>, %arg11: memref<1x128xf32, #tpu.memory_space<vmem>>, %arg12: memref<3x3x128x32xbf16, #tpu.memory_space<vmem>>, %arg13: memref<1x32xf32, #tpu.memory_space<vmem>>, %arg14: memref<1x64x32xf32, #tpu.memory_space<vmem>>, %arg15: memref<64x96xbf16, #tpu.memory_space<vmem>>, %arg16: memref<10x10x128xf32, #tpu.memory_space<vmem>>) attributes {dimension_semantics = [#tpu.dimension_semantics<parallel>], iteration_bounds = array<i64: 2>, scalar_prefetch = 0 : i64, scratch_operands = 2 : i64, tpu.core_type = #tpu.core_type<tc>, window_params = [{transform_indices = @transform_0, window_bounds = array<i64: 1, 64, 32>}, {pipeline_mode = #tpu.pipeline_mode<synchronous>, transform_indices = @transform_1, window_bounds = array<i64: 32, 128>}, {pipeline_mode = #tpu.pipeline_mode<synchronous>, transform_indices = @transform_2, window_bounds = array<i64: 1, 128>}, {pipeline_mode = #tpu.pipeline_mode<synchronous>, transform_indices = @transform_3, window_bounds = array<i64: 3, 3, 128, 32>}, {pipeline_mode = #tpu.pipeline_mode<synchronous>, transform_indices = @transform_4, window_bounds = array<i64: 1, 32>}, {pipeline_mode = #tpu.pipeline_mode<synchronous>, transform_indices = @transform_5, window_bounds = array<i64: 64, 128>}, {pipeline_mode = #tpu.pipeline_mode<synchronous>, transform_indices = @transform_6, window_bounds = array<i64: 1, 128>}, {pipeline_mode = #tpu.pipeline_mode<synchronous>, transform_indices = @transform_7, window_bounds = array<i64: 3, 3, 128, 32>}, {pipeline_mode = #tpu.pipeline_mode<synchronous>, transform_indices = @transform_8, window_bounds = array<i64: 1, 32>}, {pipeline_mode = #tpu.pipeline_mode<synchronous>, transform_indices = @transform_9, window_bounds = array<i64: 96, 128>}, {pipeline_mode = #tpu.pipeline_mode<synchronous>, transform_indices = @transform_10, window_bounds = array<i64: 1, 128>}, {pipeline_mode = #tpu.pipeline_mode<synchronous>, transform_indices = @transform_11, window_bounds = array<i64: 3, 3, 128, 32>}, {pipeline_mode = #tpu.pipeline_mode<synchronous>, transform_indices = @transform_12, window_bounds = array<i64: 1, 32>}, {transform_indices = @transform_13, window_bounds = array<i64: 1, 64, 32>}]} {
    %cst = arith.constant 0.000000e+00 : f32
    %0 = vector.broadcast %cst : f32 to vector<10x10x128xf32>
    %c0 = arith.constant 0 : index
    %c0_0 = arith.constant 0 : index
    %c0_1 = arith.constant 0 : index
    %1 = vector.load %arg16[%c0, %c0_0, %c0_1] : memref<10x10x128xf32, #tpu.memory_space<vmem>>, vector<10x10x128xf32>
    tpu.vector_store %arg16[%c0, %c0_0, %c0_1], %0 {strides = array<i32>} : memref<10x10x128xf32, #tpu.memory_space<vmem>>, vector<10x10x128xf32>,
    %c0_2 = arith.constant 0 : index
    %c0_3 = arith.constant 0 : index
    %c0_4 = arith.constant 0 : index
    %2 = vector.load %arg1[%c0_2, %c0_3, %c0_4] : memref<1x64x32xbf16, #tpu.memory_space<vmem>>, vector<1x64x32xbf16>
    %3 = vector.shape_cast %2 : vector<1x64x32xbf16> to vector<64x32xbf16>
    %c0_5 = arith.constant 0 : index
    %c0_6 = arith.constant 0 : index
    %4 = vector.load %arg15[%c0_5, %c0_6] : memref<64x96xbf16, #tpu.memory_space<vmem>>, vector<64x32xbf16>
    tpu.vector_store %arg15[%c0_5, %c0_6], %3 {strides = array<i32>} : memref<64x96xbf16, #tpu.memory_space<vmem>>, vector<64x32xbf16>,
    %c0_7 = arith.constant 0 : index
    %c0_8 = arith.constant 0 : index
    %5 = vector.load %arg15[%c0_7, %c0_8] : memref<64x96xbf16, #tpu.memory_space<vmem>>, vector<64x32xbf16>
    %c0_9 = arith.constant 0 : index
    %c0_10 = arith.constant 0 : index
    %6 = vector.load %arg2[%c0_9, %c0_10] : memref<32x128xbf16, #tpu.memory_space<vmem>>, vector<32x128xbf16>
    %cst_11 = arith.constant dense<0.000000e+00> : vector<64x128xf32>
    %7 = tpu.matmul %5, %6, %cst_11 {dimension_numbers = #tpu.dot_dimension_numbers<[1], [0], [0], [1], [0, 0, 1, 1], [], []>} : vector<64x32xbf16>, vector<32x128xbf16>, vector<64x128xf32> -> vector<64x128xf32>
    %c0_12 = arith.constant 0 : index
    %c0_13 = arith.constant 0 : index
    %8 = vector.load %arg3[%c0_12, %c0_13] : memref<1x128xf32, #tpu.memory_space<vmem>>, vector<1x128xf32>
    %9 = vector.broadcast %8 : vector<1x128xf32> to vector<64x128xf32>
    %10 = arith.addf %7, %9 : vector<64x128xf32>
    %cst_14 = arith.constant 0.000000e+00 : f32
    %11 = vector.broadcast %cst_14 : f32 to vector<64x128xf32>
    %12 = arith.maximumf %10, %11 : vector<64x128xf32>
    %13 = vector.extract_strided_slice %12 {offsets = [0, 0], sizes = [8, 128], strides = [1, 1]} : vector<64x128xf32> to vector<8x128xf32>
    %c1 = arith.constant 1 : index
    %c1_15 = arith.constant 1 : index
    %c0_16 = arith.constant 0 : index
    %14 = vector.load %arg16[%c1, %c1_15, %c0_16] : memref<10x10x128xf32, #tpu.memory_space<vmem>>, vector<1x8x128xf32>
    %15 = vector.shape_cast %14 : vector<1x8x128xf32> to vector<8x128xf32>
    %16 = vector.shape_cast %13 : vector<8x128xf32> to vector<1x8x128xf32>
    tpu.vector_store %arg16[%c1, %c1_15, %c0_16], %16 {strides = array<i32>} : memref<10x10x128xf32, #tpu.memory_space<vmem>>, vector<1x8x128xf32>,
    %17 = vector.extract_strided_slice %12 {offsets = [8, 0], sizes = [8, 128], strides = [1, 1]} : vector<64x128xf32> to vector<8x128xf32>
    %c2 = arith.constant 2 : index
    %c1_17 = arith.constant 1 : index
    %c0_18 = arith.constant 0 : index
    %18 = vector.load %arg16[%c2, %c1_17, %c0_18] : memref<10x10x128xf32, #tpu.memory_space<vmem>>, vector<1x8x128xf32>
    %19 = vector.shape_cast %18 : vector<1x8x128xf32> to vector<8x128xf32>
    %20 = vector.shape_cast %17 : vector<8x128xf32> to vector<1x8x128xf32>
    tpu.vector_store %arg16[%c2, %c1_17, %c0_18], %20 {strides = array<i32>} : memref<10x10x128xf32, #tpu.memory_space<vmem>>, vector<1x8x128xf32>,
    %21 = vector.extract_strided_slice %12 {offsets = [16, 0], sizes = [8, 128], strides = [1, 1]} : vector<64x128xf32> to vector<8x128xf32>
    %c3 = arith.constant 3 : index
    %c1_19 = arith.constant 1 : index
    %c0_20 = arith.constant 0 : index
    %22 = vector.load %arg16[%c3, %c1_19, %c0_20] : memref<10x10x128xf32, #tpu.memory_space<vmem>>, vector<1x8x128xf32>
    %23 = vector.shape_cast %22 : vector<1x8x128xf32> to vector<8x128xf32>
    %24 = vector.shape_cast %21 : vector<8x128xf32> to vector<1x8x128xf32>
    tpu.vector_store %arg16[%c3, %c1_19, %c0_20], %24 {strides = array<i32>} : memref<10x10x128xf32, #tpu.memory_space<vmem>>, vector<1x8x128xf32>,
    %25 = vector.extract_strided_slice %12 {offsets = [24, 0], sizes = [8, 128], strides = [1, 1]} : vector<64x128xf32> to vector<8x128xf32>
    %c4 = arith.constant 4 : index
    %c1_21 = arith.constant 1 : index
    %c0_22 = arith.constant 0 : index
    %26 = vector.load %arg16[%c4, %c1_21, %c0_22] : memref<10x10x128xf32, #tpu.memory_space<vmem>>, vector<1x8x128xf32>
    %27 = vector.shape_cast %26 : vector<1x8x128xf32> to vector<8x128xf32>
    %28 = vector.shape_cast %25 : vector<8x128xf32> to vector<1x8x128xf32>
    tpu.vector_store %arg16[%c4, %c1_21, %c0_22], %28 {strides = array<i32>} : memref<10x10x128xf32, #tpu.memory_space<vmem>>, vector<1x8x128xf32>,
    %29 = vector.extract_strided_slice %12 {offsets = [32, 0], sizes = [8, 128], strides = [1, 1]} : vector<64x128xf32> to vector<8x128xf32>
    %c5 = arith.constant 5 : index
    %c1_23 = arith.constant 1 : index
    %c0_24 = arith.constant 0 : index
    %30 = vector.load %arg16[%c5, %c1_23, %c0_24] : memref<10x10x128xf32, #tpu.memory_space<vmem>>, vector<1x8x128xf32>
    %31 = vector.shape_cast %30 : vector<1x8x128xf32> to vector<8x128xf32>
    %32 = vector.shape_cast %29 : vector<8x128xf32> to vector<1x8x128xf32>
    tpu.vector_store %arg16[%c5, %c1_23, %c0_24], %32 {strides = array<i32>} : memref<10x10x128xf32, #tpu.memory_space<vmem>>, vector<1x8x128xf32>,
    %33 = vector.extract_strided_slice %12 {offsets = [40, 0], sizes = [8, 128], strides = [1, 1]} : vector<64x128xf32> to vector<8x128xf32>
    %c6 = arith.constant 6 : index
    %c1_25 = arith.constant 1 : index
    %c0_26 = arith.constant 0 : index
    %34 = vector.load %arg16[%c6, %c1_25, %c0_26] : memref<10x10x128xf32, #tpu.memory_space<vmem>>, vector<1x8x128xf32>
    %35 = vector.shape_cast %34 : vector<1x8x128xf32> to vector<8x128xf32>
    %36 = vector.shape_cast %33 : vector<8x128xf32> to vector<1x8x128xf32>
    tpu.vector_store %arg16[%c6, %c1_25, %c0_26], %36 {strides = array<i32>} : memref<10x10x128xf32, #tpu.memory_space<vmem>>, vector<1x8x128xf32>,
    %37 = vector.extract_strided_slice %12 {offsets = [48, 0], sizes = [8, 128], strides = [1, 1]} : vector<64x128xf32> to vector<8x128xf32>
    %c7 = arith.constant 7 : index
    %c1_27 = arith.constant 1 : index
    %c0_28 = arith.constant 0 : index
    %38 = vector.load %arg16[%c7, %c1_27, %c0_28] : memref<10x10x128xf32, #tpu.memory_space<vmem>>, vector<1x8x128xf32>
    %39 = vector.shape_cast %38 : vector<1x8x128xf32> to vector<8x128xf32>
    %40 = vector.shape_cast %37 : vector<8x128xf32> to vector<1x8x128xf32>
    tpu.vector_store %arg16[%c7, %c1_27, %c0_28], %40 {strides = array<i32>} : memref<10x10x128xf32, #tpu.memory_space<vmem>>, vector<1x8x128xf32>,
    %41 = vector.extract_strided_slice %12 {offsets = [56, 0], sizes = [8, 128], strides = [1, 1]} : vector<64x128xf32> to vector<8x128xf32>
    %c8 = arith.constant 8 : index
    %c1_29 = arith.constant 1 : index
    %c0_30 = arith.constant 0 : index
    %42 = vector.load %arg16[%c8, %c1_29, %c0_30] : memref<10x10x128xf32, #tpu.memory_space<vmem>>, vector<1x8x128xf32>
    %43 = vector.shape_cast %42 : vector<1x8x128xf32> to vector<8x128xf32>
    %44 = vector.shape_cast %41 : vector<8x128xf32> to vector<1x8x128xf32>
    tpu.vector_store %arg16[%c8, %c1_29, %c0_30], %44 {strides = array<i32>} : memref<10x10x128xf32, #tpu.memory_space<vmem>>, vector<1x8x128xf32>,
    %cst_31 = arith.constant 0.000000e+00 : f32
    %45 = vector.broadcast %cst_31 : f32 to vector<64x32xf32>
    %c0_32 = arith.constant 0 : index
    %c0_33 = arith.constant 0 : index
    %c0_34 = arith.constant 0 : index
    %46 = vector.load %arg16[%c0_32, %c0_33, %c0_34] : memref<10x10x128xf32, #tpu.memory_space<vmem>>, vector<8x8x128xf32>
    %47 = vector.shape_cast %46 : vector<8x8x128xf32> to vector<64x128xf32>
    %48 = arith.truncf %47 : vector<64x128xf32> to vector<64x128xbf16>
    %c0_35 = arith.constant 0 : index
    %c0_36 = arith.constant 0 : index
    %c0_37 = arith.constant 0 : index
    %c0_38 = arith.constant 0 : index
    %49 = vector.load %arg4[%c0_35, %c0_36, %c0_37, %c0_38] : memref<3x3x128x32xbf16, #tpu.memory_space<vmem>>, vector<1x1x128x32xbf16>
    %50 = vector.shape_cast %49 : vector<1x1x128x32xbf16> to vector<128x32xbf16>
    %cst_39 = arith.constant dense<0.000000e+00> : vector<64x32xf32>
    %51 = tpu.matmul %48, %50, %cst_39 {dimension_numbers = #tpu.dot_dimension_numbers<[1], [0], [0], [1], [0, 0, 1, 1], [], []>} : vector<64x128xbf16>, vector<128x32xbf16>, vector<64x32xf32> -> vector<64x32xf32>
    %52 = arith.addf %45, %51 : vector<64x32xf32>
    %c0_40 = arith.constant 0 : index
    %c1_41 = arith.constant 1 : index
    %c0_42 = arith.constant 0 : index
    %53 = vector.load %arg16[%c0_40, %c1_41, %c0_42] : memref<10x10x128xf32, #tpu.memory_space<vmem>>, vector<8x8x128xf32>
    %54 = vector.shape_cast %53 : vector<8x8x128xf32> to vector<64x128xf32>
    %55 = arith.truncf %54 : vector<64x128xf32> to vector<64x128xbf16>
    %c0_43 = arith.constant 0 : index
    %c1_44 = arith.constant 1 : index
    %c0_45 = arith.constant 0 : index
    %c0_46 = arith.constant 0 : index
    %56 = vector.load %arg4[%c0_43, %c1_44, %c0_45, %c0_46] : memref<3x3x128x32xbf16, #tpu.memory_space<vmem>>, vector<1x1x128x32xbf16>
    %57 = vector.shape_cast %56 : vector<1x1x128x32xbf16> to vector<128x32xbf16>
    %cst_47 = arith.constant dense<0.000000e+00> : vector<64x32xf32>
    %58 = tpu.matmul %55, %57, %cst_47 {dimension_numbers = #tpu.dot_dimension_numbers<[1], [0], [0], [1], [0, 0, 1, 1], [], []>} : vector<64x128xbf16>, vector<128x32xbf16>, vector<64x32xf32> -> vector<64x32xf32>
    %59 = arith.addf %52, %58 : vector<64x32xf32>
    %c0_48 = arith.constant 0 : index
    %c2_49 = arith.constant 2 : index
    %c0_50 = arith.constant 0 : index
    %60 = vector.load %arg16[%c0_48, %c2_49, %c0_50] : memref<10x10x128xf32, #tpu.memory_space<vmem>>, vector<8x8x128xf32>
    %61 = vector.shape_cast %60 : vector<8x8x128xf32> to vector<64x128xf32>
    %62 = arith.truncf %61 : vector<64x128xf32> to vector<64x128xbf16>
    %c0_51 = arith.constant 0 : index
    %c2_52 = arith.constant 2 : index
    %c0_53 = arith.constant 0 : index
    %c0_54 = arith.constant 0 : index
    %63 = vector.load %arg4[%c0_51, %c2_52, %c0_53, %c0_54] : memref<3x3x128x32xbf16, #tpu.memory_space<vmem>>, vector<1x1x128x32xbf16>
    %64 = vector.shape_cast %63 : vector<1x1x128x32xbf16> to vector<128x32xbf16>
    %cst_55 = arith.constant dense<0.000000e+00> : vector<64x32xf32>
    %65 = tpu.matmul %62, %64, %cst_55 {dimension_numbers = #tpu.dot_dimension_numbers<[1], [0], [0], [1], [0, 0, 1, 1], [], []>} : vector<64x128xbf16>, vector<128x32xbf16>, vector<64x32xf32> -> vector<64x32xf32>
    %66 = arith.addf %59, %65 : vector<64x32xf32>
    %c1_56 = arith.constant 1 : index
    %c0_57 = arith.constant 0 : index
    %c0_58 = arith.constant 0 : index
    %67 = vector.load %arg16[%c1_56, %c0_57, %c0_58] : memref<10x10x128xf32, #tpu.memory_space<vmem>>, vector<8x8x128xf32>
    %68 = vector.shape_cast %67 : vector<8x8x128xf32> to vector<64x128xf32>
    %69 = arith.truncf %68 : vector<64x128xf32> to vector<64x128xbf16>
    %c1_59 = arith.constant 1 : index
    %c0_60 = arith.constant 0 : index
    %c0_61 = arith.constant 0 : index
    %c0_62 = arith.constant 0 : index
    %70 = vector.load %arg4[%c1_59, %c0_60, %c0_61, %c0_62] : memref<3x3x128x32xbf16, #tpu.memory_space<vmem>>, vector<1x1x128x32xbf16>
    %71 = vector.shape_cast %70 : vector<1x1x128x32xbf16> to vector<128x32xbf16>
    %cst_63 = arith.constant dense<0.000000e+00> : vector<64x32xf32>
    %72 = tpu.matmul %69, %71, %cst_63 {dimension_numbers = #tpu.dot_dimension_numbers<[1], [0], [0], [1], [0, 0, 1, 1], [], []>} : vector<64x128xbf16>, vector<128x32xbf16>, vector<64x32xf32> -> vector<64x32xf32>
    %73 = arith.addf %66, %72 : vector<64x32xf32>
    %c1_64 = arith.constant 1 : index
    %c1_65 = arith.constant 1 : index
    %c0_66 = arith.constant 0 : index
    %74 = vector.load %arg16[%c1_64, %c1_65, %c0_66] : memref<10x10x128xf32, #tpu.memory_space<vmem>>, vector<8x8x128xf32>
    %75 = vector.shape_cast %74 : vector<8x8x128xf32> to vector<64x128xf32>
    %76 = arith.truncf %75 : vector<64x128xf32> to vector<64x128xbf16>
    %c1_67 = arith.constant 1 : index
    %c1_68 = arith.constant 1 : index
    %c0_69 = arith.constant 0 : index
    %c0_70 = arith.constant 0 : index
    %77 = vector.load %arg4[%c1_67, %c1_68, %c0_69, %c0_70] : memref<3x3x128x32xbf16, #tpu.memory_space<vmem>>, vector<1x1x128x32xbf16>
    %78 = vector.shape_cast %77 : vector<1x1x128x32xbf16> to vector<128x32xbf16>
    %cst_71 = arith.constant dense<0.000000e+00> : vector<64x32xf32>
    %79 = tpu.matmul %76, %78, %cst_71 {dimension_numbers = #tpu.dot_dimension_numbers<[1], [0], [0], [1], [0, 0, 1, 1], [], []>} : vector<64x128xbf16>, vector<128x32xbf16>, vector<64x32xf32> -> vector<64x32xf32>
    %80 = arith.addf %73, %79 : vector<64x32xf32>
    %c1_72 = arith.constant 1 : index
    %c2_73 = arith.constant 2 : index
    %c0_74 = arith.constant 0 : index
    %81 = vector.load %arg16[%c1_72, %c2_73, %c0_74] : memref<10x10x128xf32, #tpu.memory_space<vmem>>, vector<8x8x128xf32>
    %82 = vector.shape_cast %81 : vector<8x8x128xf32> to vector<64x128xf32>
    %83 = arith.truncf %82 : vector<64x128xf32> to vector<64x128xbf16>
    %c1_75 = arith.constant 1 : index
    %c2_76 = arith.constant 2 : index
    %c0_77 = arith.constant 0 : index
    %c0_78 = arith.constant 0 : index
    %84 = vector.load %arg4[%c1_75, %c2_76, %c0_77, %c0_78] : memref<3x3x128x32xbf16, #tpu.memory_space<vmem>>, vector<1x1x128x32xbf16>
    %85 = vector.shape_cast %84 : vector<1x1x128x32xbf16> to vector<128x32xbf16>
    %cst_79 = arith.constant dense<0.000000e+00> : vector<64x32xf32>
    %86 = tpu.matmul %83, %85, %cst_79 {dimension_numbers = #tpu.dot_dimension_numbers<[1], [0], [0], [1], [0, 0, 1, 1], [], []>} : vector<64x128xbf16>, vector<128x32xbf16>, vector<64x32xf32> -> vector<64x32xf32>
    %87 = arith.addf %80, %86 : vector<64x32xf32>
    %c2_80 = arith.constant 2 : index
    %c0_81 = arith.constant 0 : index
    %c0_82 = arith.constant 0 : index
    %88 = vector.load %arg16[%c2_80, %c0_81, %c0_82] : memref<10x10x128xf32, #tpu.memory_space<vmem>>, vector<8x8x128xf32>
    %89 = vector.shape_cast %88 : vector<8x8x128xf32> to vector<64x128xf32>
    %90 = arith.truncf %89 : vector<64x128xf32> to vector<64x128xbf16>
    %c2_83 = arith.constant 2 : index
    %c0_84 = arith.constant 0 : index
    %c0_85 = arith.constant 0 : index
    %c0_86 = arith.constant 0 : index
    %91 = vector.load %arg4[%c2_83, %c0_84, %c0_85, %c0_86] : memref<3x3x128x32xbf16, #tpu.memory_space<vmem>>, vector<1x1x128x32xbf16>
    %92 = vector.shape_cast %91 : vector<1x1x128x32xbf16> to vector<128x32xbf16>
    %cst_87 = arith.constant dense<0.000000e+00> : vector<64x32xf32>
    %93 = tpu.matmul %90, %92, %cst_87 {dimension_numbers = #tpu.dot_dimension_numbers<[1], [0], [0], [1], [0, 0, 1, 1], [], []>} : vector<64x128xbf16>, vector<128x32xbf16>, vector<64x32xf32> -> vector<64x32xf32>
    %94 = arith.addf %87, %93 : vector<64x32xf32>
    %c2_88 = arith.constant 2 : index
    %c1_89 = arith.constant 1 : index
    %c0_90 = arith.constant 0 : index
    %95 = vector.load %arg16[%c2_88, %c1_89, %c0_90] : memref<10x10x128xf32, #tpu.memory_space<vmem>>, vector<8x8x128xf32>
    %96 = vector.shape_cast %95 : vector<8x8x128xf32> to vector<64x128xf32>
    %97 = arith.truncf %96 : vector<64x128xf32> to vector<64x128xbf16>
    %c2_91 = arith.constant 2 : index
    %c1_92 = arith.constant 1 : index
    %c0_93 = arith.constant 0 : index
    %c0_94 = arith.constant 0 : index
    %98 = vector.load %arg4[%c2_91, %c1_92, %c0_93, %c0_94] : memref<3x3x128x32xbf16, #tpu.memory_space<vmem>>, vector<1x1x128x32xbf16>
    %99 = vector.shape_cast %98 : vector<1x1x128x32xbf16> to vector<128x32xbf16>
    %cst_95 = arith.constant dense<0.000000e+00> : vector<64x32xf32>
    %100 = tpu.matmul %97, %99, %cst_95 {dimension_numbers = #tpu.dot_dimension_numbers<[1], [0], [0], [1], [0, 0, 1, 1], [], []>} : vector<64x128xbf16>, vector<128x32xbf16>, vector<64x32xf32> -> vector<64x32xf32>
    %101 = arith.addf %94, %100 : vector<64x32xf32>
    %c2_96 = arith.constant 2 : index
    %c2_97 = arith.constant 2 : index
    %c0_98 = arith.constant 0 : index
    %102 = vector.load %arg16[%c2_96, %c2_97, %c0_98] : memref<10x10x128xf32, #tpu.memory_space<vmem>>, vector<8x8x128xf32>
    %103 = vector.shape_cast %102 : vector<8x8x128xf32> to vector<64x128xf32>
    %104 = arith.truncf %103 : vector<64x128xf32> to vector<64x128xbf16>
    %c2_99 = arith.constant 2 : index
    %c2_100 = arith.constant 2 : index
    %c0_101 = arith.constant 0 : index
    %c0_102 = arith.constant 0 : index
    %105 = vector.load %arg4[%c2_99, %c2_100, %c0_101, %c0_102] : memref<3x3x128x32xbf16, #tpu.memory_space<vmem>>, vector<1x1x128x32xbf16>
    %106 = vector.shape_cast %105 : vector<1x1x128x32xbf16> to vector<128x32xbf16>
    %cst_103 = arith.constant dense<0.000000e+00> : vector<64x32xf32>
    %107 = tpu.matmul %104, %106, %cst_103 {dimension_numbers = #tpu.dot_dimension_numbers<[1], [0], [0], [1], [0, 0, 1, 1], [], []>} : vector<64x128xbf16>, vector<128x32xbf16>, vector<64x32xf32> -> vector<64x32xf32>
    %108 = arith.addf %101, %107 : vector<64x32xf32>
    %c0_104 = arith.constant 0 : index
    %c0_105 = arith.constant 0 : index
    %109 = vector.load %arg5[%c0_104, %c0_105] : memref<1x32xf32, #tpu.memory_space<vmem>>, vector<1x32xf32>
    %110 = vector.broadcast %109 : vector<1x32xf32> to vector<64x32xf32>
    %111 = arith.addf %108, %110 : vector<64x32xf32>
    %cst_106 = arith.constant 0.000000e+00 : f32
    %112 = vector.broadcast %cst_106 : f32 to vector<64x32xf32>
    %113 = arith.maximumf %111, %112 : vector<64x32xf32>
    %114 = arith.truncf %113 : vector<64x32xf32> to vector<64x32xbf16>
    %c0_107 = arith.constant 0 : index
    %c32 = arith.constant 32 : index
    %115 = vector.load %arg15[%c0_107, %c32] : memref<64x96xbf16, #tpu.memory_space<vmem>>, vector<64x32xbf16>
    tpu.vector_store %arg15[%c0_107, %c32], %114 {strides = array<i32>} : memref<64x96xbf16, #tpu.memory_space<vmem>>, vector<64x32xbf16>,
    %c0_108 = arith.constant 0 : index
    %c0_109 = arith.constant 0 : index
    %116 = vector.load %arg15[%c0_108, %c0_109] : memref<64x96xbf16, #tpu.memory_space<vmem>>, vector<64x64xbf16>
    %c0_110 = arith.constant 0 : index
    %c0_111 = arith.constant 0 : index
    %117 = vector.load %arg6[%c0_110, %c0_111] : memref<64x128xbf16, #tpu.memory_space<vmem>>, vector<64x128xbf16>
    %cst_112 = arith.constant dense<0.000000e+00> : vector<64x128xf32>
    %118 = tpu.matmul %116, %117, %cst_112 {dimension_numbers = #tpu.dot_dimension_numbers<[1], [0], [0], [1], [0, 0, 1, 1], [], []>} : vector<64x64xbf16>, vector<64x128xbf16>, vector<64x128xf32> -> vector<64x128xf32>
    %c0_113 = arith.constant 0 : index
    %c0_114 = arith.constant 0 : index
    %119 = vector.load %arg7[%c0_113, %c0_114] : memref<1x128xf32, #tpu.memory_space<vmem>>, vector<1x128xf32>
    %120 = vector.broadcast %119 : vector<1x128xf32> to vector<64x128xf32>
    %121 = arith.addf %118, %120 : vector<64x128xf32>
    %cst_115 = arith.constant 0.000000e+00 : f32
    %122 = vector.broadcast %cst_115 : f32 to vector<64x128xf32>
    %123 = arith.maximumf %121, %122 : vector<64x128xf32>
    %124 = vector.extract_strided_slice %123 {offsets = [0, 0], sizes = [8, 128], strides = [1, 1]} : vector<64x128xf32> to vector<8x128xf32>
    %c1_116 = arith.constant 1 : index
    %c1_117 = arith.constant 1 : index
    %c0_118 = arith.constant 0 : index
    %125 = vector.load %arg16[%c1_116, %c1_117, %c0_118] : memref<10x10x128xf32, #tpu.memory_space<vmem>>, vector<1x8x128xf32>
    %126 = vector.shape_cast %125 : vector<1x8x128xf32> to vector<8x128xf32>
    %127 = vector.shape_cast %124 : vector<8x128xf32> to vector<1x8x128xf32>
    tpu.vector_store %arg16[%c1_116, %c1_117, %c0_118], %127 {strides = array<i32>} : memref<10x10x128xf32, #tpu.memory_space<vmem>>, vector<1x8x128xf32>,
    %128 = vector.extract_strided_slice %123 {offsets = [8, 0], sizes = [8, 128], strides = [1, 1]} : vector<64x128xf32> to vector<8x128xf32>
    %c2_119 = arith.constant 2 : index
    %c1_120 = arith.constant 1 : index
    %c0_121 = arith.constant 0 : index
    %129 = vector.load %arg16[%c2_119, %c1_120, %c0_121] : memref<10x10x128xf32, #tpu.memory_space<vmem>>, vector<1x8x128xf32>
    %130 = vector.shape_cast %129 : vector<1x8x128xf32> to vector<8x128xf32>
    %131 = vector.shape_cast %128 : vector<8x128xf32> to vector<1x8x128xf32>
    tpu.vector_store %arg16[%c2_119, %c1_120, %c0_121], %131 {strides = array<i32>} : memref<10x10x128xf32, #tpu.memory_space<vmem>>, vector<1x8x128xf32>,
    %132 = vector.extract_strided_slice %123 {offsets = [16, 0], sizes = [8, 128], strides = [1, 1]} : vector<64x128xf32> to vector<8x128xf32>
    %c3_122 = arith.constant 3 : index
    %c1_123 = arith.constant 1 : index
    %c0_124 = arith.constant 0 : index
    %133 = vector.load %arg16[%c3_122, %c1_123, %c0_124] : memref<10x10x128xf32, #tpu.memory_space<vmem>>, vector<1x8x128xf32>
    %134 = vector.shape_cast %133 : vector<1x8x128xf32> to vector<8x128xf32>
    %135 = vector.shape_cast %132 : vector<8x128xf32> to vector<1x8x128xf32>
    tpu.vector_store %arg16[%c3_122, %c1_123, %c0_124], %135 {strides = array<i32>} : memref<10x10x128xf32, #tpu.memory_space<vmem>>, vector<1x8x128xf32>,
    %136 = vector.extract_strided_slice %123 {offsets = [24, 0], sizes = [8, 128], strides = [1, 1]} : vector<64x128xf32> to vector<8x128xf32>
    %c4_125 = arith.constant 4 : index
    %c1_126 = arith.constant 1 : index
    %c0_127 = arith.constant 0 : index
    %137 = vector.load %arg16[%c4_125, %c1_126, %c0_127] : memref<10x10x128xf32, #tpu.memory_space<vmem>>, vector<1x8x128xf32>
    %138 = vector.shape_cast %137 : vector<1x8x128xf32> to vector<8x128xf32>
    %139 = vector.shape_cast %136 : vector<8x128xf32> to vector<1x8x128xf32>
    tpu.vector_store %arg16[%c4_125, %c1_126, %c0_127], %139 {strides = array<i32>} : memref<10x10x128xf32, #tpu.memory_space<vmem>>, vector<1x8x128xf32>,
    %140 = vector.extract_strided_slice %123 {offsets = [32, 0], sizes = [8, 128], strides = [1, 1]} : vector<64x128xf32> to vector<8x128xf32>
    %c5_128 = arith.constant 5 : index
    %c1_129 = arith.constant 1 : index
    %c0_130 = arith.constant 0 : index
    %141 = vector.load %arg16[%c5_128, %c1_129, %c0_130] : memref<10x10x128xf32, #tpu.memory_space<vmem>>, vector<1x8x128xf32>
    %142 = vector.shape_cast %141 : vector<1x8x128xf32> to vector<8x128xf32>
    %143 = vector.shape_cast %140 : vector<8x128xf32> to vector<1x8x128xf32>
    tpu.vector_store %arg16[%c5_128, %c1_129, %c0_130], %143 {strides = array<i32>} : memref<10x10x128xf32, #tpu.memory_space<vmem>>, vector<1x8x128xf32>,
    %144 = vector.extract_strided_slice %123 {offsets = [40, 0], sizes = [8, 128], strides = [1, 1]} : vector<64x128xf32> to vector<8x128xf32>
    %c6_131 = arith.constant 6 : index
    %c1_132 = arith.constant 1 : index
    %c0_133 = arith.constant 0 : index
    %145 = vector.load %arg16[%c6_131, %c1_132, %c0_133] : memref<10x10x128xf32, #tpu.memory_space<vmem>>, vector<1x8x128xf32>
    %146 = vector.shape_cast %145 : vector<1x8x128xf32> to vector<8x128xf32>
    %147 = vector.shape_cast %144 : vector<8x128xf32> to vector<1x8x128xf32>
    tpu.vector_store %arg16[%c6_131, %c1_132, %c0_133], %147 {strides = array<i32>} : memref<10x10x128xf32, #tpu.memory_space<vmem>>, vector<1x8x128xf32>,
    %148 = vector.extract_strided_slice %123 {offsets = [48, 0], sizes = [8, 128], strides = [1, 1]} : vector<64x128xf32> to vector<8x128xf32>
    %c7_134 = arith.constant 7 : index
    %c1_135 = arith.constant 1 : index
    %c0_136 = arith.constant 0 : index
    %149 = vector.load %arg16[%c7_134, %c1_135, %c0_136] : memref<10x10x128xf32, #tpu.memory_space<vmem>>, vector<1x8x128xf32>
    %150 = vector.shape_cast %149 : vector<1x8x128xf32> to vector<8x128xf32>
    %151 = vector.shape_cast %148 : vector<8x128xf32> to vector<1x8x128xf32>
    tpu.vector_store %arg16[%c7_134, %c1_135, %c0_136], %151 {strides = array<i32>} : memref<10x10x128xf32, #tpu.memory_space<vmem>>, vector<1x8x128xf32>,
    %152 = vector.extract_strided_slice %123 {offsets = [56, 0], sizes = [8, 128], strides = [1, 1]} : vector<64x128xf32> to vector<8x128xf32>
    %c8_137 = arith.constant 8 : index
    %c1_138 = arith.constant 1 : index
    %c0_139 = arith.constant 0 : index
    %153 = vector.load %arg16[%c8_137, %c1_138, %c0_139] : memref<10x10x128xf32, #tpu.memory_space<vmem>>, vector<1x8x128xf32>
    %154 = vector.shape_cast %153 : vector<1x8x128xf32> to vector<8x128xf32>
    %155 = vector.shape_cast %152 : vector<8x128xf32> to vector<1x8x128xf32>
    tpu.vector_store %arg16[%c8_137, %c1_138, %c0_139], %155 {strides = array<i32>} : memref<10x10x128xf32, #tpu.memory_space<vmem>>, vector<1x8x128xf32>,
    %cst_140 = arith.constant 0.000000e+00 : f32
    %156 = vector.broadcast %cst_140 : f32 to vector<64x32xf32>
    %c0_141 = arith.constant 0 : index
    %c0_142 = arith.constant 0 : index
    %c0_143 = arith.constant 0 : index
    %157 = vector.load %arg16[%c0_141, %c0_142, %c0_143] : memref<10x10x128xf32, #tpu.memory_space<vmem>>, vector<8x8x128xf32>
    %158 = vector.shape_cast %157 : vector<8x8x128xf32> to vector<64x128xf32>
    %159 = arith.truncf %158 : vector<64x128xf32> to vector<64x128xbf16>
    %c0_144 = arith.constant 0 : index
    %c0_145 = arith.constant 0 : index
    %c0_146 = arith.constant 0 : index
    %c0_147 = arith.constant 0 : index
    %160 = vector.load %arg8[%c0_144, %c0_145, %c0_146, %c0_147] : memref<3x3x128x32xbf16, #tpu.memory_space<vmem>>, vector<1x1x128x32xbf16>
    %161 = vector.shape_cast %160 : vector<1x1x128x32xbf16> to vector<128x32xbf16>
    %cst_148 = arith.constant dense<0.000000e+00> : vector<64x32xf32>
    %162 = tpu.matmul %159, %161, %cst_148 {dimension_numbers = #tpu.dot_dimension_numbers<[1], [0], [0], [1], [0, 0, 1, 1], [], []>} : vector<64x128xbf16>, vector<128x32xbf16>, vector<64x32xf32> -> vector<64x32xf32>
    %163 = arith.addf %156, %162 : vector<64x32xf32>
    %c0_149 = arith.constant 0 : index
    %c1_150 = arith.constant 1 : index
    %c0_151 = arith.constant 0 : index
    %164 = vector.load %arg16[%c0_149, %c1_150, %c0_151] : memref<10x10x128xf32, #tpu.memory_space<vmem>>, vector<8x8x128xf32>
    %165 = vector.shape_cast %164 : vector<8x8x128xf32> to vector<64x128xf32>
    %166 = arith.truncf %165 : vector<64x128xf32> to vector<64x128xbf16>
    %c0_152 = arith.constant 0 : index
    %c1_153 = arith.constant 1 : index
    %c0_154 = arith.constant 0 : index
    %c0_155 = arith.constant 0 : index
    %167 = vector.load %arg8[%c0_152, %c1_153, %c0_154, %c0_155] : memref<3x3x128x32xbf16, #tpu.memory_space<vmem>>, vector<1x1x128x32xbf16>
    %168 = vector.shape_cast %167 : vector<1x1x128x32xbf16> to vector<128x32xbf16>
    %cst_156 = arith.constant dense<0.000000e+00> : vector<64x32xf32>
    %169 = tpu.matmul %166, %168, %cst_156 {dimension_numbers = #tpu.dot_dimension_numbers<[1], [0], [0], [1], [0, 0, 1, 1], [], []>} : vector<64x128xbf16>, vector<128x32xbf16>, vector<64x32xf32> -> vector<64x32xf32>
    %170 = arith.addf %163, %169 : vector<64x32xf32>
    %c0_157 = arith.constant 0 : index
    %c2_158 = arith.constant 2 : index
    %c0_159 = arith.constant 0 : index
    %171 = vector.load %arg16[%c0_157, %c2_158, %c0_159] : memref<10x10x128xf32, #tpu.memory_space<vmem>>, vector<8x8x128xf32>
    %172 = vector.shape_cast %171 : vector<8x8x128xf32> to vector<64x128xf32>
    %173 = arith.truncf %172 : vector<64x128xf32> to vector<64x128xbf16>
    %c0_160 = arith.constant 0 : index
    %c2_161 = arith.constant 2 : index
    %c0_162 = arith.constant 0 : index
    %c0_163 = arith.constant 0 : index
    %174 = vector.load %arg8[%c0_160, %c2_161, %c0_162, %c0_163] : memref<3x3x128x32xbf16, #tpu.memory_space<vmem>>, vector<1x1x128x32xbf16>
    %175 = vector.shape_cast %174 : vector<1x1x128x32xbf16> to vector<128x32xbf16>
    %cst_164 = arith.constant dense<0.000000e+00> : vector<64x32xf32>
    %176 = tpu.matmul %173, %175, %cst_164 {dimension_numbers = #tpu.dot_dimension_numbers<[1], [0], [0], [1], [0, 0, 1, 1], [], []>} : vector<64x128xbf16>, vector<128x32xbf16>, vector<64x32xf32> -> vector<64x32xf32>
    %177 = arith.addf %170, %176 : vector<64x32xf32>
    %c1_165 = arith.constant 1 : index
    %c0_166 = arith.constant 0 : index
    %c0_167 = arith.constant 0 : index
    %178 = vector.load %arg16[%c1_165, %c0_166, %c0_167] : memref<10x10x128xf32, #tpu.memory_space<vmem>>, vector<8x8x128xf32>
    %179 = vector.shape_cast %178 : vector<8x8x128xf32> to vector<64x128xf32>
    %180 = arith.truncf %179 : vector<64x128xf32> to vector<64x128xbf16>
    %c1_168 = arith.constant 1 : index
    %c0_169 = arith.constant 0 : index
    %c0_170 = arith.constant 0 : index
    %c0_171 = arith.constant 0 : index
    %181 = vector.load %arg8[%c1_168, %c0_169, %c0_170, %c0_171] : memref<3x3x128x32xbf16, #tpu.memory_space<vmem>>, vector<1x1x128x32xbf16>
    %182 = vector.shape_cast %181 : vector<1x1x128x32xbf16> to vector<128x32xbf16>
    %cst_172 = arith.constant dense<0.000000e+00> : vector<64x32xf32>
    %183 = tpu.matmul %180, %182, %cst_172 {dimension_numbers = #tpu.dot_dimension_numbers<[1], [0], [0], [1], [0, 0, 1, 1], [], []>} : vector<64x128xbf16>, vector<128x32xbf16>, vector<64x32xf32> -> vector<64x32xf32>
    %184 = arith.addf %177, %183 : vector<64x32xf32>
    %c1_173 = arith.constant 1 : index
    %c1_174 = arith.constant 1 : index
    %c0_175 = arith.constant 0 : index
    %185 = vector.load %arg16[%c1_173, %c1_174, %c0_175] : memref<10x10x128xf32, #tpu.memory_space<vmem>>, vector<8x8x128xf32>
    %186 = vector.shape_cast %185 : vector<8x8x128xf32> to vector<64x128xf32>
    %187 = arith.truncf %186 : vector<64x128xf32> to vector<64x128xbf16>
    %c1_176 = arith.constant 1 : index
    %c1_177 = arith.constant 1 : index
    %c0_178 = arith.constant 0 : index
    %c0_179 = arith.constant 0 : index
    %188 = vector.load %arg8[%c1_176, %c1_177, %c0_178, %c0_179] : memref<3x3x128x32xbf16, #tpu.memory_space<vmem>>, vector<1x1x128x32xbf16>
    %189 = vector.shape_cast %188 : vector<1x1x128x32xbf16> to vector<128x32xbf16>
    %cst_180 = arith.constant dense<0.000000e+00> : vector<64x32xf32>
    %190 = tpu.matmul %187, %189, %cst_180 {dimension_numbers = #tpu.dot_dimension_numbers<[1], [0], [0], [1], [0, 0, 1, 1], [], []>} : vector<64x128xbf16>, vector<128x32xbf16>, vector<64x32xf32> -> vector<64x32xf32>
    %191 = arith.addf %184, %190 : vector<64x32xf32>
    %c1_181 = arith.constant 1 : index
    %c2_182 = arith.constant 2 : index
    %c0_183 = arith.constant 0 : index
    %192 = vector.load %arg16[%c1_181, %c2_182, %c0_183] : memref<10x10x128xf32, #tpu.memory_space<vmem>>, vector<8x8x128xf32>
    %193 = vector.shape_cast %192 : vector<8x8x128xf32> to vector<64x128xf32>
    %194 = arith.truncf %193 : vector<64x128xf32> to vector<64x128xbf16>
    %c1_184 = arith.constant 1 : index
    %c2_185 = arith.constant 2 : index
    %c0_186 = arith.constant 0 : index
    %c0_187 = arith.constant 0 : index
    %195 = vector.load %arg8[%c1_184, %c2_185, %c0_186, %c0_187] : memref<3x3x128x32xbf16, #tpu.memory_space<vmem>>, vector<1x1x128x32xbf16>
    %196 = vector.shape_cast %195 : vector<1x1x128x32xbf16> to vector<128x32xbf16>
    %cst_188 = arith.constant dense<0.000000e+00> : vector<64x32xf32>
    %197 = tpu.matmul %194, %196, %cst_188 {dimension_numbers = #tpu.dot_dimension_numbers<[1], [0], [0], [1], [0, 0, 1, 1], [], []>} : vector<64x128xbf16>, vector<128x32xbf16>, vector<64x32xf32> -> vector<64x32xf32>
    %198 = arith.addf %191, %197 : vector<64x32xf32>
    %c2_189 = arith.constant 2 : index
    %c0_190 = arith.constant 0 : index
    %c0_191 = arith.constant 0 : index
    %199 = vector.load %arg16[%c2_189, %c0_190, %c0_191] : memref<10x10x128xf32, #tpu.memory_space<vmem>>, vector<8x8x128xf32>
    %200 = vector.shape_cast %199 : vector<8x8x128xf32> to vector<64x128xf32>
    %201 = arith.truncf %200 : vector<64x128xf32> to vector<64x128xbf16>
    %c2_192 = arith.constant 2 : index
    %c0_193 = arith.constant 0 : index
    %c0_194 = arith.constant 0 : index
    %c0_195 = arith.constant 0 : index
    %202 = vector.load %arg8[%c2_192, %c0_193, %c0_194, %c0_195] : memref<3x3x128x32xbf16, #tpu.memory_space<vmem>>, vector<1x1x128x32xbf16>
    %203 = vector.shape_cast %202 : vector<1x1x128x32xbf16> to vector<128x32xbf16>
    %cst_196 = arith.constant dense<0.000000e+00> : vector<64x32xf32>
    %204 = tpu.matmul %201, %203, %cst_196 {dimension_numbers = #tpu.dot_dimension_numbers<[1], [0], [0], [1], [0, 0, 1, 1], [], []>} : vector<64x128xbf16>, vector<128x32xbf16>, vector<64x32xf32> -> vector<64x32xf32>
    %205 = arith.addf %198, %204 : vector<64x32xf32>
    %c2_197 = arith.constant 2 : index
    %c1_198 = arith.constant 1 : index
    %c0_199 = arith.constant 0 : index
    %206 = vector.load %arg16[%c2_197, %c1_198, %c0_199] : memref<10x10x128xf32, #tpu.memory_space<vmem>>, vector<8x8x128xf32>
    %207 = vector.shape_cast %206 : vector<8x8x128xf32> to vector<64x128xf32>
    %208 = arith.truncf %207 : vector<64x128xf32> to vector<64x128xbf16>
    %c2_200 = arith.constant 2 : index
    %c1_201 = arith.constant 1 : index
    %c0_202 = arith.constant 0 : index
    %c0_203 = arith.constant 0 : index
    %209 = vector.load %arg8[%c2_200, %c1_201, %c0_202, %c0_203] : memref<3x3x128x32xbf16, #tpu.memory_space<vmem>>, vector<1x1x128x32xbf16>
    %210 = vector.shape_cast %209 : vector<1x1x128x32xbf16> to vector<128x32xbf16>
    %cst_204 = arith.constant dense<0.000000e+00> : vector<64x32xf32>
    %211 = tpu.matmul %208, %210, %cst_204 {dimension_numbers = #tpu.dot_dimension_numbers<[1], [0], [0], [1], [0, 0, 1, 1], [], []>} : vector<64x128xbf16>, vector<128x32xbf16>, vector<64x32xf32> -> vector<64x32xf32>
    %212 = arith.addf %205, %211 : vector<64x32xf32>
    %c2_205 = arith.constant 2 : index
    %c2_206 = arith.constant 2 : index
    %c0_207 = arith.constant 0 : index
    %213 = vector.load %arg16[%c2_205, %c2_206, %c0_207] : memref<10x10x128xf32, #tpu.memory_space<vmem>>, vector<8x8x128xf32>
    %214 = vector.shape_cast %213 : vector<8x8x128xf32> to vector<64x128xf32>
    %215 = arith.truncf %214 : vector<64x128xf32> to vector<64x128xbf16>
    %c2_208 = arith.constant 2 : index
    %c2_209 = arith.constant 2 : index
    %c0_210 = arith.constant 0 : index
    %c0_211 = arith.constant 0 : index
    %216 = vector.load %arg8[%c2_208, %c2_209, %c0_210, %c0_211] : memref<3x3x128x32xbf16, #tpu.memory_space<vmem>>, vector<1x1x128x32xbf16>
    %217 = vector.shape_cast %216 : vector<1x1x128x32xbf16> to vector<128x32xbf16>
    %cst_212 = arith.constant dense<0.000000e+00> : vector<64x32xf32>
    %218 = tpu.matmul %215, %217, %cst_212 {dimension_numbers = #tpu.dot_dimension_numbers<[1], [0], [0], [1], [0, 0, 1, 1], [], []>} : vector<64x128xbf16>, vector<128x32xbf16>, vector<64x32xf32> -> vector<64x32xf32>
    %219 = arith.addf %212, %218 : vector<64x32xf32>
    %c0_213 = arith.constant 0 : index
    %c0_214 = arith.constant 0 : index
    %220 = vector.load %arg9[%c0_213, %c0_214] : memref<1x32xf32, #tpu.memory_space<vmem>>, vector<1x32xf32>
    %221 = vector.broadcast %220 : vector<1x32xf32> to vector<64x32xf32>
    %222 = arith.addf %219, %221 : vector<64x32xf32>
    %cst_215 = arith.constant 0.000000e+00 : f32
    %223 = vector.broadcast %cst_215 : f32 to vector<64x32xf32>
    %224 = arith.maximumf %222, %223 : vector<64x32xf32>
    %225 = arith.truncf %224 : vector<64x32xf32> to vector<64x32xbf16>
    %c0_216 = arith.constant 0 : index
    %c64 = arith.constant 64 : index
    %226 = vector.load %arg15[%c0_216, %c64] : memref<64x96xbf16, #tpu.memory_space<vmem>>, vector<64x32xbf16>
    tpu.vector_store %arg15[%c0_216, %c64], %225 {strides = array<i32>} : memref<64x96xbf16, #tpu.memory_space<vmem>>, vector<64x32xbf16>,
    %c0_217 = arith.constant 0 : index
    %c0_218 = arith.constant 0 : index
    %227 = vector.load %arg15[%c0_217, %c0_218] : memref<64x96xbf16, #tpu.memory_space<vmem>>, vector<64x96xbf16>
    %c0_219 = arith.constant 0 : index
    %c0_220 = arith.constant 0 : index
    %228 = vector.load %arg10[%c0_219, %c0_220] : memref<96x128xbf16, #tpu.memory_space<vmem>>, vector<96x128xbf16>
    %cst_221 = arith.constant dense<0.000000e+00> : vector<64x128xf32>
    %229 = tpu.matmul %227, %228, %cst_221 {dimension_numbers = #tpu.dot_dimension_numbers<[1], [0], [0], [1], [0, 0, 1, 1], [], []>} : vector<64x96xbf16>, vector<96x128xbf16>, vector<64x128xf32> -> vector<64x128xf32>
    %c0_222 = arith.constant 0 : index
    %c0_223 = arith.constant 0 : index
    %230 = vector.load %arg11[%c0_222, %c0_223] : memref<1x128xf32, #tpu.memory_space<vmem>>, vector<1x128xf32>
    %231 = vector.broadcast %230 : vector<1x128xf32> to vector<64x128xf32>
    %232 = arith.addf %229, %231 : vector<64x128xf32>
    %cst_224 = arith.constant 0.000000e+00 : f32
    %233 = vector.broadcast %cst_224 : f32 to vector<64x128xf32>
    %234 = arith.maximumf %232, %233 : vector<64x128xf32>
    %235 = vector.extract_strided_slice %234 {offsets = [0, 0], sizes = [8, 128], strides = [1, 1]} : vector<64x128xf32> to vector<8x128xf32>
    %c1_225 = arith.constant 1 : index
    %c1_226 = arith.constant 1 : index
    %c0_227 = arith.constant 0 : index
    %236 = vector.load %arg16[%c1_225, %c1_226, %c0_227] : memref<10x10x128xf32, #tpu.memory_space<vmem>>, vector<1x8x128xf32>
    %237 = vector.shape_cast %236 : vector<1x8x128xf32> to vector<8x128xf32>
    %238 = vector.shape_cast %235 : vector<8x128xf32> to vector<1x8x128xf32>
    tpu.vector_store %arg16[%c1_225, %c1_226, %c0_227], %238 {strides = array<i32>} : memref<10x10x128xf32, #tpu.memory_space<vmem>>, vector<1x8x128xf32>,
    %239 = vector.extract_strided_slice %234 {offsets = [8, 0], sizes = [8, 128], strides = [1, 1]} : vector<64x128xf32> to vector<8x128xf32>
    %c2_228 = arith.constant 2 : index
    %c1_229 = arith.constant 1 : index
    %c0_230 = arith.constant 0 : index
    %240 = vector.load %arg16[%c2_228, %c1_229, %c0_230] : memref<10x10x128xf32, #tpu.memory_space<vmem>>, vector<1x8x128xf32>
    %241 = vector.shape_cast %240 : vector<1x8x128xf32> to vector<8x128xf32>
    %242 = vector.shape_cast %239 : vector<8x128xf32> to vector<1x8x128xf32>
    tpu.vector_store %arg16[%c2_228, %c1_229, %c0_230], %242 {strides = array<i32>} : memref<10x10x128xf32, #tpu.memory_space<vmem>>, vector<1x8x128xf32>,
    %243 = vector.extract_strided_slice %234 {offsets = [16, 0], sizes = [8, 128], strides = [1, 1]} : vector<64x128xf32> to vector<8x128xf32>
    %c3_231 = arith.constant 3 : index
    %c1_232 = arith.constant 1 : index
    %c0_233 = arith.constant 0 : index
    %244 = vector.load %arg16[%c3_231, %c1_232, %c0_233] : memref<10x10x128xf32, #tpu.memory_space<vmem>>, vector<1x8x128xf32>
    %245 = vector.shape_cast %244 : vector<1x8x128xf32> to vector<8x128xf32>
    %246 = vector.shape_cast %243 : vector<8x128xf32> to vector<1x8x128xf32>
    tpu.vector_store %arg16[%c3_231, %c1_232, %c0_233], %246 {strides = array<i32>} : memref<10x10x128xf32, #tpu.memory_space<vmem>>, vector<1x8x128xf32>,
    %247 = vector.extract_strided_slice %234 {offsets = [24, 0], sizes = [8, 128], strides = [1, 1]} : vector<64x128xf32> to vector<8x128xf32>
    %c4_234 = arith.constant 4 : index
    %c1_235 = arith.constant 1 : index
    %c0_236 = arith.constant 0 : index
    %248 = vector.load %arg16[%c4_234, %c1_235, %c0_236] : memref<10x10x128xf32, #tpu.memory_space<vmem>>, vector<1x8x128xf32>
    %249 = vector.shape_cast %248 : vector<1x8x128xf32> to vector<8x128xf32>
    %250 = vector.shape_cast %247 : vector<8x128xf32> to vector<1x8x128xf32>
    tpu.vector_store %arg16[%c4_234, %c1_235, %c0_236], %250 {strides = array<i32>} : memref<10x10x128xf32, #tpu.memory_space<vmem>>, vector<1x8x128xf32>,
    %251 = vector.extract_strided_slice %234 {offsets = [32, 0], sizes = [8, 128], strides = [1, 1]} : vector<64x128xf32> to vector<8x128xf32>
    %c5_237 = arith.constant 5 : index
    %c1_238 = arith.constant 1 : index
    %c0_239 = arith.constant 0 : index
    %252 = vector.load %arg16[%c5_237, %c1_238, %c0_239] : memref<10x10x128xf32, #tpu.memory_space<vmem>>, vector<1x8x128xf32>
    %253 = vector.shape_cast %252 : vector<1x8x128xf32> to vector<8x128xf32>
    %254 = vector.shape_cast %251 : vector<8x128xf32> to vector<1x8x128xf32>
    tpu.vector_store %arg16[%c5_237, %c1_238, %c0_239], %254 {strides = array<i32>} : memref<10x10x128xf32, #tpu.memory_space<vmem>>, vector<1x8x128xf32>,
    %255 = vector.extract_strided_slice %234 {offsets = [40, 0], sizes = [8, 128], strides = [1, 1]} : vector<64x128xf32> to vector<8x128xf32>
    %c6_240 = arith.constant 6 : index
    %c1_241 = arith.constant 1 : index
    %c0_242 = arith.constant 0 : index
    %256 = vector.load %arg16[%c6_240, %c1_241, %c0_242] : memref<10x10x128xf32, #tpu.memory_space<vmem>>, vector<1x8x128xf32>
    %257 = vector.shape_cast %256 : vector<1x8x128xf32> to vector<8x128xf32>
    %258 = vector.shape_cast %255 : vector<8x128xf32> to vector<1x8x128xf32>
    tpu.vector_store %arg16[%c6_240, %c1_241, %c0_242], %258 {strides = array<i32>} : memref<10x10x128xf32, #tpu.memory_space<vmem>>, vector<1x8x128xf32>,
    %259 = vector.extract_strided_slice %234 {offsets = [48, 0], sizes = [8, 128], strides = [1, 1]} : vector<64x128xf32> to vector<8x128xf32>
    %c7_243 = arith.constant 7 : index
    %c1_244 = arith.constant 1 : index
    %c0_245 = arith.constant 0 : index
    %260 = vector.load %arg16[%c7_243, %c1_244, %c0_245] : memref<10x10x128xf32, #tpu.memory_space<vmem>>, vector<1x8x128xf32>
    %261 = vector.shape_cast %260 : vector<1x8x128xf32> to vector<8x128xf32>
    %262 = vector.shape_cast %259 : vector<8x128xf32> to vector<1x8x128xf32>
    tpu.vector_store %arg16[%c7_243, %c1_244, %c0_245], %262 {strides = array<i32>} : memref<10x10x128xf32, #tpu.memory_space<vmem>>, vector<1x8x128xf32>,
    %263 = vector.extract_strided_slice %234 {offsets = [56, 0], sizes = [8, 128], strides = [1, 1]} : vector<64x128xf32> to vector<8x128xf32>
    %c8_246 = arith.constant 8 : index
    %c1_247 = arith.constant 1 : index
    %c0_248 = arith.constant 0 : index
    %264 = vector.load %arg16[%c8_246, %c1_247, %c0_248] : memref<10x10x128xf32, #tpu.memory_space<vmem>>, vector<1x8x128xf32>
    %265 = vector.shape_cast %264 : vector<1x8x128xf32> to vector<8x128xf32>
    %266 = vector.shape_cast %263 : vector<8x128xf32> to vector<1x8x128xf32>
    tpu.vector_store %arg16[%c8_246, %c1_247, %c0_248], %266 {strides = array<i32>} : memref<10x10x128xf32, #tpu.memory_space<vmem>>, vector<1x8x128xf32>,
    %cst_249 = arith.constant 0.000000e+00 : f32
    %267 = vector.broadcast %cst_249 : f32 to vector<64x32xf32>
    %c0_250 = arith.constant 0 : index
    %c0_251 = arith.constant 0 : index
    %c0_252 = arith.constant 0 : index
    %268 = vector.load %arg16[%c0_250, %c0_251, %c0_252] : memref<10x10x128xf32, #tpu.memory_space<vmem>>, vector<8x8x128xf32>
    %269 = vector.shape_cast %268 : vector<8x8x128xf32> to vector<64x128xf32>
    %270 = arith.truncf %269 : vector<64x128xf32> to vector<64x128xbf16>
    %c0_253 = arith.constant 0 : index
    %c0_254 = arith.constant 0 : index
    %c0_255 = arith.constant 0 : index
    %c0_256 = arith.constant 0 : index
    %271 = vector.load %arg12[%c0_253, %c0_254, %c0_255, %c0_256] : memref<3x3x128x32xbf16, #tpu.memory_space<vmem>>, vector<1x1x128x32xbf16>
    %272 = vector.shape_cast %271 : vector<1x1x128x32xbf16> to vector<128x32xbf16>
    %cst_257 = arith.constant dense<0.000000e+00> : vector<64x32xf32>
    %273 = tpu.matmul %270, %272, %cst_257 {dimension_numbers = #tpu.dot_dimension_numbers<[1], [0], [0], [1], [0, 0, 1, 1], [], []>} : vector<64x128xbf16>, vector<128x32xbf16>, vector<64x32xf32> -> vector<64x32xf32>
    %274 = arith.addf %267, %273 : vector<64x32xf32>
    %c0_258 = arith.constant 0 : index
    %c1_259 = arith.constant 1 : index
    %c0_260 = arith.constant 0 : index
    %275 = vector.load %arg16[%c0_258, %c1_259, %c0_260] : memref<10x10x128xf32, #tpu.memory_space<vmem>>, vector<8x8x128xf32>
    %276 = vector.shape_cast %275 : vector<8x8x128xf32> to vector<64x128xf32>
    %277 = arith.truncf %276 : vector<64x128xf32> to vector<64x128xbf16>
    %c0_261 = arith.constant 0 : index
    %c1_262 = arith.constant 1 : index
    %c0_263 = arith.constant 0 : index
    %c0_264 = arith.constant 0 : index
    %278 = vector.load %arg12[%c0_261, %c1_262, %c0_263, %c0_264] : memref<3x3x128x32xbf16, #tpu.memory_space<vmem>>, vector<1x1x128x32xbf16>
    %279 = vector.shape_cast %278 : vector<1x1x128x32xbf16> to vector<128x32xbf16>
    %cst_265 = arith.constant dense<0.000000e+00> : vector<64x32xf32>
    %280 = tpu.matmul %277, %279, %cst_265 {dimension_numbers = #tpu.dot_dimension_numbers<[1], [0], [0], [1], [0, 0, 1, 1], [], []>} : vector<64x128xbf16>, vector<128x32xbf16>, vector<64x32xf32> -> vector<64x32xf32>
    %281 = arith.addf %274, %280 : vector<64x32xf32>
    %c0_266 = arith.constant 0 : index
    %c2_267 = arith.constant 2 : index
    %c0_268 = arith.constant 0 : index
    %282 = vector.load %arg16[%c0_266, %c2_267, %c0_268] : memref<10x10x128xf32, #tpu.memory_space<vmem>>, vector<8x8x128xf32>
    %283 = vector.shape_cast %282 : vector<8x8x128xf32> to vector<64x128xf32>
    %284 = arith.truncf %283 : vector<64x128xf32> to vector<64x128xbf16>
    %c0_269 = arith.constant 0 : index
    %c2_270 = arith.constant 2 : index
    %c0_271 = arith.constant 0 : index
    %c0_272 = arith.constant 0 : index
    %285 = vector.load %arg12[%c0_269, %c2_270, %c0_271, %c0_272] : memref<3x3x128x32xbf16, #tpu.memory_space<vmem>>, vector<1x1x128x32xbf16>
    %286 = vector.shape_cast %285 : vector<1x1x128x32xbf16> to vector<128x32xbf16>
    %cst_273 = arith.constant dense<0.000000e+00> : vector<64x32xf32>
    %287 = tpu.matmul %284, %286, %cst_273 {dimension_numbers = #tpu.dot_dimension_numbers<[1], [0], [0], [1], [0, 0, 1, 1], [], []>} : vector<64x128xbf16>, vector<128x32xbf16>, vector<64x32xf32> -> vector<64x32xf32>
    %288 = arith.addf %281, %287 : vector<64x32xf32>
    %c1_274 = arith.constant 1 : index
    %c0_275 = arith.constant 0 : index
    %c0_276 = arith.constant 0 : index
    %289 = vector.load %arg16[%c1_274, %c0_275, %c0_276] : memref<10x10x128xf32, #tpu.memory_space<vmem>>, vector<8x8x128xf32>
    %290 = vector.shape_cast %289 : vector<8x8x128xf32> to vector<64x128xf32>
    %291 = arith.truncf %290 : vector<64x128xf32> to vector<64x128xbf16>
    %c1_277 = arith.constant 1 : index
    %c0_278 = arith.constant 0 : index
    %c0_279 = arith.constant 0 : index
    %c0_280 = arith.constant 0 : index
    %292 = vector.load %arg12[%c1_277, %c0_278, %c0_279, %c0_280] : memref<3x3x128x32xbf16, #tpu.memory_space<vmem>>, vector<1x1x128x32xbf16>
    %293 = vector.shape_cast %292 : vector<1x1x128x32xbf16> to vector<128x32xbf16>
    %cst_281 = arith.constant dense<0.000000e+00> : vector<64x32xf32>
    %294 = tpu.matmul %291, %293, %cst_281 {dimension_numbers = #tpu.dot_dimension_numbers<[1], [0], [0], [1], [0, 0, 1, 1], [], []>} : vector<64x128xbf16>, vector<128x32xbf16>, vector<64x32xf32> -> vector<64x32xf32>
    %295 = arith.addf %288, %294 : vector<64x32xf32>
    %c1_282 = arith.constant 1 : index
    %c1_283 = arith.constant 1 : index
    %c0_284 = arith.constant 0 : index
    %296 = vector.load %arg16[%c1_282, %c1_283, %c0_284] : memref<10x10x128xf32, #tpu.memory_space<vmem>>, vector<8x8x128xf32>
    %297 = vector.shape_cast %296 : vector<8x8x128xf32> to vector<64x128xf32>
    %298 = arith.truncf %297 : vector<64x128xf32> to vector<64x128xbf16>
    %c1_285 = arith.constant 1 : index
    %c1_286 = arith.constant 1 : index
    %c0_287 = arith.constant 0 : index
    %c0_288 = arith.constant 0 : index
    %299 = vector.load %arg12[%c1_285, %c1_286, %c0_287, %c0_288] : memref<3x3x128x32xbf16, #tpu.memory_space<vmem>>, vector<1x1x128x32xbf16>
    %300 = vector.shape_cast %299 : vector<1x1x128x32xbf16> to vector<128x32xbf16>
    %cst_289 = arith.constant dense<0.000000e+00> : vector<64x32xf32>
    %301 = tpu.matmul %298, %300, %cst_289 {dimension_numbers = #tpu.dot_dimension_numbers<[1], [0], [0], [1], [0, 0, 1, 1], [], []>} : vector<64x128xbf16>, vector<128x32xbf16>, vector<64x32xf32> -> vector<64x32xf32>
    %302 = arith.addf %295, %301 : vector<64x32xf32>
    %c1_290 = arith.constant 1 : index
    %c2_291 = arith.constant 2 : index
    %c0_292 = arith.constant 0 : index
    %303 = vector.load %arg16[%c1_290, %c2_291, %c0_292] : memref<10x10x128xf32, #tpu.memory_space<vmem>>, vector<8x8x128xf32>
    %304 = vector.shape_cast %303 : vector<8x8x128xf32> to vector<64x128xf32>
    %305 = arith.truncf %304 : vector<64x128xf32> to vector<64x128xbf16>
    %c1_293 = arith.constant 1 : index
    %c2_294 = arith.constant 2 : index
    %c0_295 = arith.constant 0 : index
    %c0_296 = arith.constant 0 : index
    %306 = vector.load %arg12[%c1_293, %c2_294, %c0_295, %c0_296] : memref<3x3x128x32xbf16, #tpu.memory_space<vmem>>, vector<1x1x128x32xbf16>
    %307 = vector.shape_cast %306 : vector<1x1x128x32xbf16> to vector<128x32xbf16>
    %cst_297 = arith.constant dense<0.000000e+00> : vector<64x32xf32>
    %308 = tpu.matmul %305, %307, %cst_297 {dimension_numbers = #tpu.dot_dimension_numbers<[1], [0], [0], [1], [0, 0, 1, 1], [], []>} : vector<64x128xbf16>, vector<128x32xbf16>, vector<64x32xf32> -> vector<64x32xf32>
    %309 = arith.addf %302, %308 : vector<64x32xf32>
    %c2_298 = arith.constant 2 : index
    %c0_299 = arith.constant 0 : index
    %c0_300 = arith.constant 0 : index
    %310 = vector.load %arg16[%c2_298, %c0_299, %c0_300] : memref<10x10x128xf32, #tpu.memory_space<vmem>>, vector<8x8x128xf32>
    %311 = vector.shape_cast %310 : vector<8x8x128xf32> to vector<64x128xf32>
    %312 = arith.truncf %311 : vector<64x128xf32> to vector<64x128xbf16>
    %c2_301 = arith.constant 2 : index
    %c0_302 = arith.constant 0 : index
    %c0_303 = arith.constant 0 : index
    %c0_304 = arith.constant 0 : index
    %313 = vector.load %arg12[%c2_301, %c0_302, %c0_303, %c0_304] : memref<3x3x128x32xbf16, #tpu.memory_space<vmem>>, vector<1x1x128x32xbf16>
    %314 = vector.shape_cast %313 : vector<1x1x128x32xbf16> to vector<128x32xbf16>
    %cst_305 = arith.constant dense<0.000000e+00> : vector<64x32xf32>
    %315 = tpu.matmul %312, %314, %cst_305 {dimension_numbers = #tpu.dot_dimension_numbers<[1], [0], [0], [1], [0, 0, 1, 1], [], []>} : vector<64x128xbf16>, vector<128x32xbf16>, vector<64x32xf32> -> vector<64x32xf32>
    %316 = arith.addf %309, %315 : vector<64x32xf32>
    %c2_306 = arith.constant 2 : index
    %c1_307 = arith.constant 1 : index
    %c0_308 = arith.constant 0 : index
    %317 = vector.load %arg16[%c2_306, %c1_307, %c0_308] : memref<10x10x128xf32, #tpu.memory_space<vmem>>, vector<8x8x128xf32>
    %318 = vector.shape_cast %317 : vector<8x8x128xf32> to vector<64x128xf32>
    %319 = arith.truncf %318 : vector<64x128xf32> to vector<64x128xbf16>
    %c2_309 = arith.constant 2 : index
    %c1_310 = arith.constant 1 : index
    %c0_311 = arith.constant 0 : index
    %c0_312 = arith.constant 0 : index
    %320 = vector.load %arg12[%c2_309, %c1_310, %c0_311, %c0_312] : memref<3x3x128x32xbf16, #tpu.memory_space<vmem>>, vector<1x1x128x32xbf16>
    %321 = vector.shape_cast %320 : vector<1x1x128x32xbf16> to vector<128x32xbf16>
    %cst_313 = arith.constant dense<0.000000e+00> : vector<64x32xf32>
    %322 = tpu.matmul %319, %321, %cst_313 {dimension_numbers = #tpu.dot_dimension_numbers<[1], [0], [0], [1], [0, 0, 1, 1], [], []>} : vector<64x128xbf16>, vector<128x32xbf16>, vector<64x32xf32> -> vector<64x32xf32>
    %323 = arith.addf %316, %322 : vector<64x32xf32>
    %c2_314 = arith.constant 2 : index
    %c2_315 = arith.constant 2 : index
    %c0_316 = arith.constant 0 : index
    %324 = vector.load %arg16[%c2_314, %c2_315, %c0_316] : memref<10x10x128xf32, #tpu.memory_space<vmem>>, vector<8x8x128xf32>
    %325 = vector.shape_cast %324 : vector<8x8x128xf32> to vector<64x128xf32>
    %326 = arith.truncf %325 : vector<64x128xf32> to vector<64x128xbf16>
    %c2_317 = arith.constant 2 : index
    %c2_318 = arith.constant 2 : index
    %c0_319 = arith.constant 0 : index
    %c0_320 = arith.constant 0 : index
    %327 = vector.load %arg12[%c2_317, %c2_318, %c0_319, %c0_320] : memref<3x3x128x32xbf16, #tpu.memory_space<vmem>>, vector<1x1x128x32xbf16>
    %328 = vector.shape_cast %327 : vector<1x1x128x32xbf16> to vector<128x32xbf16>
    %cst_321 = arith.constant dense<0.000000e+00> : vector<64x32xf32>
    %329 = tpu.matmul %326, %328, %cst_321 {dimension_numbers = #tpu.dot_dimension_numbers<[1], [0], [0], [1], [0, 0, 1, 1], [], []>} : vector<64x128xbf16>, vector<128x32xbf16>, vector<64x32xf32> -> vector<64x32xf32>
    %330 = arith.addf %323, %329 : vector<64x32xf32>
    %c0_322 = arith.constant 0 : index
    %c0_323 = arith.constant 0 : index
    %331 = vector.load %arg13[%c0_322, %c0_323] : memref<1x32xf32, #tpu.memory_space<vmem>>, vector<1x32xf32>
    %332 = vector.broadcast %331 : vector<1x32xf32> to vector<64x32xf32>
    %333 = arith.addf %330, %332 : vector<64x32xf32>
    %cst_324 = arith.constant 0.000000e+00 : f32
    %334 = vector.broadcast %cst_324 : f32 to vector<64x32xf32>
    %335 = arith.maximumf %333, %334 : vector<64x32xf32>
    %c0_325 = arith.constant 0 : index
    %c0_326 = arith.constant 0 : index
    %c0_327 = arith.constant 0 : index
    %336 = vector.load %arg14[%c0_325, %c0_326, %c0_327] : memref<1x64x32xf32, #tpu.memory_space<vmem>>, vector<1x64x32xf32>
    %337 = vector.shape_cast %336 : vector<1x64x32xf32> to vector<64x32xf32>
    %338 = vector.shape_cast %335 : vector<64x32xf32> to vector<1x64x32xf32>
    tpu.vector_store %arg14[%c0_325, %c0_326, %c0_327], %338 {strides = array<i32>} : memref<1x64x32xf32, #tpu.memory_space<vmem>>, vector<1x64x32xf32>,
    return
  }
  func.func @transform_0(%arg0: i32) -> (i32, i32, i32) {
    %c0_i32 = arith.constant 0 : i32
    %c0_i32_0 = arith.constant 0 : i32
    %c0_i32_1 = arith.constant 0 : i32
    return %arg0, %c0_i32, %c0_i32_0 : i32, i32, i32
  }
  func.func @transform_1(%arg0: i32) -> (i32, i32) {
    %c0_i32 = arith.constant 0 : i32
    %c0_i32_0 = arith.constant 0 : i32
    %c0_i32_1 = arith.constant 0 : i32
    return %c0_i32, %c0_i32_0 : i32, i32
  }
  func.func @transform_2(%arg0: i32) -> (i32, i32) {
    %c0_i32 = arith.constant 0 : i32
    %c0_i32_0 = arith.constant 0 : i32
    %c0_i32_1 = arith.constant 0 : i32
    return %c0_i32, %c0_i32_0 : i32, i32
  }
  func.func @transform_3(%arg0: i32) -> (i32, i32, i32, i32) {
    %c0_i32 = arith.constant 0 : i32
    %c0_i32_0 = arith.constant 0 : i32
    %c0_i32_1 = arith.constant 0 : i32
    %c0_i32_2 = arith.constant 0 : i32
    %c0_i32_3 = arith.constant 0 : i32
    return %c0_i32, %c0_i32_0, %c0_i32_1, %c0_i32_2 : i32, i32, i32, i32
  }
  func.func @transform_4(%arg0: i32) -> (i32, i32) {
    %c0_i32 = arith.constant 0 : i32
    %c0_i32_0 = arith.constant 0 : i32
    %c0_i32_1 = arith.constant 0 : i32
    return %c0_i32, %c0_i32_0 : i32, i32
  }
  func.func @transform_5(%arg0: i32) -> (i32, i32) {
    %c0_i32 = arith.constant 0 : i32
    %c0_i32_0 = arith.constant 0 : i32
    %c0_i32_1 = arith.constant 0 : i32
    return %c0_i32, %c0_i32_0 : i32, i32
  }
  func.func @transform_6(%arg0: i32) -> (i32, i32) {
    %c0_i32 = arith.constant 0 : i32
    %c0_i32_0 = arith.constant 0 : i32
    %c0_i32_1 = arith.constant 0 : i32
    return %c0_i32, %c0_i32_0 : i32, i32
  }
  func.func @transform_7(%arg0: i32) -> (i32, i32, i32, i32) {
    %c0_i32 = arith.constant 0 : i32
    %c0_i32_0 = arith.constant 0 : i32
    %c0_i32_1 = arith.constant 0 : i32
    %c0_i32_2 = arith.constant 0 : i32
    %c0_i32_3 = arith.constant 0 : i32
    return %c0_i32, %c0_i32_0, %c0_i32_1, %c0_i32_2 : i32, i32, i32, i32
  }
  func.func @transform_8(%arg0: i32) -> (i32, i32) {
    %c0_i32 = arith.constant 0 : i32
    %c0_i32_0 = arith.constant 0 : i32
    %c0_i32_1 = arith.constant 0 : i32
    return %c0_i32, %c0_i32_0 : i32, i32
  }
  func.func @transform_9(%arg0: i32) -> (i32, i32) {
    %c0_i32 = arith.constant 0 : i32
    %c0_i32_0 = arith.constant 0 : i32
    %c0_i32_1 = arith.constant 0 : i32
    return %c0_i32, %c0_i32_0 : i32, i32
  }
  func.func @transform_10(%arg0: i32) -> (i32, i32) {
    %c0_i32 = arith.constant 0 : i32
    %c0_i32_0 = arith.constant 0 : i32
    %c0_i32_1 = arith.constant 0 : i32
    return %c0_i32, %c0_i32_0 : i32, i32
  }
  func.func @transform_11(%arg0: i32) -> (i32, i32, i32, i32) {
    %c0_i32 = arith.constant 0 : i32
    %c0_i32_0 = arith.constant 0 : i32
    %c0_i32_1 = arith.constant 0 : i32
    %c0_i32_2 = arith.constant 0 : i32
    %c0_i32_3 = arith.constant 0 : i32
    return %c0_i32, %c0_i32_0, %c0_i32_1, %c0_i32_2 : i32, i32, i32, i32
  }
  func.func @transform_12(%arg0: i32) -> (i32, i32) {
    %c0_i32 = arith.constant 0 : i32
    %c0_i32_0 = arith.constant 0 : i32
    %c0_i32_1 = arith.constant 0 : i32
    return %c0_i32, %c0_i32_0 : i32, i32
  }
  func.func @transform_13(%arg0: i32) -> (i32, i32, i32) {
    %c0_i32 = arith.constant 0 : i32
    %c0_i32_0 = arith.constant 0 : i32
    %c0_i32_1 = arith.constant 0 : i32
    return %arg0, %c0_i32, %c0_i32_0 : i32, i32, i32
  }
}

</mosaic_0001>

<llo_original>
// kernel: dense_block_forward.1
$region0: #{dense_block_forward.1}
  #allocation0 [shape = 'u32[]', space=smem, size = 0x4, offset = 0x4, fixed_abs, tag = 'smem constant byte address 0x4 - core index']
  #allocation1 [shape = 'u32[144,128]{1,0:T(1,128)}', space=vmem, size = 0x12000, scoped, tag = 'internal scratch']
  #allocation2 [shape = 'bf16[64,96]{1,0:T(8,128)(2,1)}', space=vmem, size = 0x4000, scoped, tag = 'scratch operand']
  #allocation3 [shape = 'f32[10,10,128]{2,1,0:T(8,128)}', space=vmem, size = 0x14000, scoped, tag = 'scratch operand']
  %s0 = inlined_call_operand.vmem [shape: bf16[2,64,32], index: 0, kind: input, shape index: {}]
  %s1 = inlined_call_operand.vmem [shape: bf16[32,128], index: 1, kind: input, shape index: {}]
  %s2 = inlined_call_operand.vmem [shape: f32[1,128], index: 2, kind: input, shape index: {}]
  %s3 = inlined_call_operand.vmem [shape: bf16[3,3,128,32], index: 3, kind: input, shape index: {}]
  %s4 = inlined_call_operand.vmem [shape: f32[1,32], index: 4, kind: input, shape index: {}]
  %s5 = inlined_call_operand.vmem [shape: bf16[64,128], index: 5, kind: input, shape index: {}]
  %s6 = inlined_call_operand.vmem [shape: f32[1,128], index: 6, kind: input, shape index: {}]
  %s7 = inlined_call_operand.vmem [shape: bf16[3,3,128,32], index: 7, kind: input, shape index: {}]
  %s8 = inlined_call_operand.vmem [shape: f32[1,32], index: 8, kind: input, shape index: {}]
  %s9 = inlined_call_operand.vmem [shape: bf16[96,128], index: 9, kind: input, shape index: {}]
  %s10 = inlined_call_operand.vmem [shape: f32[1,128], index: 10, kind: input, shape index: {}]
  %s11 = inlined_call_operand.vmem [shape: bf16[3,3,128,32], index: 11, kind: input, shape index: {}]
  %s12 = inlined_call_operand.vmem [shape: f32[1,32], index: 12, kind: input, shape index: {}]
  %s13 = inlined_call_operand.vmem [shape: f32[2,64,32], index: 13, kind: output, shape index: {}]
  %s14 = sld [smem:[#allocation0]]
  $region85: #{dense_block_forward.1} parent=0
    _
  %s16 = ssub.s32 1, %s14
  %s17 = scalar_select 0, %s16, %s14
  loop: start=0, step=1, limit=4
  $region2: #{dense_block_forward.1} parent=0 // loop_pre_header
    _
  $region3: #{dense_block_forward.1} parent=0 // loop_header
    %s19 = sphi 0, %s23
    %p20 = scmp.ge.s32.totalorder %s19, 4
    %s29 = sphi 0, %s31
    %s32 = sphi 0, %s29
    %s33 = sphi 0, %s32
    %s49 = sphi 0, %s33
    %s53 = sphi 0, %s53
    %s55 = sphi 0, %s53
    %s56 = sphi 0, %s55
    %s70 = sphi 0, %s56
    %s74 = sphi 0, %s74
    %s76 = sphi 0, %s74
    %s77 = sphi 0, %s76
    %s91 = sphi 0, %s77
    %s95 = sphi 0, %s95
    %s97 = sphi 0, %s95
    %s98 = sphi 0, %s97
    %s112 = sphi 0, %s98
    %s116 = sphi 0, %s116
    %s118 = sphi 0, %s116
    %s119 = sphi 0, %s118
    %s133 = sphi 0, %s119
    %s137 = sphi 0, %s137
    %s139 = sphi 0, %s137
    %s140 = sphi 0, %s139
    %s154 = sphi 0, %s140
    %s158 = sphi 0, %s158
    %s160 = sphi 0, %s158
    %s161 = sphi 0, %s160
    %s175 = sphi 0, %s161
    %s179 = sphi 0, %s179
    %s181 = sphi 0, %s179
    %s182 = sphi 0, %s181
    %s196 = sphi 0, %s182
    %s200 = sphi 0, %s200
    %s202 = sphi 0, %s200
    %s203 = sphi 0, %s202
    %s217 = sphi 0, %s203
    %s221 = sphi 0, %s221
    %s223 = sphi 0, %s221
    %s224 = sphi 0, %s223
    %s238 = sphi 0, %s224
    %s242 = sphi 0, %s242
    %s244 = sphi 0, %s242
    %s245 = sphi 0, %s244
    %s259 = sphi 0, %s245
    %s263 = sphi 0, %s263
    %s265 = sphi 0, %s263
    %s266 = sphi 0, %s265
    %s280 = sphi 0, %s266
    %s284 = sphi 0, %s284
    %s286 = sphi 0, %s284
    %s287 = sphi 0, %s286
    %s301 = sphi 0, %s287
    %s307 = sphi 0, %s309
    %s310 = sphi 0, %s307
    %s311 = sphi 0, %s310
    %s327 = sphi 0, %s311
  $region4: #{dense_block_forward.1} parent=0 // loop_header_branch
    %22 = sbr.rel (%p20) target = $region8
  $region5: #{dense_block_forward.1} parent=0 // loop_body
    %s24 = ssub.s32 %s19, 1
    %s25 = ssub.s32 %s19, 2
    %s26 = sadd.s32 %s19, 1
    %s27 = ssub.s32 %s19, %s26
    %p28 = scmp.eq.s32.totalorder %s27, 0
    %s30 = sadd.s32 %s29, 1
    %s31 = scalar_select %p28, %s29, %s30
    %p34 = pneg %p28
    %p35 = scmp.eq.s32.totalorder %s19, 1
    %p36 = por %p34, %p35
    %p37 = scmp.ne.s32.totalorder %s29, %s32
    %p38 = scmp.eq.s32.totalorder %s19, 0
    %p39 = por %p37, %p38
    %p40 = scmp.ne.s32.totalorder %s29, %s32
    %p41 = scmp.eq.s32.totalorder %s24, 1
    %p42 = por %p40, %p41
    %p43 = scmp.ne.s32.totalorder %s32, %s33
    %p44 = scmp.eq.s32.totalorder %s24, 0
    %p45 = por %p43, %p44
    %p46 = scmp.ne.s32.totalorder %s32, %s33
    %p47 = scmp.eq.s32.totalorder %s25, 1
    %p48 = por %p46, %p47
    %p50 = scmp.ne.s32.totalorder %s33, %s49
    %p51 = scmp.eq.s32.totalorder %s25, 0
    %p52 = por %p50, %p51
    %s54 = sadd.s32 %s53, 1
    %p57 = scmp.eq.s32.totalorder %s19, 1
    %p58 = scmp.ne.s32.totalorder %s53, %s55
    %p59 = scmp.eq.s32.totalorder %s19, 0
    %p60 = por %p58, %p59
    %p61 = scmp.ne.s32.totalorder %s53, %s55
    %p62 = scmp.eq.s32.totalorder %s24, 1
    %p63 = por %p61, %p62
    %p64 = scmp.ne.s32.totalorder %s55, %s56
    %p65 = scmp.eq.s32.totalorder %s24, 0
    %p66 = por %p64, %p65
    %p67 = scmp.ne.s32.totalorder %s55, %s56
    %p68 = scmp.eq.s32.totalorder %s25, 1
    %p69 = por %p67, %p68
    %p71 = scmp.ne.s32.totalorder %s56, %s70
    %p72 = scmp.eq.s32.totalorder %s25, 0
    %p73 = por %p71, %p72
    %s75 = sadd.s32 %s74, 1
    %p78 = scmp.eq.s32.totalorder %s19, 1
    %p79 = scmp.ne.s32.totalorder %s74, %s76
    %p80 = scmp.eq.s32.totalorder %s19, 0
    %p81 = por %p79, %p80
    %p82 = scmp.ne.s32.totalorder %s74, %s76
    %p83 = scmp.eq.s32.totalorder %s24, 1
    %p84 = por %p82, %p83
    %p85 = scmp.ne.s32.totalorder %s76, %s77
    %p86 = scmp.eq.s32.totalorder %s24, 0
    %p87 = por %p85, %p86
    %p88 = scmp.ne.s32.totalorder %s76, %s77
    %p89 = scmp.eq.s32.totalorder %s25, 1
    %p90 = por %p88, %p89
    %p92 = scmp.ne.s32.totalorder %s77, %s91
    %p93 = scmp.eq.s32.totalorder %s25, 0
    %p94 = por %p92, %p93
    %s96 = sadd.s32 %s95, 1
    %p99 = scmp.eq.s32.totalorder %s19, 1
    %p100 = scmp.ne.s32.totalorder %s95, %s97
    %p101 = scmp.eq.s32.totalorder %s19, 0
    %p102 = por %p100, %p101
    %p103 = scmp.ne.s32.totalorder %s95, %s97
    %p104 = scmp.eq.s32.totalorder %s24, 1
    %p105 = por %p103, %p104
    %p106 = scmp.ne.s32.totalorder %s97, %s98
    %p107 = scmp.eq.s32.totalorder %s24, 0
    %p108 = por %p106, %p107
    %p109 = scmp.ne.s32.totalorder %s97, %s98
    %p110 = scmp.eq.s32.totalorder %s25, 1
    %p111 = por %p109, %p110
    %p113 = scmp.ne.s32.totalorder %s98, %s112
    %p114 = scmp.eq.s32.totalorder %s25, 0
    %p115 = por %p113, %p114
    %s117 = sadd.s32 %s116, 1
    %p120 = scmp.eq.s32.totalorder %s19, 1
    %p121 = scmp.ne.s32.totalorder %s116, %s118
    %p122 = scmp.eq.s32.totalorder %s19, 0
    %p123 = por %p121, %p122
    %p124 = scmp.ne.s32.totalorder %s116, %s118
    %p125 = scmp.eq.s32.totalorder %s24, 1
    %p126 = por %p124, %p125
    %p127 = scmp.ne.s32.totalorder %s118, %s119
    %p128 = scmp.eq.s32.totalorder %s24, 0
    %p129 = por %p127, %p128
    %p130 = scmp.ne.s32.totalorder %s118, %s119
    %p131 = scmp.eq.s32.totalorder %s25, 1
    %p132 = por %p130, %p131
    %p134 = scmp.ne.s32.totalorder %s119, %s133
    %p135 = scmp.eq.s32.totalorder %s25, 0
    %p136 = por %p134, %p135
    %s138 = sadd.s32 %s137, 1
    %p141 = scmp.eq.s32.totalorder %s19, 1
    %p142 = scmp.ne.s32.totalorder %s137, %s139
    %p143 = scmp.eq.s32.totalorder %s19, 0
    %p144 = por %p142, %p143
    %p145 = scmp.ne.s32.totalorder %s137, %s139
    %p146 = scmp.eq.s32.totalorder %s24, 1
    %p147 = por %p145, %p146
    %p148 = scmp.ne.s32.totalorder %s139, %s140
    %p149 = scmp.eq.s32.totalorder %s24, 0
    %p150 = por %p148, %p149
    %p151 = scmp.ne.s32.totalorder %s139, %s140
    %p152 = scmp.eq.s32.totalorder %s25, 1
    %p153 = por %p151, %p152
    %p155 = scmp.ne.s32.totalorder %s140, %s154
    %p156 = scmp.eq.s32.totalorder %s25, 0
    %p157 = por %p155, %p156
    %s159 = sadd.s32 %s158, 1
    %p162 = scmp.eq.s32.totalorder %s19, 1
    %p163 = scmp.ne.s32.totalorder %s158, %s160
    %p164 = scmp.eq.s32.totalorder %s19, 0
    %p165 = por %p163, %p164
    %p166 = scmp.ne.s32.totalorder %s158, %s160
    %p167 = scmp.eq.s32.totalorder %s24, 1
    %p168 = por %p166, %p167
    %p169 = scmp.ne.s32.totalorder %s160, %s161
    %p170 = scmp.eq.s32.totalorder %s24, 0
    %p171 = por %p169, %p170
    %p172 = scmp.ne.s32.totalorder %s160, %s161
    %p173 = scmp.eq.s32.totalorder %s25, 1
    %p174 = por %p172, %p173
    %p176 = scmp.ne.s32.totalorder %s161, %s175
    %p177 = scmp.eq.s32.totalorder %s25, 0
    %p178 = por %p176, %p177
    %s180 = sadd.s32 %s179, 1
    %p183 = scmp.eq.s32.totalorder %s19, 1
    %p184 = scmp.ne.s32.totalorder %s179, %s181
    %p185 = scmp.eq.s32.totalorder %s19, 0
    %p186 = por %p184, %p185
    %p187 = scmp.ne.s32.totalorder %s179, %s181
    %p188 = scmp.eq.s32.totalorder %s24, 1
    %p189 = por %p187, %p188
    %p190 = scmp.ne.s32.totalorder %s181, %s182
    %p191 = scmp.eq.s32.totalorder %s24, 0
    %p192 = por %p190, %p191
    %p193 = scmp.ne.s32.totalorder %s181, %s182
    %p194 = scmp.eq.s32.totalorder %s25, 1
    %p195 = por %p193, %p194
    %p197 = scmp.ne.s32.totalorder %s182, %s196
    %p198 = scmp.eq.s32.totalorder %s25, 0
    %p199 = por %p197, %p198
    %s201 = sadd.s32 %s200, 1
    %p204 = scmp.eq.s32.totalorder %s19, 1
    %p205 = scmp.ne.s32.totalorder %s200, %s202
    %p206 = scmp.eq.s32.totalorder %s19, 0
    %p207 = por %p205, %p206
    %p208 = scmp.ne.s32.totalorder %s200, %s202
    %p209 = scmp.eq.s32.totalorder %s24, 1
    %p210 = por %p208, %p209
    %p211 = scmp.ne.s32.totalorder %s202, %s203
    %p212 = scmp.eq.s32.totalorder %s24, 0
    %p213 = por %p211, %p212
    %p214 = scmp.ne.s32.totalorder %s202, %s203
    %p215 = scmp.eq.s32.totalorder %s25, 1
    %p216 = por %p214, %p215
    %p218 = scmp.ne.s32.totalorder %s203, %s217
    %p219 = scmp.eq.s32.totalorder %s25, 0
    %p220 = por %p218, %p219
    %s222 = sadd.s32 %s221, 1
    %p225 = scmp.eq.s32.totalorder %s19, 1
    %p226 = scmp.ne.s32.totalorder %s221, %s223
    %p227 = scmp.eq.s32.totalorder %s19, 0
    %p228 = por %p226, %p227
    %p229 = scmp.ne.s32.totalorder %s221, %s223
    %p230 = scmp.eq.s32.totalorder %s24, 1
    %p231 = por %p229, %p230
    %p232 = scmp.ne.s32.totalorder %s223, %s224
    %p233 = scmp.eq.s32.totalorder %s24, 0
    %p234 = por %p232, %p233
    %p235 = scmp.ne.s32.totalorder %s223, %s224
    %p236 = scmp.eq.s32.totalorder %s25, 1
    %p237 = por %p235, %p236
    %p239 = scmp.ne.s32.totalorder %s224, %s238
    %p240 = scmp.eq.s32.totalorder %s25, 0
    %p241 = por %p239, %p240
    %s243 = sadd.s32 %s242, 1
    %p246 = scmp.eq.s32.totalorder %s19, 1
    %p247 = scmp.ne.s32.totalorder %s242, %s244
    %p248 = scmp.eq.s32.totalorder %s19, 0
    %p249 = por %p247, %p248
    %p250 = scmp.ne.s32.totalorder %s242, %s244
    %p251 = scmp.eq.s32.totalorder %s24, 1
    %p252 = por %p250, %p251
    %p253 = scmp.ne.s32.totalorder %s244, %s245
    %p254 = scmp.eq.s32.totalorder %s24, 0
    %p255 = por %p253, %p254
    %p256 = scmp.ne.s32.totalorder %s244, %s245
    %p257 = scmp.eq.s32.totalorder %s25, 1
    %p258 = por %p256, %p257
    %p260 = scmp.ne.s32.totalorder %s245, %s259
    %p261 = scmp.eq.s32.totalorder %s25, 0
    %p262 = por %p260, %p261
    %s264 = sadd.s32 %s263, 1
    %p267 = scmp.eq.s32.totalorder %s19, 1
    %p268 = scmp.ne.s32.totalorder %s263, %s265
    %p269 = scmp.eq.s32.totalorder %s19, 0
    %p270 = por %p268, %p269
    %p271 = scmp.ne.s32.totalorder %s263, %s265
    %p272 = scmp.eq.s32.totalorder %s24, 1
    %p273 = por %p271, %p272
    %p274 = scmp.ne.s32.totalorder %s265, %s266
    %p275 = scmp.eq.s32.totalorder %s24, 0
    %p276 = por %p274, %p275
    %p277 = scmp.ne.s32.totalorder %s265, %s266
    %p278 = scmp.eq.s32.totalorder %s25, 1
    %p279 = por %p277, %p278
    %p281 = scmp.ne.s32.totalorder %s266, %s280
    %p282 = scmp.eq.s32.totalorder %s25, 0
    %p283 = por %p281, %p282
    %s285 = sadd.s32 %s284, 1
    %p288 = scmp.eq.s32.totalorder %s19, 1
    %p289 = scmp.ne.s32.totalorder %s284, %s286
    %p290 = scmp.eq.s32.totalorder %s19, 0
    %p291 = por %p289, %p290
    %p292 = scmp.ne.s32.totalorder %s284, %s286
    %p293 = scmp.eq.s32.totalorder %s24, 1
    %p294 = por %p292, %p293
    %p295 = scmp.ne.s32.totalorder %s286, %s287
    %p296 = scmp.eq.s32.totalorder %s24, 0
    %p297 = por %p295, %p296
    %p298 = scmp.ne.s32.totalorder %s286, %s287
    %p299 = scmp.eq.s32.totalorder %s25, 1
    %p300 = por %p298, %p299
    %p302 = scmp.ne.s32.totalorder %s287, %s301
    %p303 = scmp.eq.s32.totalorder %s25, 0
    %p304 = por %p302, %p303
    %s305 = ssub.s32 %s19, %s26
    %p306 = scmp.eq.s32.totalorder %s305, 0
    %s308 = sadd.s32 %s307, 1
    %s309 = scalar_select %p306, %s307, %s308
    %p312 = pneg %p306
    %p313 = scmp.eq.s32.totalorder %s19, 1
    %p314 = por %p312, %p313
    %p315 = scmp.ne.s32.totalorder %s307, %s310
    %p316 = scmp.eq.s32.totalorder %s19, 0
    %p317 = por %p315, %p316
    %p318 = scmp.ne.s32.totalorder %s307, %s310
    %p319 = scmp.eq.s32.totalorder %s24, 1
    %p320 = por %p318, %p319
    %p321 = scmp.ne.s32.totalorder %s310, %s311
    %p322 = scmp.eq.s32.totalorder %s24, 0
    %p323 = por %p321, %p322
    %p324 = scmp.ne.s32.totalorder %s310, %s311
    %p325 = scmp.eq.s32.totalorder %s25, 1
    %p326 = por %p324, %p325
    %p328 = scmp.ne.s32.totalorder %s311, %s327
    %p329 = scmp.eq.s32.totalorder %s25, 0
    %p330 = por %p328, %p329
    %p331 = scmp.le.s32.totalorder 1, %s19
    %p332 = scmp.lt.s32.totalorder %s19, 3
    %p333 = pnand %p331, %p332
    %p334 = pneg %p333
    // Predicated region
    $region9: #{dense_block_forward.1} parent=5 // pred_check
      _
    $region10: #{dense_block_forward.1} parent=5 // pred_check_branch
      %336 = sbr.rel (%p333) target = $region12
    $region11: #{dense_block_forward.1} parent=5 // pred_region
      %s337 = ssub.s32 %s19, 1
      // Predicated region
      $region13: #{dense_block_forward.1} parent=11 // pred_check
        %p338 = pneg %p66
      $region14: #{dense_block_forward.1} parent=11 // pred_check_branch
        %340 = sbr.rel (%p338) target = $region16
      $region15: #{dense_block_forward.1} parent=11 // pred_region
        _
      $region16: #{dense_block_forward.1} parent=11 // pred_fallthru
        _
      // Predicated region
      $region17: #{dense_block_forward.1} parent=11 // pred_check
        %p341 = pneg %p87
      $region18: #{dense_block_forward.1} parent=11 // pred_check_branch
        %343 = sbr.rel (%p341) target = $region20
      $region19: #{dense_block_forward.1} parent=11 // pred_region
        _
      $region20: #{dense_block_forward.1} parent=11 // pred_fallthru
        _
      // Predicated region
      $region21: #{dense_block_forward.1} parent=11 // pred_check
        %p344 = pneg %p108
      $region22: #{dense_block_forward.1} parent=11 // pred_check_branch
        %346 = sbr.rel (%p344) target = $region24
      $region23: #{dense_block_forward.1} parent=11 // pred_region
        _
      $region24: #{dense_block_forward.1} parent=11 // pred_fallthru
        _
      // Predicated region
      $region25: #{dense_block_forward.1} parent=11 // pred_check
        %p347 = pneg %p129
      $region26: #{dense_block_forward.1} parent=11 // pred_check_branch
        %349 = sbr.rel (%p347) target = $region28
      $region27: #{dense_block_forward.1} parent=11 // pred_region
        _
      $region28: #{dense_block_forward.1} parent=11 // pred_fallthru
        _
      // Predicated region
      $region29: #{dense_block_forward.1} parent=11 // pred_check
        %p350 = pneg %p150
      $region30: #{dense_block_forward.1} parent=11 // pred_check_branch
        %352 = sbr.rel (%p350) target = $region32
      $region31: #{dense_block_forward.1} parent=11 // pred_region
        _
      $region32: #{dense_block_forward.1} parent=11 // pred_fallthru
        _
      // Predicated region
      $region33: #{dense_block_forward.1} parent=11 // pred_check
        %p353 = pneg %p171
      $region34: #{dense_block_forward.1} parent=11 // pred_check_branch
        %355 = sbr.rel (%p353) target = $region36
      $region35: #{dense_block_forward.1} parent=11 // pred_region
        _
      $region36: #{dense_block_forward.1} parent=11 // pred_fallthru
        _
      // Predicated region
      $region37: #{dense_block_forward.1} parent=11 // pred_check
        %p356 = pneg %p192
      $region38: #{dense_block_forward.1} parent=11 // pred_check_branch
        %358 = sbr.rel (%p356) target = $region40
      $region39: #{dense_block_forward.1} parent=11 // pred_region
        _
      $region40: #{dense_block_forward.1} parent=11 // pred_fallthru
        _
      // Predicated region
      $region41: #{dense_block_forward.1} parent=11 // pred_check
        %p359 = pneg %p213
      $region42: #{dense_block_forward.1} parent=11 // pred_check_branch
        %361 = sbr.rel (%p359) target = $region44
      $region43: #{dense_block_forward.1} parent=11 // pred_region
        _
      $region44: #{dense_block_forward.1} parent=11 // pred_fallthru
        _
      // Predicated region
      $region45: #{dense_block_forward.1} parent=11 // pred_check
        %p362 = pneg %p234
      $region46: #{dense_block_forward.1} parent=11 // pred_check_branch
        %364 = sbr.rel (%p362) target = $region48
      $region47: #{dense_block_forward.1} parent=11 // pred_region
        _
      $region48: #{dense_block_forward.1} parent=11 // pred_fallthru
        _
      // Predicated region
      $region49: #{dense_block_forward.1} parent=11 // pred_check
        %p365 = pneg %p255
      $region50: #{dense_block_forward.1} parent=11 // pred_check_branch
        %367 = sbr.rel (%p365) target = $region52
      $region51: #{dense_block_forward.1} parent=11 // pred_region
        _
      $region52: #{dense_block_forward.1} parent=11 // pred_fallthru
        _
      // Predicated region
      $region53: #{dense_block_forward.1} parent=11 // pred_check
        %p368 = pneg %p276
      $region54: #{dense_block_forward.1} parent=11 // pred_check_branch
        %370 = sbr.rel (%p368) target = $region56
      $region55: #{dense_block_forward.1} parent=11 // pred_region
        _
      $region56: #{dense_block_forward.1} parent=11 // pred_fallthru
        _
      // Predicated region
      $region57: #{dense_block_forward.1} parent=11 // pred_check
        %p371 = pneg %p297
      $region58: #{dense_block_forward.1} parent=11 // pred_check_branch
        %373 = sbr.rel (%p371) target = $region60
      $region59: #{dense_block_forward.1} parent=11 // pred_region
        _
      $region60: #{dense_block_forward.1} parent=11 // pred_fallthru
        _
    $region12: #{dense_block_forward.1} parent=5 // pred_fallthru
      _
    %p374 = scmp.lt.s32.totalorder %s19, 2
    // Predicated region
    $region61: #{dense_block_forward.1} parent=5 // pred_check
      %p375 = pneg %p374
    $region62: #{dense_block_forward.1} parent=5 // pred_check_branch
      %377 = sbr.rel (%p375) target = $region64
    $region63: #{dense_block_forward.1} parent=5 // pred_region
      // Predicated region
      $region65: #{dense_block_forward.1} parent=63 // pred_check
        %p378 = pneg %p39
      $region66: #{dense_block_forward.1} parent=63 // pred_check_branch
        %380 = sbr.rel (%p378) target = $region68
      $region67: #{dense_block_forward.1} parent=63 // pred_region
        %p381 = scmp.lt.s32.totalorder %s19, 1
        %s382 = scalar_select %p381, %s19, 1
        %s383 = smul.addr %s382, 8
        %s384 = smul.addr %s383, 4
        %s385 = scalar_lea.vmem %s0, %s384
      $region68: #{dense_block_forward.1} parent=63 // pred_fallthru
        _
    $region64: #{dense_block_forward.1} parent=5 // pred_fallthru
      _
    %p386 = scmp.le.s32.totalorder 1, %s19
    %p387 = scmp.lt.s32.totalorder %s19, 3
    %p388 = pnand %p386, %p387
    %p389 = pneg %p388
    // Predicated region
    $region69: #{dense_block_forward.1} parent=5 // pred_check
      _
    $region70: #{dense_block_forward.1} parent=5 // pred_check_branch
      %391 = sbr.rel (%p388) target = $region72
    $region71: #{dense_block_forward.1} parent=5 // pred_region
      %s392 = ssub.s32 %s19, 1
      %p393 = scmp.lt.s32.totalorder %s24, 1
      %s394 = scalar_select %p393, %s24, 1
      %s395 = smul.addr %s394, 8
      %s396 = smul.addr %s395, 4
      %s397 = scalar_lea.vmem %s0, %s396
      %p398 = pneg %p45
      %p399 = pneg %p42
      %p400 = pneg %p66
      %p401 = pneg %p63
      %p402 = pneg %p87
      %p403 = pneg %p84
      %p404 = pneg %p108
      %p405 = pneg %p105
      %p406 = pneg %p129
      %p407 = pneg %p126
      %p408 = pneg %p150
      %p409 = pneg %p147
      %p410 = pneg %p171
      %p411 = pneg %p168
      %p412 = pneg %p192
      %p413 = pneg %p189
      %p414 = pneg %p213
      %p415 = pneg %p210
      %p416 = pneg %p234
      %p417 = pneg %p231
      %p418 = pneg %p255
      %p419 = pneg %p252
      %p420 = pneg %p276
      %p421 = pneg %p273
      %p422 = pneg %p297
      %p423 = pneg %p294
      %p424 = pneg %p323
      %p425 = pneg %p320
      %p426 = scmp.lt.s32.totalorder %s24, 1
      %s427 = scalar_select %p426, %s24, 1
      %s428 = smul.addr %s427, 8
      %s429 = smul.addr %s428, 8
      %s430 = scalar_lea.vmem %s13, %s429
      %p431 = scmp.lt.s32.totalorder %s24, 1
      %s432 = scalar_select %p431, %s24, 1
      %s433 = smul.addr %s432, 8
      %s434 = smul.addr %s433, 4
      %s435 = scalar_lea.vmem %s0, %s434
      %p436 = scmp.lt.s32.totalorder %s24, 1
      %s437 = scalar_select %p436, %s24, 1
      %s438 = smul.addr %s437, 8
      %s439 = smul.addr %s438, 8
      %s440 = scalar_lea.vmem %s13, %s439
      %442 = vst [vmem:[#allocation3] sm:$0xff] 0.0
      %443 = vst [vmem:[#allocation3 + $0x8] sm:$0x3] 0.0
      %444 = vst [vmem:[#allocation3 + $0x10] sm:$0xff] 0.0
      %445 = vst [vmem:[#allocation3 + $0x18] sm:$0x3] 0.0
      %446 = vst [vmem:[#allocation3 + $0x20] sm:$0xff] 0.0
      %447 = vst [vmem:[#allocation3 + $0x28] sm:$0x3] 0.0
      %448 = vst [vmem:[#allocation3 + $0x30] sm:$0xff] 0.0
      %449 = vst [vmem:[#allocation3 + $0x38] sm:$0x3] 0.0
      %450 = vst [vmem:[#allocation3 + $0x40] sm:$0xff] 0.0
      %451 = vst [vmem:[#allocation3 + $0x48] sm:$0x3] 0.0
      %452 = vst [vmem:[#allocation3 + $0x50] sm:$0xff] 0.0
      %453 = vst [vmem:[#allocation3 + $0x58] sm:$0x3] 0.0
      %454 = vst [vmem:[#allocation3 + $0x60] sm:$0xff] 0.0
      %455 = vst [vmem:[#allocation3 + $0x68] sm:$0x3] 0.0
      %456 = vst [vmem:[#allocation3 + $0x70] sm:$0xff] 0.0
      %457 = vst [vmem:[#allocation3 + $0x78] sm:$0x3] 0.0
      %458 = vst [vmem:[#allocation3 + $0x80] sm:$0xff] 0.0
      %459 = vst [vmem:[#allocation3 + $0x88] sm:$0x3] 0.0
      %460 = vst [vmem:[#allocation3 + $0x90] sm:$0xff] 0.0
      %461 = vst [vmem:[#allocation3 + $0x98] sm:$0x3] 0.0
      %v462 = vld [vmem:[%s435] sm:$0xf]
      %v463 = vld [vmem:[%s435 + $0x4] sm:$0xf]
      %v464 = vld [vmem:[%s435 + $0x8] sm:$0xf]
      %v465 = vld [vmem:[%s435 + $0xc] sm:$0xf]
      %v466 = vld [vmem:[%s435 + $0x10] sm:$0xf]
      %v467 = vld [vmem:[%s435 + $0x14] sm:$0xf]
      %v468 = vld [vmem:[%s435 + $0x18] sm:$0xf]
      %v469 = vld [vmem:[%s435 + $0x1c] sm:$0xf]
      %vm470 = vcmask 257024
      %471 = vst.msk [vmem:[#allocation2] sm:$0xf] %vm470, %v462
      %472 = vst.msk [vmem:[#allocation2 + $0x4] sm:$0xf] %vm470, %v463
      %473 = vst.msk [vmem:[#allocation2 + $0x8] sm:$0xf] %vm470, %v464
      %474 = vst.msk [vmem:[#allocation2 + $0xc] sm:$0xf] %vm470, %v465
      %475 = vst.msk [vmem:[#allocation2 + $0x10] sm:$0xf] %vm470, %v466
      %476 = vst.msk [vmem:[#allocation2 + $0x14] sm:$0xf] %vm470, %v467
      %477 = vst.msk [vmem:[#allocation2 + $0x18] sm:$0xf] %vm470, %v468
      %478 = vst.msk [vmem:[#allocation2 + $0x1c] sm:$0xf] %vm470, %v469
      %v479 = vld [vmem:[#allocation2] sm:$0xf]
      %v480 = vld [vmem:[#allocation2 + $0x4] sm:$0xf]
      %v481 = vld [vmem:[#allocation2 + $0x8] sm:$0xf]
      %v482 = vld [vmem:[#allocation2 + $0xc] sm:$0xf]
      %v483 = vld [vmem:[#allocation2 + $0x10] sm:$0xf]
      %v484 = vld [vmem:[#allocation2 + $0x14] sm:$0xf]
      %v485 = vld [vmem:[#allocation2 + $0x18] sm:$0xf]
      %v486 = vld [vmem:[#allocation2 + $0x1c] sm:$0xf]
      %v487 = vld [vmem:[%s1] sm:$0xf]
      %v488 = vld [vmem:[%s1 + $0x4] sm:$0xf]
      %v489 = vld [vmem:[%s1 + $0x8] sm:$0xf]
      %v490 = vld [vmem:[%s1 + $0xc] sm:$0xf]
      %v491 = vld [vmem:[%s2] sm:$0x1]
      %v493 = vlaneseq
      %v494 = vshrl.u32 %v493, 7
      %v495 = vsub.s32 0, %v494
      %v496 = vrot.slane %v491, %v495
      %v506 = vunpack.c.l.b16 %v479
      %v507 = vunpack.c.l.b16 %v480
      %v508 = vunpack.c.l.b16 %v481
      %v509 = vunpack.c.l.b16 %v482
      %v510 = vunpack.c.l.b16 %v483
      %v511 = vunpack.c.l.b16 %v484
      %v512 = vunpack.c.l.b16 %v485
      %v513 = vunpack.c.l.b16 %v486
      %v514 = vpack.c.b16 %v507, %v506
      %v515 = vpack.c.b16 %v509, %v508
      %v516 = vpack.c.b16 %v511, %v510
      %v517 = vpack.c.b16 %v513, %v512
      %v522 = vunpack.c.l.b16 %v487
      %v523 = vunpack.c.l.b16 %v488
      %v524 = vunpack.c.l.b16 %v489
      %v525 = vunpack.c.l.b16 %v490
      %v526 = vpack.c.b16 %v523, %v522
      %v527 = vpack.c.b16 %v525, %v524
      %vm530 = vcmask 261120
      %v532 = vsel %vm530, %v514, 0
      %v535 = vsel %vm530, %v515, 0
      %v538 = vsel %vm530, %v516, 0
      %v541 = vsel %vm530, %v517, 0
      %543 = vmatprep.subr.bf16.mxu0 0
      %544 = vmatpush1.bf16.msra.mxu0 0
      %545 = vmatprep.subr.bf16.mxu0 0
      %546 = vmatpush1.bf16.msra.mxu0 0
      %547 = vmatprep.subr.bf16.mxu0 0
      %548 = vmatpush1.bf16.msra.mxu0 0
      %549 = vmatprep.subr.bf16.mxu0 0
      %550 = vmatpush1.bf16.msra.mxu0 0
      %551 = vmatprep.subr.bf16.mxu0 0
      %552 = vmatpush1.bf16.msra.mxu0 0
      %553 = vmatprep.subr.bf16.mxu0 0
      %554 = vmatpush1.bf16.msra.mxu0 0
      %555 = vmatprep.subr.bf16.mxu0 0
      %556 = vmatpush1.bf16.msra.mxu0 %v527
      %557 = vmatprep.subr.bf16.mxu0 0
      %558 = vmatpush1.bf16.msra.mxu0 %v526
      %559 = vmatprep.subr.bf16.mxu0 0
      %560 = vmatpush2.bf16.msra.mxu0 0
      %561 = vmatprep.subr.bf16.mxu0 0
      %562 = vmatpush2.bf16.msra.mxu0 0
      %563 = vmatprep.subr.bf16.mxu0 0
      %564 = vmatpush2.bf16.msra.mxu0 0
      %565 = vmatprep.subr.bf16.mxu0 0
      %566 = vmatpush2.bf16.msra.mxu0 0
      %567 = vmatprep.subr.bf16.mxu0 0
      %568 = vmatpush2.bf16.msra.mxu0 0
      %569 = vmatprep.subr.bf16.mxu0 0
      %570 = vmatpush2.bf16.msra.mxu0 0
      %571 = vmatprep.subr.bf16.mxu0 0
      %572 = vmatpush2.bf16.msra.mxu0 0
      %573 = vmatprep.subr.bf16.mxu0 0
      %574 = vmatpush2.bf16.msra.mxu0 0
      %575 = vmatprep.mubr.bf16.mxu0 0
      %576 = vmatmul.mubr.bf16.gmra.mxu0 %v532
      %v577 = vpop.f32.mrf.mxu0
      %v578 = vadd.f32 %v496, %v577
      %v579 = vpop.f32.mrf.mxu0
      %v580 = vpop.f32.mrf.mxu0
      %v581 = vadd.f32 %v496, %v580
      %v582 = vpop.f32.mrf.mxu0
      %583 = vmatprep.mubr.bf16.mxu0 0
      %584 = vmatmul.mubr.bf16.gmra.mxu0 %v535
      %v585 = vpop.f32.mrf.mxu0
      %v586 = vadd.f32 %v496, %v585
      %v587 = vpop.f32.mrf.mxu0
      %v588 = vpop.f32.mrf.mxu0
      %v589 = vadd.f32 %v496, %v588
      %v590 = vpop.f32.mrf.mxu0
      %591 = vmatprep.mubr.bf16.mxu0 0
      %592 = vmatmul.mubr.bf16.gmra.mxu0 %v538
      %v593 = vpop.f32.mrf.mxu0
      %v594 = vadd.f32 %v496, %v593
      %v595 = vpop.f32.mrf.mxu0
      %v596 = vpop.f32.mrf.mxu0
      %v597 = vadd.f32 %v496, %v596
      %v598 = vpop.f32.mrf.mxu0
      %599 = vmatprep.mubr.bf16.mxu0 0
      %600 = vmatmul.mubr.bf16.gmra.mxu0 %v541
      %v601 = vpop.f32.mrf.mxu0
      %v602 = vadd.f32 %v496, %v601
      %v603 = vpop.f32.mrf.mxu0
      %v604 = vpop.f32.mrf.mxu0
      %v605 = vadd.f32 %v496, %v604
      %v606 = vpop.f32.mrf.mxu0
      %607 = vdwg.mxu0
      %v608 = vmax.f32 %v578, 0.0
      %v609 = vmax.f32 %v581, 0.0
      %v610 = vmax.f32 %v586, 0.0
      %v611 = vmax.f32 %v589, 0.0
      %v612 = vmax.f32 %v594, 0.0
      %v613 = vmax.f32 %v597, 0.0
      %v614 = vmax.f32 %v602, 0.0
      %v615 = vmax.f32 %v605, 0.0
      %s616 = scalar_lea.vmem [#allocation3], 16
      %617 = vst [vmem:[%s616 + $0x1] sm:$0xff] %v608
      %s618 = scalar_lea.vmem [#allocation3], 32
      %619 = vst [vmem:[%s618 + $0x1] sm:$0xff] %v609
      %s620 = scalar_lea.vmem [#allocation3], 48
      %621 = vst [vmem:[%s620 + $0x1] sm:$0xff] %v610
      %s622 = scalar_lea.vmem [#allocation3], 64
      %623 = vst [vmem:[%s622 + $0x1] sm:$0xff] %v611
      %s624 = scalar_lea.vmem [#allocation3], 80
      %625 = vst [vmem:[%s624 + $0x1] sm:$0xff] %v612
      %s626 = scalar_lea.vmem [#allocation3], 96
      %627 = vst [vmem:[%s626 + $0x1] sm:$0xff] %v613
      %s628 = scalar_lea.vmem [#allocation3], 112
      %629 = vst [vmem:[%s628 + $0x1] sm:$0xff] %v614
      %s630 = scalar_lea.vmem [#allocation3], 128
      %631 = vst [vmem:[%s630 + $0x1] sm:$0xff] %v615
      %v632 = vld [vmem:[#allocation3] sm:$0xff]
      %v633 = vld [vmem:[#allocation3 + $0x10] sm:$0xff]
      %v634 = vld [vmem:[#allocation3 + $0x20] sm:$0xff]
      %v635 = vld [vmem:[#allocation3 + $0x30] sm:$0xff]
      %v636 = vld [vmem:[#allocation3 + $0x40] sm:$0xff]
      %v637 = vld [vmem:[#allocation3 + $0x50] sm:$0xff]
      %v638 = vld [vmem:[#allocation3 + $0x60] sm:$0xff]
      %v639 = vld [vmem:[#allocation3 + $0x70] sm:$0xff]
      %v640 = vpack.c.bf16 %v633, %v632
      %v641 = vpack.c.bf16 %v635, %v634
      %v642 = vpack.c.bf16 %v637, %v636
      %v643 = vpack.c.bf16 %v639, %v638
      %v644 = vld [vmem:[%s3] sm:$0xf]
      %v645 = vld [vmem:[%s3 + $0x4] sm:$0xf]
      %v646 = vld [vmem:[%s3 + $0x8] sm:$0xf]
      %v647 = vld [vmem:[%s3 + $0xc] sm:$0xf]
      %v648 = vld [vmem:[%s3 + $0x10] sm:$0xf]
      %v649 = vld [vmem:[%s3 + $0x14] sm:$0xf]
      %v650 = vld [vmem:[%s3 + $0x18] sm:$0xf]
      %v651 = vld [vmem:[%s3 + $0x1c] sm:$0xf]
      %v652 = vld [vmem:[%s3 + $0x20] sm:$0xf]
      %v653 = vld [vmem:[%s3 + $0x24] sm:$0xf]
      %v654 = vld [vmem:[%s3 + $0x28] sm:$0xf]
      %v655 = vld [vmem:[%s3 + $0x2c] sm:$0xf]
      %v656 = vld [vmem:[%s3 + $0x30] sm:$0xf]
      %v657 = vld [vmem:[%s3 + $0x34] sm:$0xf]
      %v658 = vld [vmem:[%s3 + $0x38] sm:$0xf]
      %v659 = vld [vmem:[%s3 + $0x3c] sm:$0xf]
      %v660 = vld [vmem:[#allocation3 + $0x1] sm:$0xff]
      %v661 = vld [vmem:[#allocation3 + $0x11] sm:$0xff]
      %v662 = vld [vmem:[#allocation3 + $0x21] sm:$0xff]
      %v663 = vld [vmem:[#allocation3 + $0x31] sm:$0xff]
      %v664 = vld [vmem:[#allocation3 + $0x41] sm:$0xff]
      %v665 = vld [vmem:[#allocation3 + $0x51] sm:$0xff]
      %v666 = vld [vmem:[#allocation3 + $0x61] sm:$0xff]
      %v667 = vld [vmem:[#allocation3 + $0x71] sm:$0xff]
      %v668 = vpack.c.bf16 %v661, %v660
      %v669 = vpack.c.bf16 %v663, %v662
      %v670 = vpack.c.bf16 %v665, %v664
      %v671 = vpack.c.bf16 %v667, %v666
      %s672 = scalar_lea.vmem %s3, 64
      %v673 = vld [vmem:[%s672] sm:$0xf]
      %v674 = vld [vmem:[%s672 + $0x4] sm:$0xf]
      %v675 = vld [vmem:[%s672 + $0x8] sm:$0xf]
      %v676 = vld [vmem:[%s672 + $0xc] sm:$0xf]
      %v677 = vld [vmem:[%s672 + $0x10] sm:$0xf]
      %v678 = vld [vmem:[%s672 + $0x14] sm:$0xf]
      %v679 = vld [vmem:[%s672 + $0x18] sm:$0xf]
      %v680 = vld [vmem:[%s672 + $0x1c] sm:$0xf]
      %v681 = vld [vmem:[%s672 + $0x20] sm:$0xf]
      %v682 = vld [vmem:[%s672 + $0x24] sm:$0xf]
      %v683 = vld [vmem:[%s672 + $0x28] sm:$0xf]
      %v684 = vld [vmem:[%s672 + $0x2c] sm:$0xf]
      %v685 = vld [vmem:[%s672 + $0x30] sm:$0xf]
      %v686 = vld [vmem:[%s672 + $0x34] sm:$0xf]
      %v687 = vld [vmem:[%s672 + $0x38] sm:$0xf]
      %v688 = vld [vmem:[%s672 + $0x3c] sm:$0xf]
      %v705 = vunpack.c.l.b16 %v673
      %v706 = vunpack.c.l.b16 %v674
      %v707 = vunpack.c.l.b16 %v675
      %v708 = vunpack.c.l.b16 %v676
      %v709 = vunpack.c.l.b16 %v677
      %v710 = vunpack.c.l.b16 %v678
      %v711 = vunpack.c.l.b16 %v679
      %v712 = vunpack.c.l.b16 %v680
      %v713 = vunpack.c.l.b16 %v681
      %v714 = vunpack.c.l.b16 %v682
      %v715 = vunpack.c.l.b16 %v683
      %v716 = vunpack.c.l.b16 %v684
      %v717 = vunpack.c.l.b16 %v685
      %v718 = vunpack.c.l.b16 %v686
      %v719 = vunpack.c.l.b16 %v687
      %v720 = vunpack.c.l.b16 %v688
      %v721 = vpack.c.b16 %v706, %v705
      %v722 = vpack.c.b16 %v708, %v707
      %v723 = vpack.c.b16 %v710, %v709
      %v724 = vpack.c.b16 %v712, %v711
      %v725 = vpack.c.b16 %v714, %v713
      %v726 = vpack.c.b16 %v716, %v715
      %v727 = vpack.c.b16 %v718, %v717
      %v728 = vpack.c.b16 %v720, %v719
      %737 = vmatprep.subr.bf16.mxu0 0
      %738 = vmatpush1.bf16.msra.mxu0 %v728
      %739 = vmatprep.subr.bf16.mxu0 0
      %740 = vmatpush1.bf16.msra.mxu0 %v727
      %741 = vmatprep.subr.bf16.mxu0 0
      %742 = vmatpush1.bf16.msra.mxu0 %v726
      %743 = vmatprep.subr.bf16.mxu0 0
      %744 = vmatpush1.bf16.msra.mxu0 %v725
      %745 = vmatprep.subr.bf16.mxu0 0
      %746 = vmatpush1.bf16.msra.mxu0 %v724
      %747 = vmatprep.subr.bf16.mxu0 0
      %748 = vmatpush1.bf16.msra.mxu0 %v723
      %749 = vmatprep.subr.bf16.mxu0 0
      %750 = vmatpush1.bf16.msra.mxu0 %v722
      %751 = vmatprep.subr.bf16.mxu0 0
      %752 = vmatpush1.bf16.msra.mxu0 %v721
      %753 = vmatprep.subr.bf16.mxu0 0
      %754 = vmatpush2.bf16.msra.mxu0 0
      %755 = vmatprep.subr.bf16.mxu0 0
      %756 = vmatpush2.bf16.msra.mxu0 0
      %757 = vmatprep.subr.bf16.mxu0 0
      %758 = vmatpush2.bf16.msra.mxu0 0
      %759 = vmatprep.subr.bf16.mxu0 0
      %760 = vmatpush2.bf16.msra.mxu0 0
      %761 = vmatprep.subr.bf16.mxu0 0
      %762 = vmatpush2.bf16.msra.mxu0 0
      %763 = vmatprep.subr.bf16.mxu0 0
      %764 = vmatpush2.bf16.msra.mxu0 0
      %765 = vmatprep.subr.bf16.mxu0 0
      %766 = vmatpush2.bf16.msra.mxu0 0
      %767 = vmatprep.subr.bf16.mxu0 0
      %768 = vmatpush2.bf16.msra.mxu0 0
      %769 = vmatprep.mubr.bf16.mxu0 0
      %770 = vmatmul.mubr.bf16.gmra.mxu0 %v668
      %v771 = vpop.f32.mrf.mxu0
      %v772 = vadd.f32 0.0, %v771
      %v773 = vpop.f32.mrf.mxu0
      %v774 = vpop.f32.mrf.mxu0
      %v775 = vadd.f32 0.0, %v774
      %v776 = vpop.f32.mrf.mxu0
      %777 = vmatprep.mubr.bf16.mxu0 0
      %778 = vmatmul.mubr.bf16.gmra.mxu0 %v669
      %v779 = vpop.f32.mrf.mxu0
      %v780 = vadd.f32 0.0, %v779
      %v781 = vpop.f32.mrf.mxu0
      %v782 = vpop.f32.mrf.mxu0
      %v783 = vadd.f32 0.0, %v782
      %v784 = vpop.f32.mrf.mxu0
      %785 = vmatprep.mubr.bf16.mxu0 0
      %786 = vmatmul.mubr.bf16.gmra.mxu0 %v670
      %v787 = vpop.f32.mrf.mxu0
      %v788 = vadd.f32 0.0, %v787
      %v789 = vpop.f32.mrf.mxu0
      %v790 = vpop.f32.mrf.mxu0
      %v791 = vadd.f32 0.0, %v790
      %v792 = vpop.f32.mrf.mxu0
      %793 = vmatprep.mubr.bf16.mxu0 0
      %794 = vmatmul.mubr.bf16.gmra.mxu0 %v671
      %v795 = vpop.f32.mrf.mxu0
      %v796 = vadd.f32 0.0, %v795
      %v797 = vpop.f32.mrf.mxu0
      %v798 = vpop.f32.mrf.mxu0
      %v799 = vadd.f32 0.0, %v798
      %v800 = vpop.f32.mrf.mxu0
      %801 = vdwg.mxu0
      %v818 = vunpack.c.l.b16 %v644
      %v819 = vunpack.c.l.b16 %v645
      %v820 = vunpack.c.l.b16 %v646
      %v821 = vunpack.c.l.b16 %v647
      %v822 = vunpack.c.l.b16 %v648
      %v823 = vunpack.c.l.b16 %v649
      %v824 = vunpack.c.l.b16 %v650
      %v825 = vunpack.c.l.b16 %v651
      %v826 = vunpack.c.l.b16 %v652
      %v827 = vunpack.c.l.b16 %v653
      %v828 = vunpack.c.l.b16 %v654
      %v829 = vunpack.c.l.b16 %v655
      %v830 = vunpack.c.l.b16 %v656
      %v831 = vunpack.c.l.b16 %v657
      %v832 = vunpack.c.l.b16 %v658
      %v833 = vunpack.c.l.b16 %v659
      %v834 = vpack.c.b16 %v819, %v818
      %v835 = vpack.c.b16 %v821, %v820
      %v836 = vpack.c.b16 %v823, %v822
      %v837 = vpack.c.b16 %v825, %v824
      %v838 = vpack.c.b16 %v827, %v826
      %v839 = vpack.c.b16 %v829, %v828
      %v840 = vpack.c.b16 %v831, %v830
      %v841 = vpack.c.b16 %v833, %v832
      %850 = vmatprep.subr.bf16.mxu0 0
      %851 = vmatpush1.bf16.msra.mxu0 %v841
      %852 = vmatprep.subr.bf16.mxu0 0
      %853 = vmatpush1.bf16.msra.mxu0 %v840
      %854 = vmatprep.subr.bf16.mxu0 0
      %855 = vmatpush1.bf16.msra.mxu0 %v839
      %856 = vmatprep.subr.bf16.mxu0 0
      %857 = vmatpush1.bf16.msra.mxu0 %v838
      %858 = vmatprep.subr.bf16.mxu0 0
      %859 = vmatpush1.bf16.msra.mxu0 %v837
      %860 = vmatprep.subr.bf16.mxu0 0
      %861 = vmatpush1.bf16.msra.mxu0 %v836
      %862 = vmatprep.subr.bf16.mxu0 0
      %863 = vmatpush1.bf16.msra.mxu0 %v835
      %864 = vmatprep.subr.bf16.mxu0 0
      %865 = vmatpush1.bf16.msra.mxu0 %v834
      %866 = vmatprep.subr.bf16.mxu0 0
      %867 = vmatpush2.bf16.msra.mxu0 0
      %868 = vmatprep.subr.bf16.mxu0 0
      %869 = vmatpush2.bf16.msra.mxu0 0
      %870 = vmatprep.subr.bf16.mxu0 0
      %871 = vmatpush2.bf16.msra.mxu0 0
      %872 = vmatprep.subr.bf16.mxu0 0
      %873 = vmatpush2.bf16.msra.mxu0 0
      %874 = vmatprep.subr.bf16.mxu0 0
      %875 = vmatpush2.bf16.msra.mxu0 0
      %876 = vmatprep.subr.bf16.mxu0 0
      %877 = vmatpush2.bf16.msra.mxu0 0
      %878 = vmatprep.subr.bf16.mxu0 0
      %879 = vmatpush2.bf16.msra.mxu0 0
      %880 = vmatprep.subr.bf16.mxu0 0
      %881 = vmatpush2.bf16.msra.mxu0 0
      %882 = vmatprep.mubr.bf16.mxu0 0
      %883 = vmatmul.mubr.bf16.gmra.mxu0 %v640
      %v884 = vpop.f32.mrf.mxu0
      %v885 = vadd.f32 %v772, %v884
      %v886 = vpop.f32.mrf.mxu0
      %v887 = vpop.f32.mrf.mxu0
      %v888 = vadd.f32 %v775, %v887
      %v889 = vpop.f32.mrf.mxu0
      %890 = vmatprep.mubr.bf16.mxu0 0
      %891 = vmatmul.mubr.bf16.gmra.mxu0 %v641
      %v892 = vpop.f32.mrf.mxu0
      %v893 = vadd.f32 %v780, %v892
      %v894 = vpop.f32.mrf.mxu0
      %v895 = vpop.f32.mrf.mxu0
      %v896 = vadd.f32 %v783, %v895
      %v897 = vpop.f32.mrf.mxu0
      %898 = vmatprep.mubr.bf16.mxu0 0
      %899 = vmatmul.mubr.bf16.gmra.mxu0 %v642
      %v900 = vpop.f32.mrf.mxu0
      %v901 = vadd.f32 %v788, %v900
      %v902 = vpop.f32.mrf.mxu0
      %v903 = vpop.f32.mrf.mxu0
      %v904 = vadd.f32 %v791, %v903
      %v905 = vpop.f32.mrf.mxu0
      %906 = vmatprep.mubr.bf16.mxu0 0
      %907 = vmatmul.mubr.bf16.gmra.mxu0 %v643
      %v908 = vpop.f32.mrf.mxu0
      %v909 = vadd.f32 %v796, %v908
      %v910 = vpop.f32.mrf.mxu0
      %v911 = vpop.f32.mrf.mxu0
      %v912 = vadd.f32 %v799, %v911
      %v913 = vpop.f32.mrf.mxu0
      %914 = vdwg.mxu0
      %v915 = vld [vmem:[#allocation3 + $0x2] sm:$0xff]
      %v916 = vld [vmem:[#allocation3 + $0x12] sm:$0xff]
      %v917 = vld [vmem:[#allocation3 + $0x22] sm:$0xff]
      %v918 = vld [vmem:[#allocation3 + $0x32] sm:$0xff]
      %v919 = vld [vmem:[#allocation3 + $0x42] sm:$0xff]
      %v920 = vld [vmem:[#allocation3 + $0x52] sm:$0xff]
      %v921 = vld [vmem:[#allocation3 + $0x62] sm:$0xff]
      %v922 = vld [vmem:[#allocation3 + $0x72] sm:$0xff]
      %v923 = vpack.c.bf16 %v916, %v915
      %v924 = vpack.c.bf16 %v918, %v917
      %v925 = vpack.c.bf16 %v920, %v919
      %v926 = vpack.c.bf16 %v922, %v921
      %s927 = scalar_lea.vmem %s3, 128
      %v928 = vld [vmem:[%s927] sm:$0xf]
      %v929 = vld [vmem:[%s927 + $0x4] sm:$0xf]
      %v930 = vld [vmem:[%s927 + $0x8] sm:$0xf]
      %v931 = vld [vmem:[%s927 + $0xc] sm:$0xf]
      %v932 = vld [vmem:[%s927 + $0x10] sm:$0xf]
      %v933 = vld [vmem:[%s927 + $0x14] sm:$0xf]
      %v934 = vld [vmem:[%s927 + $0x18] sm:$0xf]
      %v935 = vld [vmem:[%s927 + $0x1c] sm:$0xf]
      %v936 = vld [vmem:[%s927 + $0x20] sm:$0xf]
      %v937 = vld [vmem:[%s927 + $0x24] sm:$0xf]
      %v938 = vld [vmem:[%s927 + $0x28] sm:$0xf]
      %v939 = vld [vmem:[%s927 + $0x2c] sm:$0xf]
      %v940 = vld [vmem:[%s927 + $0x30] sm:$0xf]
      %v941 = vld [vmem:[%s927 + $0x34] sm:$0xf]
      %v942 = vld [vmem:[%s927 + $0x38] sm:$0xf]
      %v943 = vld [vmem:[%s927 + $0x3c] sm:$0xf]
      %v960 = vunpack.c.l.b16 %v928
      %v961 = vunpack.c.l.b16 %v929
      %v962 = vunpack.c.l.b16 %v930
      %v963 = vunpack.c.l.b16 %v931
      %v964 = vunpack.c.l.b16 %v932
      %v965 = vunpack.c.l.b16 %v933
      %v966 = vunpack.c.l.b16 %v934
      %v967 = vunpack.c.l.b16 %v935
      %v968 = vunpack.c.l.b16 %v936
      %v969 = vunpack.c.l.b16 %v937
      %v970 = vunpack.c.l.b16 %v938
      %v971 = vunpack.c.l.b16 %v939
      %v972 = vunpack.c.l.b16 %v940
      %v973 = vunpack.c.l.b16 %v941
      %v974 = vunpack.c.l.b16 %v942
      %v975 = vunpack.c.l.b16 %v943
      %v976 = vpack.c.b16 %v961, %v960
      %v977 = vpack.c.b16 %v963, %v962
      %v978 = vpack.c.b16 %v965, %v964
      %v979 = vpack.c.b16 %v967, %v966
      %v980 = vpack.c.b16 %v969, %v968
      %v981 = vpack.c.b16 %v971, %v970
      %v982 = vpack.c.b16 %v973, %v972
      %v983 = vpack.c.b16 %v975, %v974
      %992 = vmatprep.subr.bf16.mxu0 0
      %993 = vmatpush1.bf16.msra.mxu0 %v983
      %994 = vmatprep.subr.bf16.mxu0 0
      %995 = vmatpush1.bf16.msra.mxu0 %v982
      %996 = vmatprep.subr.bf16.mxu0 0
      %997 = vmatpush1.bf16.msra.mxu0 %v981
      %998 = vmatprep.subr.bf16.mxu0 0
      %999 = vmatpush1.bf16.msra.mxu0 %v980
      %1000 = vmatprep.subr.bf16.mxu0 0
      %1001 = vmatpush1.bf16.msra.mxu0 %v979
      %1002 = vmatprep.subr.bf16.mxu0 0
      %1003 = vmatpush1.bf16.msra.mxu0 %v978
      %1004 = vmatprep.subr.bf16.mxu0 0
      %1005 = vmatpush1.bf16.msra.mxu0 %v977
      %1006 = vmatprep.subr.bf16.mxu0 0
      %1007 = vmatpush1.bf16.msra.mxu0 %v976
      %1008 = vmatprep.subr.bf16.mxu0 0
      %1009 = vmatpush2.bf16.msra.mxu0 0
      %1010 = vmatprep.subr.bf16.mxu0 0
      %1011 = vmatpush2.bf16.msra.mxu0 0
      %1012 = vmatprep.subr.bf16.mxu0 0
      %1013 = vmatpush2.bf16.msra.mxu0 0
      %1014 = vmatprep.subr.bf16.mxu0 0
      %1015 = vmatpush2.bf16.msra.mxu0 0
      %1016 = vmatprep.subr.bf16.mxu0 0
      %1017 = vmatpush2.bf16.msra.mxu0 0
      %1018 = vmatprep.subr.bf16.mxu0 0
      %1019 = vmatpush2.bf16.msra.mxu0 0
      %1020 = vmatprep.subr.bf16.mxu0 0
      %1021 = vmatpush2.bf16.msra.mxu0 0
      %1022 = vmatprep.subr.bf16.mxu0 0
      %1023 = vmatpush2.bf16.msra.mxu0 0
      %1024 = vmatprep.mubr.bf16.mxu0 0
      %1025 = vmatmul.mubr.bf16.gmra.mxu0 %v923
      %v1026 = vpop.f32.mrf.mxu0
      %v1027 = vadd.f32 0.0, %v1026
      %v1028 = vpop.f32.mrf.mxu0
      %v1029 = vpop.f32.mrf.mxu0
      %v1030 = vadd.f32 0.0, %v1029
      %v1031 = vpop.f32.mrf.mxu0
      %1032 = vmatprep.mubr.bf16.mxu0 0
      %1033 = vmatmul.mubr.bf16.gmra.mxu0 %v924
      %v1034 = vpop.f32.mrf.mxu0
      %v1035 = vadd.f32 0.0, %v1034
      %v1036 = vpop.f32.mrf.mxu0
      %v1037 = vpop.f32.mrf.mxu0
      %v1038 = vadd.f32 0.0, %v1037
      %v1039 = vpop.f32.mrf.mxu0
      %1040 = vmatprep.mubr.bf16.mxu0 0
      %1041 = vmatmul.mubr.bf16.gmra.mxu0 %v925
      %v1042 = vpop.f32.mrf.mxu0
      %v1043 = vadd.f32 0.0, %v1042
      %v1044 = vpop.f32.mrf.mxu0
      %v1045 = vpop.f32.mrf.mxu0
      %v1046 = vadd.f32 0.0, %v1045
      %v1047 = vpop.f32.mrf.mxu0
      %1048 = vmatprep.mubr.bf16.mxu0 0
      %1049 = vmatmul.mubr.bf16.gmra.mxu0 %v926
      %v1050 = vpop.f32.mrf.mxu0
      %v1051 = vadd.f32 0.0, %v1050
      %v1052 = vpop.f32.mrf.mxu0
      %v1053 = vpop.f32.mrf.mxu0
      %v1054 = vadd.f32 0.0, %v1053
      %v1055 = vpop.f32.mrf.mxu0
      %1056 = vdwg.mxu0
      %v1057 = vadd.f32 %v885, %v1027
      %v1058 = vadd.f32 %v888, %v1030
      %v1059 = vadd.f32 %v893, %v1035
      %v1060 = vadd.f32 %v896, %v1038
      %v1061 = vadd.f32 %v901, %v1043
      %v1062 = vadd.f32 %v904, %v1046
      %v1063 = vadd.f32 %v909, %v1051
      %v1064 = vadd.f32 %v912, %v1054
      %v1065 = vld [vmem:[%s616] sm:$0xff]
      %v1066 = vld [vmem:[%s616 + $0x10] sm:$0xff]
      %v1067 = vld [vmem:[%s616 + $0x20] sm:$0xff]
      %v1068 = vld [vmem:[%s616 + $0x30] sm:$0xff]
      %v1069 = vld [vmem:[%s616 + $0x40] sm:$0xff]
      %v1070 = vld [vmem:[%s616 + $0x50] sm:$0xff]
      %v1071 = vld [vmem:[%s616 + $0x60] sm:$0xff]
      %v1072 = vld [vmem:[%s616 + $0x70] sm:$0xff]
      %v1073 = vpack.c.bf16 %v1066, %v1065
      %v1074 = vpack.c.bf16 %v1068, %v1067
      %v1075 = vpack.c.bf16 %v1070, %v1069
      %v1076 = vpack.c.bf16 %v1072, %v1071
      %s1077 = scalar_lea.vmem %s3, 192
      %v1078 = vld [vmem:[%s1077] sm:$0xf]
      %v1079 = vld [vmem:[%s1077 + $0x4] sm:$0xf]
      %v1080 = vld [vmem:[%s1077 + $0x8] sm:$0xf]
      %v1081 = vld [vmem:[%s1077 + $0xc] sm:$0xf]
      %v1082 = vld [vmem:[%s1077 + $0x10] sm:$0xf]
      %v1083 = vld [vmem:[%s1077 + $0x14] sm:$0xf]
      %v1084 = vld [vmem:[%s1077 + $0x18] sm:$0xf]
      %v1085 = vld [vmem:[%s1077 + $0x1c] sm:$0xf]
      %v1086 = vld [vmem:[%s1077 + $0x20] sm:$0xf]
      %v1087 = vld [vmem:[%s1077 + $0x24] sm:$0xf]
      %v1088 = vld [vmem:[%s1077 + $0x28] sm:$0xf]
      %v1089 = vld [vmem:[%s1077 + $0x2c] sm:$0xf]
      %v1090 = vld [vmem:[%s1077 + $0x30] sm:$0xf]
      %v1091 = vld [vmem:[%s1077 + $0x34] sm:$0xf]
      %v1092 = vld [vmem:[%s1077 + $0x38] sm:$0xf]
      %v1093 = vld [vmem:[%s1077 + $0x3c] sm:$0xf]
      %v1110 = vunpack.c.l.b16 %v1078
      %v1111 = vunpack.c.l.b16 %v1079
      %v1112 = vunpack.c.l.b16 %v1080
      %v1113 = vunpack.c.l.b16 %v1081
      %v1114 = vunpack.c.l.b16 %v1082
      %v1115 = vunpack.c.l.b16 %v1083
      %v1116 = vunpack.c.l.b16 %v1084
      %v1117 = vunpack.c.l.b16 %v1085
      %v1118 = vunpack.c.l.b16 %v1086
      %v1119 = vunpack.c.l.b16 %v1087
      %v1120 = vunpack.c.l.b16 %v1088
      %v1121 = vunpack.c.l.b16 %v1089
      %v1122 = vunpack.c.l.b16 %v1090
      %v1123 = vunpack.c.l.b16 %v1091
      %v1124 = vunpack.c.l.b16 %v1092
      %v1125 = vunpack.c.l.b16 %v1093
      %v1126 = vpack.c.b16 %v1111, %v1110
      %v1127 = vpack.c.b16 %v1113, %v1112
      %v1128 = vpack.c.b16 %v1115, %v1114
      %v1129 = vpack.c.b16 %v1117, %v1116
      %v1130 = vpack.c.b16 %v1119, %v1118
      %v1131 = vpack.c.b16 %v1121, %v1120
      %v1132 = vpack.c.b16 %v1123, %v1122
      %v1133 = vpack.c.b16 %v1125, %v1124
      %1142 = vmatprep.subr.bf16.mxu0 0
      %1143 = vmatpush1.bf16.msra.mxu0 %v1133
      %1144 = vmatprep.subr.bf16.mxu0 0
      %1145 = vmatpush1.bf16.msra.mxu0 %v1132
      %1146 = vmatprep.subr.bf16.mxu0 0
      %1147 = vmatpush1.bf16.msra.mxu0 %v1131
      %1148 = vmatprep.subr.bf16.mxu0 0
      %1149 = vmatpush1.bf16.msra.mxu0 %v1130
      %1150 = vmatprep.subr.bf16.mxu0 0
      %1151 = vmatpush1.bf16.msra.mxu0 %v1129
      %1152 = vmatprep.subr.bf16.mxu0 0
      %1153 = vmatpush1.bf16.msra.mxu0 %v1128
      %1154 = vmatprep.subr.bf16.mxu0 0
      %1155 = vmatpush1.bf16.msra.mxu0 %v1127
      %1156 = vmatprep.subr.bf16.mxu0 0
      %1157 = vmatpush1.bf16.msra.mxu0 %v1126
      %1158 = vmatprep.subr.bf16.mxu0 0
      %1159 = vmatpush2.bf16.msra.mxu0 0
      %1160 = vmatprep.subr.bf16.mxu0 0
      %1161 = vmatpush2.bf16.msra.mxu0 0
      %1162 = vmatprep.subr.bf16.mxu0 0
      %1163 = vmatpush2.bf16.msra.mxu0 0
      %1164 = vmatprep.subr.bf16.mxu0 0
      %1165 = vmatpush2.bf16.msra.mxu0 0
      %1166 = vmatprep.subr.bf16.mxu0 0
      %1167 = vmatpush2.bf16.msra.mxu0 0
      %1168 = vmatprep.subr.bf16.mxu0 0
      %1169 = vmatpush2.bf16.msra.mxu0 0
      %1170 = vmatprep.subr.bf16.mxu0 0
      %1171 = vmatpush2.bf16.msra.mxu0 0
      %1172 = vmatprep.subr.bf16.mxu0 0
      %1173 = vmatpush2.bf16.msra.mxu0 0
      %1174 = vmatprep.mubr.bf16.mxu0 0
      %1175 = vmatmul.mubr.bf16.gmra.mxu0 %v1073
      %v1176 = vpop.f32.mrf.mxu0
      %v1177 = vadd.f32 0.0, %v1176
      %v1178 = vpop.f32.mrf.mxu0
      %v1179 = vpop.f32.mrf.mxu0
      %v1180 = vadd.f32 0.0, %v1179
      %v1181 = vpop.f32.mrf.mxu0
      %1182 = vmatprep.mubr.bf16.mxu0 0
      %1183 = vmatmul.mubr.bf16.gmra.mxu0 %v1074
      %v1184 = vpop.f32.mrf.mxu0
      %v1185 = vadd.f32 0.0, %v1184
      %v1186 = vpop.f32.mrf.mxu0
      %v1187 = vpop.f32.mrf.mxu0
      %v1188 = vadd.f32 0.0, %v1187
      %v1189 = vpop.f32.mrf.mxu0
      %1190 = vmatprep.mubr.bf16.mxu0 0
      %1191 = vmatmul.mubr.bf16.gmra.mxu0 %v1075
      %v1192 = vpop.f32.mrf.mxu0
      %v1193 = vadd.f32 0.0, %v1192
      %v1194 = vpop.f32.mrf.mxu0
      %v1195 = vpop.f32.mrf.mxu0
      %v1196 = vadd.f32 0.0, %v1195
      %v1197 = vpop.f32.mrf.mxu0
      %1198 = vmatprep.mubr.bf16.mxu0 0
      %1199 = vmatmul.mubr.bf16.gmra.mxu0 %v1076
      %v1200 = vpop.f32.mrf.mxu0
      %v1201 = vadd.f32 0.0, %v1200
      %v1202 = vpop.f32.mrf.mxu0
      %v1203 = vpop.f32.mrf.mxu0
      %v1204 = vadd.f32 0.0, %v1203
      %v1205 = vpop.f32.mrf.mxu0
      %1206 = vdwg.mxu0
      %v1207 = vadd.f32 %v1057, %v1177
      %v1208 = vadd.f32 %v1058, %v1180
      %v1209 = vadd.f32 %v1059, %v1185
      %v1210 = vadd.f32 %v1060, %v1188
      %v1211 = vadd.f32 %v1061, %v1193
      %v1212 = vadd.f32 %v1062, %v1196
      %v1213 = vadd.f32 %v1063, %v1201
      %v1214 = vadd.f32 %v1064, %v1204
      %v1215 = vld [vmem:[%s616 + $0x1] sm:$0xff]
      %v1216 = vld [vmem:[%s616 + $0x11] sm:$0xff]
      %v1217 = vld [vmem:[%s616 + $0x21] sm:$0xff]
      %v1218 = vld [vmem:[%s616 + $0x31] sm:$0xff]
      %v1219 = vld [vmem:[%s616 + $0x41] sm:$0xff]
      %v1220 = vld [vmem:[%s616 + $0x51] sm:$0xff]
      %v1221 = vld [vmem:[%s616 + $0x61] sm:$0xff]
      %v1222 = vld [vmem:[%s616 + $0x71] sm:$0xff]
      %v1223 = vpack.c.bf16 %v1216, %v1215
      %v1224 = vpack.c.bf16 %v1218, %v1217
      %v1225 = vpack.c.bf16 %v1220, %v1219
      %v1226 = vpack.c.bf16 %v1222, %v1221
      %s1227 = scalar_lea.vmem %s3, 256
      %v1228 = vld [vmem:[%s1227] sm:$0xf]
      %v1229 = vld [vmem:[%s1227 + $0x4] sm:$0xf]
      %v1230 = vld [vmem:[%s1227 + $0x8] sm:$0xf]
      %v1231 = vld [vmem:[%s1227 + $0xc] sm:$0xf]
      %v1232 = vld [vmem:[%s1227 + $0x10] sm:$0xf]
      %v1233 = vld [vmem:[%s1227 + $0x14] sm:$0xf]
      %v1234 = vld [vmem:[%s1227 + $0x18] sm:$0xf]
      %v1235 = vld [vmem:[%s1227 + $0x1c] sm:$0xf]
      %v1236 = vld [vmem:[%s1227 + $0x20] sm:$0xf]
      %v1237 = vld [vmem:[%s1227 + $0x24] sm:$0xf]
      %v1238 = vld [vmem:[%s1227 + $0x28] sm:$0xf]
      %v1239 = vld [vmem:[%s1227 + $0x2c] sm:$0xf]
      %v1240 = vld [vmem:[%s1227 + $0x30] sm:$0xf]
      %v1241 = vld [vmem:[%s1227 + $0x34] sm:$0xf]
      %v1242 = vld [vmem:[%s1227 + $0x38] sm:$0xf]
      %v1243 = vld [vmem:[%s1227 + $0x3c] sm:$0xf]
      %v1260 = vunpack.c.l.b16 %v1228
      %v1261 = vunpack.c.l.b16 %v1229
      %v1262 = vunpack.c.l.b16 %v1230
      %v1263 = vunpack.c.l.b16 %v1231
      %v1264 = vunpack.c.l.b16 %v1232
      %v1265 = vunpack.c.l.b16 %v1233
      %v1266 = vunpack.c.l.b16 %v1234
      %v1267 = vunpack.c.l.b16 %v1235
      %v1268 = vunpack.c.l.b16 %v1236
      %v1269 = vunpack.c.l.b16 %v1237
      %v1270 = vunpack.c.l.b16 %v1238
      %v1271 = vunpack.c.l.b16 %v1239
      %v1272 = vunpack.c.l.b16 %v1240
      %v1273 = vunpack.c.l.b16 %v1241
      %v1274 = vunpack.c.l.b16 %v1242
      %v1275 = vunpack.c.l.b16 %v1243
      %v1276 = vpack.c.b16 %v1261, %v1260
      %v1277 = vpack.c.b16 %v1263, %v1262
      %v1278 = vpack.c.b16 %v1265, %v1264
      %v1279 = vpack.c.b16 %v1267, %v1266
      %v1280 = vpack.c.b16 %v1269, %v1268
      %v1281 = vpack.c.b16 %v1271, %v1270
      %v1282 = vpack.c.b16 %v1273, %v1272
      %v1283 = vpack.c.b16 %v1275, %v1274
      %1292 = vmatprep.subr.bf16.mxu0 0
      %1293 = vmatpush1.bf16.msra.mxu0 %v1283
      %1294 = vmatprep.subr.bf16.mxu0 0
      %1295 = vmatpush1.bf16.msra.mxu0 %v1282
      %1296 = vmatprep.subr.bf16.mxu0 0
      %1297 = vmatpush1.bf16.msra.mxu0 %v1281
      %1298 = vmatprep.subr.bf16.mxu0 0
      %1299 = vmatpush1.bf16.msra.mxu0 %v1280
      %1300 = vmatprep.subr.bf16.mxu0 0
      %1301 = vmatpush1.bf16.msra.mxu0 %v1279
      %1302 = vmatprep.subr.bf16.mxu0 0
      %1303 = vmatpush1.bf16.msra.mxu0 %v1278
      %1304 = vmatprep.subr.bf16.mxu0 0
      %1305 = vmatpush1.bf16.msra.mxu0 %v1277
      %1306 = vmatprep.subr.bf16.mxu0 0
      %1307 = vmatpush1.bf16.msra.mxu0 %v1276
      %1308 = vmatprep.subr.bf16.mxu0 0
      %1309 = vmatpush2.bf16.msra.mxu0 0
      %1310 = vmatprep.subr.bf16.mxu0 0
      %1311 = vmatpush2.bf16.msra.mxu0 0
      %1312 = vmatprep.subr.bf16.mxu0 0
      %1313 = vmatpush2.bf16.msra.mxu0 0
      %1314 = vmatprep.subr.bf16.mxu0 0
      %1315 = vmatpush2.bf16.msra.mxu0 0
      %1316 = vmatprep.subr.bf16.mxu0 0
      %1317 = vmatpush2.bf16.msra.mxu0 0
      %1318 = vmatprep.subr.bf16.mxu0 0
      %1319 = vmatpush2.bf16.msra.mxu0 0
      %1320 = vmatprep.subr.bf16.mxu0 0
      %1321 = vmatpush2.bf16.msra.mxu0 0
      %1322 = vmatprep.subr.bf16.mxu0 0
      %1323 = vmatpush2.bf16.msra.mxu0 0
      %1324 = vmatprep.mubr.bf16.mxu0 0
      %1325 = vmatmul.mubr.bf16.gmra.mxu0 %v1223
      %v1326 = vpop.f32.mrf.mxu0
      %v1327 = vadd.f32 0.0, %v1326
      %v1328 = vpop.f32.mrf.mxu0
      %v1329 = vpop.f32.mrf.mxu0
      %v1330 = vadd.f32 0.0, %v1329
      %v1331 = vpop.f32.mrf.mxu0
      %1332 = vmatprep.mubr.bf16.mxu0 0
      %1333 = vmatmul.mubr.bf16.gmra.mxu0 %v1224
      %v1334 = vpop.f32.mrf.mxu0
      %v1335 = vadd.f32 0.0, %v1334
      %v1336 = vpop.f32.mrf.mxu0
      %v1337 = vpop.f32.mrf.mxu0
      %v1338 = vadd.f32 0.0, %v1337
      %v1339 = vpop.f32.mrf.mxu0
      %1340 = vmatprep.mubr.bf16.mxu0 0
      %1341 = vmatmul.mubr.bf16.gmra.mxu0 %v1225
      %v1342 = vpop.f32.mrf.mxu0
      %v1343 = vadd.f32 0.0, %v1342
      %v1344 = vpop.f32.mrf.mxu0
      %v1345 = vpop.f32.mrf.mxu0
      %v1346 = vadd.f32 0.0, %v1345
      %v1347 = vpop.f32.mrf.mxu0
      %1348 = vmatprep.mubr.bf16.mxu0 0
      %1349 = vmatmul.mubr.bf16.gmra.mxu0 %v1226
      %v1350 = vpop.f32.mrf.mxu0
      %v1351 = vadd.f32 0.0, %v1350
      %v1352 = vpop.f32.mrf.mxu0
      %v1353 = vpop.f32.mrf.mxu0
      %v1354 = vadd.f32 0.0, %v1353
      %v1355 = vpop.f32.mrf.mxu0
      %1356 = vdwg.mxu0
      %v1357 = vadd.f32 %v1207, %v1327
      %v1358 = vadd.f32 %v1208, %v1330
      %v1359 = vadd.f32 %v1209, %v1335
      %v1360 = vadd.f32 %v1210, %v1338
      %v1361 = vadd.f32 %v1211, %v1343
      %v1362 = vadd.f32 %v1212, %v1346
      %v1363 = vadd.f32 %v1213, %v1351
      %v1364 = vadd.f32 %v1214, %v1354
      %v1365 = vld [vmem:[%s616 + $0x2] sm:$0xff]
      %v1366 = vld [vmem:[%s616 + $0x12] sm:$0xff]
      %v1367 = vld [vmem:[%s616 + $0x22] sm:$0xff]
      %v1368 = vld [vmem:[%s616 + $0x32] sm:$0xff]
      %v1369 = vld [vmem:[%s616 + $0x42] sm:$0xff]
      %v1370 = vld [vmem:[%s616 + $0x52] sm:$0xff]
      %v1371 = vld [vmem:[%s616 + $0x62] sm:$0xff]
      %v1372 = vld [vmem:[%s616 + $0x72] sm:$0xff]
      %v1373 = vpack.c.bf16 %v1366, %v1365
      %v1374 = vpack.c.bf16 %v1368, %v1367
      %v1375 = vpack.c.bf16 %v1370, %v1369
      %v1376 = vpack.c.bf16 %v1372, %v1371
      %s1377 = scalar_lea.vmem %s3, 320
      %v1378 = vld [vmem:[%s1377] sm:$0xf]
      %v1379 = vld [vmem:[%s1377 + $0x4] sm:$0xf]
      %v1380 = vld [vmem:[%s1377 + $0x8] sm:$0xf]
      %v1381 = vld [vmem:[%s1377 + $0xc] sm:$0xf]
      %v1382 = vld [vmem:[%s1377 + $0x10] sm:$0xf]
      %v1383 = vld [vmem:[%s1377 + $0x14] sm:$0xf]
      %v1384 = vld [vmem:[%s1377 + $0x18] sm:$0xf]
      %v1385 = vld [vmem:[%s1377 + $0x1c] sm:$0xf]
      %v1386 = vld [vmem:[%s1377 + $0x20] sm:$0xf]
      %v1387 = vld [vmem:[%s1377 + $0x24] sm:$0xf]
      %v1388 = vld [vmem:[%s1377 + $0x28] sm:$0xf]
      %v1389 = vld [vmem:[%s1377 + $0x2c] sm:$0xf]
      %v1390 = vld [vmem:[%s1377 + $0x30] sm:$0xf]
      %v1391 = vld [vmem:[%s1377 + $0x34] sm:$0xf]
      %v1392 = vld [vmem:[%s1377 + $0x38] sm:$0xf]
      %v1393 = vld [vmem:[%s1377 + $0x3c] sm:$0xf]
      %v1410 = vunpack.c.l.b16 %v1378
      %v1411 = vunpack.c.l.b16 %v1379
      %v1412 = vunpack.c.l.b16 %v1380
      %v1413 = vunpack.c.l.b16 %v1381
      %v1414 = vunpack.c.l.b16 %v1382
      %v1415 = vunpack.c.l.b16 %v1383
      %v1416 = vunpack.c.l.b16 %v1384
      %v1417 = vunpack.c.l.b16 %v1385
      %v1418 = vunpack.c.l.b16 %v1386
      %v1419 = vunpack.c.l.b16 %v1387
      %v1420 = vunpack.c.l.b16 %v1388
      %v1421 = vunpack.c.l.b16 %v1389
      %v1422 = vunpack.c.l.b16 %v1390
      %v1423 = vunpack.c.l.b16 %v1391
      %v1424 = vunpack.c.l.b16 %v1392
      %v1425 = vunpack.c.l.b16 %v1393
      %v1426 = vpack.c.b16 %v1411, %v1410
      %v1427 = vpack.c.b16 %v1413, %v1412
      %v1428 = vpack.c.b16 %v1415, %v1414
      %v1429 = vpack.c.b16 %v1417, %v1416
      %v1430 = vpack.c.b16 %v1419, %v1418
      %v1431 = vpack.c.b16 %v1421, %v1420
      %v1432 = vpack.c.b16 %v1423, %v1422
      %v1433 = vpack.c.b16 %v1425, %v1424
      %1442 = vmatprep.subr.bf16.mxu0 0
      %1443 = vmatpush1.bf16.msra.mxu0 %v1433
      %1444 = vmatprep.subr.bf16.mxu0 0
      %1445 = vmatpush1.bf16.msra.mxu0 %v1432
      %1446 = vmatprep.subr.bf16.mxu0 0
      %1447 = vmatpush1.bf16.msra.mxu0 %v1431
      %1448 = vmatprep.subr.bf16.mxu0 0
      %1449 = vmatpush1.bf16.msra.mxu0 %v1430
      %1450 = vmatprep.subr.bf16.mxu0 0
      %1451 = vmatpush1.bf16.msra.mxu0 %v1429
      %1452 = vmatprep.subr.bf16.mxu0 0
      %1453 = vmatpush1.bf16.msra.mxu0 %v1428
      %1454 = vmatprep.subr.bf16.mxu0 0
      %1455 = vmatpush1.bf16.msra.mxu0 %v1427
      %1456 = vmatprep.subr.bf16.mxu0 0
      %1457 = vmatpush1.bf16.msra.mxu0 %v1426
      %1458 = vmatprep.subr.bf16.mxu0 0
      %1459 = vmatpush2.bf16.msra.mxu0 0
      %1460 = vmatprep.subr.bf16.mxu0 0
      %1461 = vmatpush2.bf16.msra.mxu0 0
      %1462 = vmatprep.subr.bf16.mxu0 0
      %1463 = vmatpush2.bf16.msra.mxu0 0
      %1464 = vmatprep.subr.bf16.mxu0 0
      %1465 = vmatpush2.bf16.msra.mxu0 0
      %1466 = vmatprep.subr.bf16.mxu0 0
      %1467 = vmatpush2.bf16.msra.mxu0 0
      %1468 = vmatprep.subr.bf16.mxu0 0
      %1469 = vmatpush2.bf16.msra.mxu0 0
      %1470 = vmatprep.subr.bf16.mxu0 0
      %1471 = vmatpush2.bf16.msra.mxu0 0
      %1472 = vmatprep.subr.bf16.mxu0 0
      %1473 = vmatpush2.bf16.msra.mxu0 0
      %1474 = vmatprep.mubr.bf16.mxu0 0
      %1475 = vmatmul.mubr.bf16.gmra.mxu0 %v1373
      %v1476 = vpop.f32.mrf.mxu0
      %v1477 = vadd.f32 0.0, %v1476
      %v1478 = vpop.f32.mrf.mxu0
      %v1479 = vpop.f32.mrf.mxu0
      %v1480 = vadd.f32 0.0, %v1479
      %v1481 = vpop.f32.mrf.mxu0
      %1482 = vmatprep.mubr.bf16.mxu0 0
      %1483 = vmatmul.mubr.bf16.gmra.mxu0 %v1374
      %v1484 = vpop.f32.mrf.mxu0
      %v1485 = vadd.f32 0.0, %v1484
      %v1486 = vpop.f32.mrf.mxu0
      %v1487 = vpop.f32.mrf.mxu0
      %v1488 = vadd.f32 0.0, %v1487
      %v1489 = vpop.f32.mrf.mxu0
      %1490 = vmatprep.mubr.bf16.mxu0 0
      %1491 = vmatmul.mubr.bf16.gmra.mxu0 %v1375
      %v1492 = vpop.f32.mrf.mxu0
      %v1493 = vadd.f32 0.0, %v1492
      %v1494 = vpop.f32.mrf.mxu0
      %v1495 = vpop.f32.mrf.mxu0
      %v1496 = vadd.f32 0.0, %v1495
      %v1497 = vpop.f32.mrf.mxu0
      %1498 = vmatprep.mubr.bf16.mxu0 0
      %1499 = vmatmul.mubr.bf16.gmra.mxu0 %v1376
      %v1500 = vpop.f32.mrf.mxu0
      %v1501 = vadd.f32 0.0, %v1500
      %v1502 = vpop.f32.mrf.mxu0
      %v1503 = vpop.f32.mrf.mxu0
      %v1504 = vadd.f32 0.0, %v1503
      %v1505 = vpop.f32.mrf.mxu0
      %1506 = vdwg.mxu0
      %v1507 = vadd.f32 %v1357, %v1477
      %v1508 = vadd.f32 %v1358, %v1480
      %v1509 = vadd.f32 %v1359, %v1485
      %v1510 = vadd.f32 %v1360, %v1488
      %v1511 = vadd.f32 %v1361, %v1493
      %v1512 = vadd.f32 %v1362, %v1496
      %v1513 = vadd.f32 %v1363, %v1501
      %v1514 = vadd.f32 %v1364, %v1504
      %v1515 = vld [vmem:[%s618] sm:$0xff]
      %v1516 = vld [vmem:[%s618 + $0x10] sm:$0xff]
      %v1517 = vld [vmem:[%s618 + $0x20] sm:$0xff]
      %v1518 = vld [vmem:[%s618 + $0x30] sm:$0xff]
      %v1519 = vld [vmem:[%s618 + $0x40] sm:$0xff]
      %v1520 = vld [vmem:[%s618 + $0x50] sm:$0xff]
      %v1521 = vld [vmem:[%s618 + $0x60] sm:$0xff]
      %v1522 = vld [vmem:[%s618 + $0x70] sm:$0xff]
      %v1523 = vpack.c.bf16 %v1516, %v1515
      %v1524 = vpack.c.bf16 %v1518, %v1517
      %v1525 = vpack.c.bf16 %v1520, %v1519
      %v1526 = vpack.c.bf16 %v1522, %v1521
      %s1527 = scalar_lea.vmem %s3, 384
      %v1528 = vld [vmem:[%s1527] sm:$0xf]
      %v1529 = vld [vmem:[%s1527 + $0x4] sm:$0xf]
      %v1530 = vld [vmem:[%s1527 + $0x8] sm:$0xf]
      %v1531 = vld [vmem:[%s1527 + $0xc] sm:$0xf]
      %v1532 = vld [vmem:[%s1527 + $0x10] sm:$0xf]
      %v1533 = vld [vmem:[%s1527 + $0x14] sm:$0xf]
      %v1534 = vld [vmem:[%s1527 + $0x18] sm:$0xf]
      %v1535 = vld [vmem:[%s1527 + $0x1c] sm:$0xf]
      %v1536 = vld [vmem:[%s1527 + $0x20] sm:$0xf]
      %v1537 = vld [vmem:[%s1527 + $0x24] sm:$0xf]
      %v1538 = vld [vmem:[%s1527 + $0x28] sm:$0xf]
      %v1539 = vld [vmem:[%s1527 + $0x2c] sm:$0xf]
      %v1540 = vld [vmem:[%s1527 + $0x30] sm:$0xf]
      %v1541 = vld [vmem:[%s1527 + $0x34] sm:$0xf]
      %v1542 = vld [vmem:[%s1527 + $0x38] sm:$0xf]
      %v1543 = vld [vmem:[%s1527 + $0x3c] sm:$0xf]
      %v1560 = vunpack.c.l.b16 %v1528
      %v1561 = vunpack.c.l.b16 %v1529
      %v1562 = vunpack.c.l.b16 %v1530
      %v1563 = vunpack.c.l.b16 %v1531
      %v1564 = vunpack.c.l.b16 %v1532
      %v1565 = vunpack.c.l.b16 %v1533
      %v1566 = vunpack.c.l.b16 %v1534
      %v1567 = vunpack.c.l.b16 %v1535
      %v1568 = vunpack.c.l.b16 %v1536
      %v1569 = vunpack.c.l.b16 %v1537
      %v1570 = vunpack.c.l.b16 %v1538
      %v1571 = vunpack.c.l.b16 %v1539
      %v1572 = vunpack.c.l.b16 %v1540
      %v1573 = vunpack.c.l.b16 %v1541
      %v1574 = vunpack.c.l.b16 %v1542
      %v1575 = vunpack.c.l.b16 %v1543
      %v1576 = vpack.c.b16 %v1561, %v1560
      %v1577 = vpack.c.b16 %v1563, %v1562
      %v1578 = vpack.c.b16 %v1565, %v1564
      %v1579 = vpack.c.b16 %v1567, %v1566
      %v1580 = vpack.c.b16 %v1569, %v1568
      %v1581 = vpack.c.b16 %v1571, %v1570
      %v1582 = vpack.c.b16 %v1573, %v1572
      %v1583 = vpack.c.b16 %v1575, %v1574
      %1592 = vmatprep.subr.bf16.mxu0 0
      %1593 = vmatpush1.bf16.msra.mxu0 %v1583
      %1594 = vmatprep.subr.bf16.mxu0 0
      %1595 = vmatpush1.bf16.msra.mxu0 %v1582
      %1596 = vmatprep.subr.bf16.mxu0 0
      %1597 = vmatpush1.bf16.msra.mxu0 %v1581
      %1598 = vmatprep.subr.bf16.mxu0 0
      %1599 = vmatpush1.bf16.msra.mxu0 %v1580
      %1600 = vmatprep.subr.bf16.mxu0 0
      %1601 = vmatpush1.bf16.msra.mxu0 %v1579
      %1602 = vmatprep.subr.bf16.mxu0 0
      %1603 = vmatpush1.bf16.msra.mxu0 %v1578
      %1604 = vmatprep.subr.bf16.mxu0 0
      %1605 = vmatpush1.bf16.msra.mxu0 %v1577
      %1606 = vmatprep.subr.bf16.mxu0 0
      %1607 = vmatpush1.bf16.msra.mxu0 %v1576
      %1608 = vmatprep.subr.bf16.mxu0 0
      %1609 = vmatpush2.bf16.msra.mxu0 0
      %1610 = vmatprep.subr.bf16.mxu0 0
      %1611 = vmatpush2.bf16.msra.mxu0 0
      %1612 = vmatprep.subr.bf16.mxu0 0
      %1613 = vmatpush2.bf16.msra.mxu0 0
      %1614 = vmatprep.subr.bf16.mxu0 0
      %1615 = vmatpush2.bf16.msra.mxu0 0
      %1616 = vmatprep.subr.bf16.mxu0 0
      %1617 = vmatpush2.bf16.msra.mxu0 0
      %1618 = vmatprep.subr.bf16.mxu0 0
      %1619 = vmatpush2.bf16.msra.mxu0 0
      %1620 = vmatprep.subr.bf16.mxu0 0
      %1621 = vmatpush2.bf16.msra.mxu0 0
      %1622 = vmatprep.subr.bf16.mxu0 0
      %1623 = vmatpush2.bf16.msra.mxu0 0
      %1624 = vmatprep.mubr.bf16.mxu0 0
      %1625 = vmatmul.mubr.bf16.gmra.mxu0 %v1523
      %v1626 = vpop.f32.mrf.mxu0
      %v1627 = vadd.f32 0.0, %v1626
      %v1628 = vpop.f32.mrf.mxu0
      %v1629 = vpop.f32.mrf.mxu0
      %v1630 = vadd.f32 0.0, %v1629
      %v1631 = vpop.f32.mrf.mxu0
      %1632 = vmatprep.mubr.bf16.mxu0 0
      %1633 = vmatmul.mubr.bf16.gmra.mxu0 %v1524
      %v1634 = vpop.f32.mrf.mxu0
      %v1635 = vadd.f32 0.0, %v1634
      %v1636 = vpop.f32.mrf.mxu0
      %v1637 = vpop.f32.mrf.mxu0
      %v1638 = vadd.f32 0.0, %v1637
      %v1639 = vpop.f32.mrf.mxu0
      %1640 = vmatprep.mubr.bf16.mxu0 0
      %1641 = vmatmul.mubr.bf16.gmra.mxu0 %v1525
      %v1642 = vpop.f32.mrf.mxu0
      %v1643 = vadd.f32 0.0, %v1642
      %v1644 = vpop.f32.mrf.mxu0
      %v1645 = vpop.f32.mrf.mxu0
      %v1646 = vadd.f32 0.0, %v1645
      %v1647 = vpop.f32.mrf.mxu0
      %1648 = vmatprep.mubr.bf16.mxu0 0
      %1649 = vmatmul.mubr.bf16.gmra.mxu0 %v1526
      %v1650 = vpop.f32.mrf.mxu0
      %v1651 = vadd.f32 0.0, %v1650
      %v1652 = vpop.f32.mrf.mxu0
      %v1653 = vpop.f32.mrf.mxu0
      %v1654 = vadd.f32 0.0, %v1653
      %v1655 = vpop.f32.mrf.mxu0
      %1656 = vdwg.mxu0
      %v1657 = vadd.f32 %v1507, %v1627
      %v1658 = vadd.f32 %v1508, %v1630
      %v1659 = vadd.f32 %v1509, %v1635
      %v1660 = vadd.f32 %v1510, %v1638
      %v1661 = vadd.f32 %v1511, %v1643
      %v1662 = vadd.f32 %v1512, %v1646
      %v1663 = vadd.f32 %v1513, %v1651
      %v1664 = vadd.f32 %v1514, %v1654
      %v1665 = vld [vmem:[%s618 + $0x1] sm:$0xff]
      %v1666 = vld [vmem:[%s618 + $0x11] sm:$0xff]
      %v1667 = vld [vmem:[%s618 + $0x21] sm:$0xff]
      %v1668 = vld [vmem:[%s618 + $0x31] sm:$0xff]
      %v1669 = vld [vmem:[%s618 + $0x41] sm:$0xff]
      %v1670 = vld [vmem:[%s618 + $0x51] sm:$0xff]
      %v1671 = vld [vmem:[%s618 + $0x61] sm:$0xff]
      %v1672 = vld [vmem:[%s618 + $0x71] sm:$0xff]
      %v1673 = vpack.c.bf16 %v1666, %v1665
      %v1674 = vpack.c.bf16 %v1668, %v1667
      %v1675 = vpack.c.bf16 %v1670, %v1669
      %v1676 = vpack.c.bf16 %v1672, %v1671
      %s1677 = scalar_lea.vmem %s3, 448
      %v1678 = vld [vmem:[%s1677] sm:$0xf]
      %v1679 = vld [vmem:[%s1677 + $0x4] sm:$0xf]
      %v1680 = vld [vmem:[%s1677 + $0x8] sm:$0xf]
      %v1681 = vld [vmem:[%s1677 + $0xc] sm:$0xf]
      %v1682 = vld [vmem:[%s1677 + $0x10] sm:$0xf]
      %v1683 = vld [vmem:[%s1677 + $0x14] sm:$0xf]
      %v1684 = vld [vmem:[%s1677 + $0x18] sm:$0xf]
      %v1685 = vld [vmem:[%s1677 + $0x1c] sm:$0xf]
      %v1686 = vld [vmem:[%s1677 + $0x20] sm:$0xf]
      %v1687 = vld [vmem:[%s1677 + $0x24] sm:$0xf]
      %v1688 = vld [vmem:[%s1677 + $0x28] sm:$0xf]
      %v1689 = vld [vmem:[%s1677 + $0x2c] sm:$0xf]
      %v1690 = vld [vmem:[%s1677 + $0x30] sm:$0xf]
      %v1691 = vld [vmem:[%s1677 + $0x34] sm:$0xf]
      %v1692 = vld [vmem:[%s1677 + $0x38] sm:$0xf]
      %v1693 = vld [vmem:[%s1677 + $0x3c] sm:$0xf]
      %v1710 = vunpack.c.l.b16 %v1678
      %v1711 = vunpack.c.l.b16 %v1679
      %v1712 = vunpack.c.l.b16 %v1680
      %v1713 = vunpack.c.l.b16 %v1681
      %v1714 = vunpack.c.l.b16 %v1682
      %v1715 = vunpack.c.l.b16 %v1683
      %v1716 = vunpack.c.l.b16 %v1684
      %v1717 = vunpack.c.l.b16 %v1685
      %v1718 = vunpack.c.l.b16 %v1686
      %v1719 = vunpack.c.l.b16 %v1687
      %v1720 = vunpack.c.l.b16 %v1688
      %v1721 = vunpack.c.l.b16 %v1689
      %v1722 = vunpack.c.l.b16 %v1690
      %v1723 = vunpack.c.l.b16 %v1691
      %v1724 = vunpack.c.l.b16 %v1692
      %v1725 = vunpack.c.l.b16 %v1693
      %v1726 = vpack.c.b16 %v1711, %v1710
      %v1727 = vpack.c.b16 %v1713, %v1712
      %v1728 = vpack.c.b16 %v1715, %v1714
      %v1729 = vpack.c.b16 %v1717, %v1716
      %v1730 = vpack.c.b16 %v1719, %v1718
      %v1731 = vpack.c.b16 %v1721, %v1720
      %v1732 = vpack.c.b16 %v1723, %v1722
      %v1733 = vpack.c.b16 %v1725, %v1724
      %1742 = vmatprep.subr.bf16.mxu0 0
      %1743 = vmatpush1.bf16.msra.mxu0 %v1733
      %1744 = vmatprep.subr.bf16.mxu0 0
      %1745 = vmatpush1.bf16.msra.mxu0 %v1732
      %1746 = vmatprep.subr.bf16.mxu0 0
      %1747 = vmatpush1.bf16.msra.mxu0 %v1731
      %1748 = vmatprep.subr.bf16.mxu0 0
      %1749 = vmatpush1.bf16.msra.mxu0 %v1730
      %1750 = vmatprep.subr.bf16.mxu0 0
      %1751 = vmatpush1.bf16.msra.mxu0 %v1729
      %1752 = vmatprep.subr.bf16.mxu0 0
      %1753 = vmatpush1.bf16.msra.mxu0 %v1728
      %1754 = vmatprep.subr.bf16.mxu0 0
      %1755 = vmatpush1.bf16.msra.mxu0 %v1727
      %1756 = vmatprep.subr.bf16.mxu0 0
      %1757 = vmatpush1.bf16.msra.mxu0 %v1726
      %1758 = vmatprep.subr.bf16.mxu0 0
      %1759 = vmatpush2.bf16.msra.mxu0 0
      %1760 = vmatprep.subr.bf16.mxu0 0
      %1761 = vmatpush2.bf16.msra.mxu0 0
      %1762 = vmatprep.subr.bf16.mxu0 0
      %1763 = vmatpush2.bf16.msra.mxu0 0
      %1764 = vmatprep.subr.bf16.mxu0 0
      %1765 = vmatpush2.bf16.msra.mxu0 0
      %1766 = vmatprep.subr.bf16.mxu0 0
      %1767 = vmatpush2.bf16.msra.mxu0 0
      %1768 = vmatprep.subr.bf16.mxu0 0
      %1769 = vmatpush2.bf16.msra.mxu0 0
      %1770 = vmatprep.subr.bf16.mxu0 0
      %1771 = vmatpush2.bf16.msra.mxu0 0
      %1772 = vmatprep.subr.bf16.mxu0 0
      %1773 = vmatpush2.bf16.msra.mxu0 0
      %1774 = vmatprep.mubr.bf16.mxu0 0
      %1775 = vmatmul.mubr.bf16.gmra.mxu0 %v1673
      %v1776 = vpop.f32.mrf.mxu0
      %v1777 = vadd.f32 0.0, %v1776
      %v1778 = vpop.f32.mrf.mxu0
      %v1779 = vpop.f32.mrf.mxu0
      %v1780 = vadd.f32 0.0, %v1779
      %v1781 = vpop.f32.mrf.mxu0
      %1782 = vmatprep.mubr.bf16.mxu0 0
      %1783 = vmatmul.mubr.bf16.gmra.mxu0 %v1674
      %v1784 = vpop.f32.mrf.mxu0
      %v1785 = vadd.f32 0.0, %v1784
      %v1786 = vpop.f32.mrf.mxu0
      %v1787 = vpop.f32.mrf.mxu0
      %v1788 = vadd.f32 0.0, %v1787
      %v1789 = vpop.f32.mrf.mxu0
      %1790 = vmatprep.mubr.bf16.mxu0 0
      %1791 = vmatmul.mubr.bf16.gmra.mxu0 %v1675
      %v1792 = vpop.f32.mrf.mxu0
      %v1793 = vadd.f32 0.0, %v1792
      %v1794 = vpop.f32.mrf.mxu0
      %v1795 = vpop.f32.mrf.mxu0
      %v1796 = vadd.f32 0.0, %v1795
      %v1797 = vpop.f32.mrf.mxu0
      %1798 = vmatprep.mubr.bf16.mxu0 0
      %1799 = vmatmul.mubr.bf16.gmra.mxu0 %v1676
      %v1800 = vpop.f32.mrf.mxu0
      %v1801 = vadd.f32 0.0, %v1800
      %v1802 = vpop.f32.mrf.mxu0
      %v1803 = vpop.f32.mrf.mxu0
      %v1804 = vadd.f32 0.0, %v1803
      %v1805 = vpop.f32.mrf.mxu0
      %1806 = vdwg.mxu0
      %v1807 = vadd.f32 %v1657, %v1777
      %v1808 = vadd.f32 %v1658, %v1780
      %v1809 = vadd.f32 %v1659, %v1785
      %v1810 = vadd.f32 %v1660, %v1788
      %v1811 = vadd.f32 %v1661, %v1793
      %v1812 = vadd.f32 %v1662, %v1796
      %v1813 = vadd.f32 %v1663, %v1801
      %v1814 = vadd.f32 %v1664, %v1804
      %v1815 = vld [vmem:[%s618 + $0x2] sm:$0xff]
      %v1816 = vld [vmem:[%s618 + $0x12] sm:$0xff]
      %v1817 = vld [vmem:[%s618 + $0x22] sm:$0xff]
      %v1818 = vld [vmem:[%s618 + $0x32] sm:$0xff]
      %v1819 = vld [vmem:[%s618 + $0x42] sm:$0xff]
      %v1820 = vld [vmem:[%s618 + $0x52] sm:$0xff]
      %v1821 = vld [vmem:[%s618 + $0x62] sm:$0xff]
      %v1822 = vld [vmem:[%s618 + $0x72] sm:$0xff]
      %v1823 = vpack.c.bf16 %v1816, %v1815
      %v1824 = vpack.c.bf16 %v1818, %v1817
      %v1825 = vpack.c.bf16 %v1820, %v1819
      %v1826 = vpack.c.bf16 %v1822, %v1821
      %s1827 = scalar_lea.vmem %s3, 512
      %v1828 = vld [vmem:[%s1827] sm:$0xf]
      %v1829 = vld [vmem:[%s1827 + $0x4] sm:$0xf]
      %v1830 = vld [vmem:[%s1827 + $0x8] sm:$0xf]
      %v1831 = vld [vmem:[%s1827 + $0xc] sm:$0xf]
      %v1832 = vld [vmem:[%s1827 + $0x10] sm:$0xf]
      %v1833 = vld [vmem:[%s1827 + $0x14] sm:$0xf]
      %v1834 = vld [vmem:[%s1827 + $0x18] sm:$0xf]
      %v1835 = vld [vmem:[%s1827 + $0x1c] sm:$0xf]
      %v1836 = vld [vmem:[%s1827 + $0x20] sm:$0xf]
      %v1837 = vld [vmem:[%s1827 + $0x24] sm:$0xf]
      %v1838 = vld [vmem:[%s1827 + $0x28] sm:$0xf]
      %v1839 = vld [vmem:[%s1827 + $0x2c] sm:$0xf]
      %v1840 = vld [vmem:[%s1827 + $0x30] sm:$0xf]
      %v1841 = vld [vmem:[%s1827 + $0x34] sm:$0xf]
      %v1842 = vld [vmem:[%s1827 + $0x38] sm:$0xf]
      %v1843 = vld [vmem:[%s1827 + $0x3c] sm:$0xf]
      %v1860 = vunpack.c.l.b16 %v1828
      %v1861 = vunpack.c.l.b16 %v1829
      %v1862 = vunpack.c.l.b16 %v1830
      %v1863 = vunpack.c.l.b16 %v1831
      %v1864 = vunpack.c.l.b16 %v1832
      %v1865 = vunpack.c.l.b16 %v1833
      %v1866 = vunpack.c.l.b16 %v1834
      %v1867 = vunpack.c.l.b16 %v1835
      %v1868 = vunpack.c.l.b16 %v1836
      %v1869 = vunpack.c.l.b16 %v1837
      %v1870 = vunpack.c.l.b16 %v1838
      %v1871 = vunpack.c.l.b16 %v1839
      %v1872 = vunpack.c.l.b16 %v1840
      %v1873 = vunpack.c.l.b16 %v1841
      %v1874 = vunpack.c.l.b16 %v1842
      %v1875 = vunpack.c.l.b16 %v1843
      %v1876 = vpack.c.b16 %v1861, %v1860
      %v1877 = vpack.c.b16 %v1863, %v1862
      %v1878 = vpack.c.b16 %v1865, %v1864
      %v1879 = vpack.c.b16 %v1867, %v1866
      %v1880 = vpack.c.b16 %v1869, %v1868
      %v1881 = vpack.c.b16 %v1871, %v1870
      %v1882 = vpack.c.b16 %v1873, %v1872
      %v1883 = vpack.c.b16 %v1875, %v1874
      %1892 = vmatprep.subr.bf16.mxu0 0
      %1893 = vmatpush1.bf16.msra.mxu0 %v1883
      %1894 = vmatprep.subr.bf16.mxu0 0
      %1895 = vmatpush1.bf16.msra.mxu0 %v1882
      %1896 = vmatprep.subr.bf16.mxu0 0
      %1897 = vmatpush1.bf16.msra.mxu0 %v1881
      %1898 = vmatprep.subr.bf16.mxu0 0
      %1899 = vmatpush1.bf16.msra.mxu0 %v1880
      %1900 = vmatprep.subr.bf16.mxu0 0
      %1901 = vmatpush1.bf16.msra.mxu0 %v1879
      %1902 = vmatprep.subr.bf16.mxu0 0
      %1903 = vmatpush1.bf16.msra.mxu0 %v1878
      %1904 = vmatprep.subr.bf16.mxu0 0
      %1905 = vmatpush1.bf16.msra.mxu0 %v1877
      %1906 = vmatprep.subr.bf16.mxu0 0
      %1907 = vmatpush1.bf16.msra.mxu0 %v1876
      %1908 = vmatprep.subr.bf16.mxu0 0
      %1909 = vmatpush2.bf16.msra.mxu0 0
      %1910 = vmatprep.subr.bf16.mxu0 0
      %1911 = vmatpush2.bf16.msra.mxu0 0
      %1912 = vmatprep.subr.bf16.mxu0 0
      %1913 = vmatpush2.bf16.msra.mxu0 0
      %1914 = vmatprep.subr.bf16.mxu0 0
      %1915 = vmatpush2.bf16.msra.mxu0 0
      %1916 = vmatprep.subr.bf16.mxu0 0
      %1917 = vmatpush2.bf16.msra.mxu0 0
      %1918 = vmatprep.subr.bf16.mxu0 0
      %1919 = vmatpush2.bf16.msra.mxu0 0
      %1920 = vmatprep.subr.bf16.mxu0 0
      %1921 = vmatpush2.bf16.msra.mxu0 0
      %1922 = vmatprep.subr.bf16.mxu0 0
      %1923 = vmatpush2.bf16.msra.mxu0 0
      %1924 = vmatprep.mubr.bf16.mxu0 0
      %1925 = vmatmul.mubr.bf16.gmra.mxu0 %v1823
      %v1926 = vpop.f32.mrf.mxu0
      %v1927 = vadd.f32 0.0, %v1926
      %v1928 = vpop.f32.mrf.mxu0
      %v1929 = vpop.f32.mrf.mxu0
      %v1930 = vadd.f32 0.0, %v1929
      %v1931 = vpop.f32.mrf.mxu0
      %1932 = vmatprep.mubr.bf16.mxu0 0
      %1933 = vmatmul.mubr.bf16.gmra.mxu0 %v1824
      %v1934 = vpop.f32.mrf.mxu0
      %v1935 = vadd.f32 0.0, %v1934
      %v1936 = vpop.f32.mrf.mxu0
      %v1937 = vpop.f32.mrf.mxu0
      %v1938 = vadd.f32 0.0, %v1937
      %v1939 = vpop.f32.mrf.mxu0
      %1940 = vmatprep.mubr.bf16.mxu0 0
      %1941 = vmatmul.mubr.bf16.gmra.mxu0 %v1825
      %v1942 = vpop.f32.mrf.mxu0
      %v1943 = vadd.f32 0.0, %v1942
      %v1944 = vpop.f32.mrf.mxu0
      %v1945 = vpop.f32.mrf.mxu0
      %v1946 = vadd.f32 0.0, %v1945
      %v1947 = vpop.f32.mrf.mxu0
      %1948 = vmatprep.mubr.bf16.mxu0 0
      %1949 = vmatmul.mubr.bf16.gmra.mxu0 %v1826
      %v1950 = vpop.f32.mrf.mxu0
      %v1951 = vadd.f32 0.0, %v1950
      %v1952 = vpop.f32.mrf.mxu0
      %v1953 = vpop.f32.mrf.mxu0
      %v1954 = vadd.f32 0.0, %v1953
      %v1955 = vpop.f32.mrf.mxu0
      %1956 = vdwg.mxu0
      %v1957 = vadd.f32 %v1807, %v1927
      %v1958 = vadd.f32 %v1808, %v1930
      %v1959 = vadd.f32 %v1809, %v1935
      %v1960 = vadd.f32 %v1810, %v1938
      %v1961 = vadd.f32 %v1811, %v1943
      %v1962 = vadd.f32 %v1812, %v1946
      %v1963 = vadd.f32 %v1813, %v1951
      %v1964 = vadd.f32 %v1814, %v1954
      %v1965 = vld [vmem:[%s4] sm:$0x1]
      %v1967 = vlaneseq
      %v1968 = vshrl.u32 %v1967, 7
      %v1969 = vsub.s32 0, %v1968
      %v1970 = vrot.slane %v1965, %v1969
      %v1972 = vadd.f32 %v1957, %v1970
      %v1973 = vadd.f32 %v1958, %v1970
      %v1974 = vadd.f32 %v1959, %v1970
      %v1975 = vadd.f32 %v1960, %v1970
      %v1976 = vadd.f32 %v1961, %v1970
      %v1977 = vadd.f32 %v1962, %v1970
      %v1978 = vadd.f32 %v1963, %v1970
      %v1979 = vadd.f32 %v1964, %v1970
      %v1980 = vmax.f32 %v1972, 0.0
      %v1981 = vmax.f32 %v1973, 0.0
      %v1982 = vmax.f32 %v1974, 0.0
      %v1983 = vmax.f32 %v1975, 0.0
      %v1984 = vmax.f32 %v1976, 0.0
      %v1985 = vmax.f32 %v1977, 0.0
      %v1986 = vmax.f32 %v1978, 0.0
      %v1987 = vmax.f32 %v1979, 0.0
      %v1988 = vpack.c.bf16 %v1981, %v1980
      %v1989 = vpack.c.bf16 %v1983, %v1982
      %v1990 = vpack.c.bf16 %v1985, %v1984
      %v1991 = vpack.c.bf16 %v1987, %v1986
      %v1996 = vunpack.c.l.b16 %v1988
      %v1997 = vunpack.c.h.b16 %v1988
      %v1998 = vunpack.c.l.b16 %v1989
      %v1999 = vunpack.c.h.b16 %v1989
      %v2000 = vunpack.c.l.b16 %v1990
      %v2001 = vunpack.c.h.b16 %v1990
      %v2002 = vunpack.c.l.b16 %v1991
      %v2003 = vunpack.c.h.b16 %v1991
      %v2004 = vpack.c.b16 %v1996, %v1996
      %v2005 = vpack.c.b16 %v1997, %v1997
      %v2006 = vpack.c.b16 %v1998, %v1998
      %v2007 = vpack.c.b16 %v1999, %v1999
      %v2008 = vpack.c.b16 %v2000, %v2000
      %v2009 = vpack.c.b16 %v2001, %v2001
      %v2010 = vpack.c.b16 %v2002, %v2002
      %v2011 = vpack.c.b16 %v2003, %v2003
      %2012 = vrot.lane.b32.xlu0 %v2004, 32
      %v2013 = vpop.permute.xlu0 %2012
      %2014 = vrot.lane.b32.xlu0 %v2005, 32
      %v2015 = vpop.permute.xlu0 %2014
      %2016 = vrot.lane.b32.xlu0 %v2006, 32
      %v2017 = vpop.permute.xlu0 %2016
      %2018 = vrot.lane.b32.xlu0 %v2007, 32
      %v2019 = vpop.permute.xlu0 %2018
      %2020 = vrot.lane.b32.xlu0 %v2008, 32
      %v2021 = vpop.permute.xlu0 %2020
      %2022 = vrot.lane.b32.xlu0 %v2009, 32
      %v2023 = vpop.permute.xlu0 %2022
      %2024 = vrot.lane.b32.xlu0 %v2010, 32
      %v2025 = vpop.permute.xlu0 %2024
      %2026 = vrot.lane.b32.xlu0 %v2011, 32
      %v2027 = vpop.permute.xlu0 %2026
      %vm2036 = vcmask 519424
      %2037 = vst.msk [vmem:[#allocation2] sm:$0xf] %vm2036, %v2013
      %2038 = vst.msk [vmem:[#allocation2 + $0x4] sm:$0xf] %vm2036, %v2015
      %2039 = vst.msk [vmem:[#allocation2 + $0x8] sm:$0xf] %vm2036, %v2017
      %2040 = vst.msk [vmem:[#allocation2 + $0xc] sm:$0xf] %vm2036, %v2019
      %2041 = vst.msk [vmem:[#allocation2 + $0x10] sm:$0xf] %vm2036, %v2021
      %2042 = vst.msk [vmem:[#allocation2 + $0x14] sm:$0xf] %vm2036, %v2023
      %2043 = vst.msk [vmem:[#allocation2 + $0x18] sm:$0xf] %vm2036, %v2025
      %2044 = vst.msk [vmem:[#allocation2 + $0x1c] sm:$0xf] %vm2036, %v2027
      %v2045 = vld [vmem:[#allocation2] sm:$0xf]
      %v2046 = vld [vmem:[#allocation2 + $0x4] sm:$0xf]
      %v2047 = vld [vmem:[#allocation2 + $0x8] sm:$0xf]
      %v2048 = vld [vmem:[#allocation2 + $0xc] sm:$0xf]
      %v2049 = vld [vmem:[#allocation2 + $0x10] sm:$0xf]
      %v2050 = vld [vmem:[#allocation2 + $0x14] sm:$0xf]
      %v2051 = vld [vmem:[#allocation2 + $0x18] sm:$0xf]
      %v2052 = vld [vmem:[#allocation2 + $0x1c] sm:$0xf]
      %v2053 = vld [vmem:[%s5] sm:$0xf]
      %v2054 = vld [vmem:[%s5 + $0x4] sm:$0xf]
      %v2055 = vld [vmem:[%s5 + $0x8] sm:$0xf]
      %v2056 = vld [vmem:[%s5 + $0xc] sm:$0xf]
      %v2057 = vld [vmem:[%s5 + $0x10] sm:$0xf]
      %v2058 = vld [vmem:[%s5 + $0x14] sm:$0xf]
      %v2059 = vld [vmem:[%s5 + $0x18] sm:$0xf]
      %v2060 = vld [vmem:[%s5 + $0x1c] sm:$0xf]
      %v2061 = vld [vmem:[%s6] sm:$0x1]
      %v2063 = vlaneseq
      %v2064 = vshrl.u32 %v2063, 7
      %v2065 = vsub.s32 0, %v2064
      %v2066 = vrot.slane %v2061, %v2065
      %v2076 = vunpack.c.l.b16 %v2045
      %v2077 = vunpack.c.l.b16 %v2046
      %v2078 = vunpack.c.l.b16 %v2047
      %v2079 = vunpack.c.l.b16 %v2048
      %v2080 = vunpack.c.l.b16 %v2049
      %v2081 = vunpack.c.l.b16 %v2050
      %v2082 = vunpack.c.l.b16 %v2051
      %v2083 = vunpack.c.l.b16 %v2052
      %v2084 = vpack.c.b16 %v2077, %v2076
      %v2085 = vpack.c.b16 %v2079, %v2078
      %v2086 = vpack.c.b16 %v2081, %v2080
      %v2087 = vpack.c.b16 %v2083, %v2082
      %v2096 = vunpack.c.l.b16 %v2053
      %v2097 = vunpack.c.l.b16 %v2054
      %v2098 = vunpack.c.l.b16 %v2055
      %v2099 = vunpack.c.l.b16 %v2056
      %v2100 = vunpack.c.l.b16 %v2057
      %v2101 = vunpack.c.l.b16 %v2058
      %v2102 = vunpack.c.l.b16 %v2059
      %v2103 = vunpack.c.l.b16 %v2060
      %v2104 = vpack.c.b16 %v2097, %v2096
      %v2105 = vpack.c.b16 %v2099, %v2098
      %v2106 = vpack.c.b16 %v2101, %v2100
      %v2107 = vpack.c.b16 %v2103, %v2102
      %vm2112 = vcmask 523264
      %v2114 = vsel %vm2112, %v2084, 0
      %v2117 = vsel %vm2112, %v2085, 0
      %v2120 = vsel %vm2112, %v2086, 0
      %v2123 = vsel %vm2112, %v2087, 0
      %2125 = vmatprep.subr.bf16.mxu0 0
      %2126 = vmatpush1.bf16.msra.mxu0 0
      %2127 = vmatprep.subr.bf16.mxu0 0
      %2128 = vmatpush1.bf16.msra.mxu0 0
      %2129 = vmatprep.subr.bf16.mxu0 0
      %2130 = vmatpush1.bf16.msra.mxu0 0
      %2131 = vmatprep.subr.bf16.mxu0 0
      %2132 = vmatpush1.bf16.msra.mxu0 0
      %2133 = vmatprep.subr.bf16.mxu0 0
      %2134 = vmatpush1.bf16.msra.mxu0 %v2107
      %2135 = vmatprep.subr.bf16.mxu0 0
      %2136 = vmatpush1.bf16.msra.mxu0 %v2106
      %2137 = vmatprep.subr.bf16.mxu0 0
      %2138 = vmatpush1.bf16.msra.mxu0 %v2105
      %2139 = vmatprep.subr.bf16.mxu0 0
      %2140 = vmatpush1.bf16.msra.mxu0 %v2104
      %2141 = vmatprep.subr.bf16.mxu0 0
      %2142 = vmatpush2.bf16.msra.mxu0 0
      %2143 = vmatprep.subr.bf16.mxu0 0
      %2144 = vmatpush2.bf16.msra.mxu0 0
      %2145 = vmatprep.subr.bf16.mxu0 0
      %2146 = vmatpush2.bf16.msra.mxu0 0
      %2147 = vmatprep.subr.bf16.mxu0 0
      %2148 = vmatpush2.bf16.msra.mxu0 0
      %2149 = vmatprep.subr.bf16.mxu0 0
      %2150 = vmatpush2.bf16.msra.mxu0 0
      %2151 = vmatprep.subr.bf16.mxu0 0
      %2152 = vmatpush2.bf16.msra.mxu0 0
      %2153 = vmatprep.subr.bf16.mxu0 0
      %2154 = vmatpush2.bf16.msra.mxu0 0
      %2155 = vmatprep.subr.bf16.mxu0 0
      %2156 = vmatpush2.bf16.msra.mxu0 0
      %2157 = vmatprep.mubr.bf16.mxu0 0
      %2158 = vmatmul.mubr.bf16.gmra.mxu0 %v2114
      %v2159 = vpop.f32.mrf.mxu0
      %v2160 = vadd.f32 %v2066, %v2159
      %v2161 = vpop.f32.mrf.mxu0
      %v2162 = vpop.f32.mrf.mxu0
      %v2163 = vadd.f32 %v2066, %v2162
      %v2164 = vpop.f32.mrf.mxu0
      %2165 = vmatprep.mubr.bf16.mxu0 0
      %2166 = vmatmul.mubr.bf16.gmra.mxu0 %v2117
      %v2167 = vpop.f32.mrf.mxu0
      %v2168 = vadd.f32 %v2066, %v2167
      %v2169 = vpop.f32.mrf.mxu0
      %v2170 = vpop.f32.mrf.mxu0
      %v2171 = vadd.f32 %v2066, %v2170
      %v2172 = vpop.f32.mrf.mxu0
      %2173 = vmatprep.mubr.bf16.mxu0 0
      %2174 = vmatmul.mubr.bf16.gmra.mxu0 %v2120
      %v2175 = vpop.f32.mrf.mxu0
      %v2176 = vadd.f32 %v2066, %v2175
      %v2177 = vpop.f32.mrf.mxu0
      %v2178 = vpop.f32.mrf.mxu0
      %v2179 = vadd.f32 %v2066, %v2178
      %v2180 = vpop.f32.mrf.mxu0
      %2181 = vmatprep.mubr.bf16.mxu0 0
      %2182 = vmatmul.mubr.bf16.gmra.mxu0 %v2123
      %v2183 = vpop.f32.mrf.mxu0
      %v2184 = vadd.f32 %v2066, %v2183
      %v2185 = vpop.f32.mrf.mxu0
      %v2186 = vpop.f32.mrf.mxu0
      %v2187 = vadd.f32 %v2066, %v2186
      %v2188 = vpop.f32.mrf.mxu0
      %2189 = vdwg.mxu0
      %v2190 = vmax.f32 %v2160, 0.0
      %v2191 = vmax.f32 %v2163, 0.0
      %v2192 = vmax.f32 %v2168, 0.0
      %v2193 = vmax.f32 %v2171, 0.0
      %v2194 = vmax.f32 %v2176, 0.0
      %v2195 = vmax.f32 %v2179, 0.0
      %v2196 = vmax.f32 %v2184, 0.0
      %v2197 = vmax.f32 %v2187, 0.0
      %2198 = vst [vmem:[%s616 + $0x1] sm:$0xff] %v2190
      %2199 = vst [vmem:[%s618 + $0x1] sm:$0xff] %v2191
      %2200 = vst [vmem:[%s620 + $0x1] sm:$0xff] %v2192
      %2201 = vst [vmem:[%s622 + $0x1] sm:$0xff] %v2193
      %2202 = vst [vmem:[%s624 + $0x1] sm:$0xff] %v2194
      %2203 = vst [vmem:[%s626 + $0x1] sm:$0xff] %v2195
      %2204 = vst [vmem:[%s628 + $0x1] sm:$0xff] %v2196
      %2205 = vst [vmem:[%s630 + $0x1] sm:$0xff] %v2197
      %v2206 = vld [vmem:[#allocation3] sm:$0xff]
      %v2207 = vld [vmem:[#allocation3 + $0x10] sm:$0xff]
      %v2208 = vld [vmem:[#allocation3 + $0x20] sm:$0xff]
      %v2209 = vld [vmem:[#allocation3 + $0x30] sm:$0xff]
      %v2210 = vld [vmem:[#allocation3 + $0x40] sm:$0xff]
      %v2211 = vld [vmem:[#allocation3 + $0x50] sm:$0xff]
      %v2212 = vld [vmem:[#allocation3 + $0x60] sm:$0xff]
      %v2213 = vld [vmem:[#allocation3 + $0x70] sm:$0xff]
      %v2214 = vpack.c.bf16 %v2207, %v2206
      %v2215 = vpack.c.bf16 %v2209, %v2208
      %v2216 = vpack.c.bf16 %v2211, %v2210
      %v2217 = vpack.c.bf16 %v2213, %v2212
      %v2218 = vld [vmem:[%s7] sm:$0xf]
      %v2219 = vld [vmem:[%s7 + $0x4] sm:$0xf]
      %v2220 = vld [vmem:[%s7 + $0x8] sm:$0xf]
      %v2221 = vld [vmem:[%s7 + $0xc] sm:$0xf]
      %v2222 = vld [vmem:[%s7 + $0x10] sm:$0xf]
      %v2223 = vld [vmem:[%s7 + $0x14] sm:$0xf]
      %v2224 = vld [vmem:[%s7 + $0x18] sm:$0xf]
      %v2225 = vld [vmem:[%s7 + $0x1c] sm:$0xf]
      %v2226 = vld [vmem:[%s7 + $0x20] sm:$0xf]
      %v2227 = vld [vmem:[%s7 + $0x24] sm:$0xf]
      %v2228 = vld [vmem:[%s7 + $0x28] sm:$0xf]
      %v2229 = vld [vmem:[%s7 + $0x2c] sm:$0xf]
      %v2230 = vld [vmem:[%s7 + $0x30] sm:$0xf]
      %v2231 = vld [vmem:[%s7 + $0x34] sm:$0xf]
      %v2232 = vld [vmem:[%s7 + $0x38] sm:$0xf]
      %v2233 = vld [vmem:[%s7 + $0x3c] sm:$0xf]
      %v2234 = vld [vmem:[#allocation3 + $0x1] sm:$0xff]
      %v2235 = vld [vmem:[#allocation3 + $0x11] sm:$0xff]
      %v2236 = vld [vmem:[#allocation3 + $0x21] sm:$0xff]
      %v2237 = vld [vmem:[#allocation3 + $0x31] sm:$0xff]
      %v2238 = vld [vmem:[#allocation3 + $0x41] sm:$0xff]
      %v2239 = vld [vmem:[#allocation3 + $0x51] sm:$0xff]
      %v2240 = vld [vmem:[#allocation3 + $0x61] sm:$0xff]
      %v2241 = vld [vmem:[#allocation3 + $0x71] sm:$0xff]
      %v2242 = vpack.c.bf16 %v2235, %v2234
      %v2243 = vpack.c.bf16 %v2237, %v2236
      %v2244 = vpack.c.bf16 %v2239, %v2238
      %v2245 = vpack.c.bf16 %v2241, %v2240
      %s2246 = scalar_lea.vmem %s7, 64
      %v2247 = vld [vmem:[%s2246] sm:$0xf]
      %v2248 = vld [vmem:[%s2246 + $0x4] sm:$0xf]
      %v2249 = vld [vmem:[%s2246 + $0x8] sm:$0xf]
      %v2250 = vld [vmem:[%s2246 + $0xc] sm:$0xf]
      %v2251 = vld [vmem:[%s2246 + $0x10] sm:$0xf]
      %v2252 = vld [vmem:[%s2246 + $0x14] sm:$0xf]
      %v2253 = vld [vmem:[%s2246 + $0x18] sm:$0xf]
      %v2254 = vld [vmem:[%s2246 + $0x1c] sm:$0xf]
      %v2255 = vld [vmem:[%s2246 + $0x20] sm:$0xf]
      %v2256 = vld [vmem:[%s2246 + $0x24] sm:$0xf]
      %v2257 = vld [vmem:[%s2246 + $0x28] sm:$0xf]
      %v2258 = vld [vmem:[%s2246 + $0x2c] sm:$0xf]
      %v2259 = vld [vmem:[%s2246 + $0x30] sm:$0xf]
      %v2260 = vld [vmem:[%s2246 + $0x34] sm:$0xf]
      %v2261 = vld [vmem:[%s2246 + $0x38] sm:$0xf]
      %v2262 = vld [vmem:[%s2246 + $0x3c] sm:$0xf]
      %v2279 = vunpack.c.l.b16 %v2247
      %v2280 = vunpack.c.l.b16 %v2248
      %v2281 = vunpack.c.l.b16 %v2249
      %v2282 = vunpack.c.l.b16 %v2250
      %v2283 = vunpack.c.l.b16 %v2251
      %v2284 = vunpack.c.l.b16 %v2252
      %v2285 = vunpack.c.l.b16 %v2253
      %v2286 = vunpack.c.l.b16 %v2254
      %v2287 = vunpack.c.l.b16 %v2255
      %v2288 = vunpack.c.l.b16 %v2256
      %v2289 = vunpack.c.l.b16 %v2257
      %v2290 = vunpack.c.l.b16 %v2258
      %v2291 = vunpack.c.l.b16 %v2259
      %v2292 = vunpack.c.l.b16 %v2260
      %v2293 = vunpack.c.l.b16 %v2261
      %v2294 = vunpack.c.l.b16 %v2262
      %v2295 = vpack.c.b16 %v2280, %v2279
      %v2296 = vpack.c.b16 %v2282, %v2281
      %v2297 = vpack.c.b16 %v2284, %v2283
      %v2298 = vpack.c.b16 %v2286, %v2285
      %v2299 = vpack.c.b16 %v2288, %v2287
      %v2300 = vpack.c.b16 %v2290, %v2289
      %v2301 = vpack.c.b16 %v2292, %v2291
      %v2302 = vpack.c.b16 %v2294, %v2293
      %2311 = vmatprep.subr.bf16.mxu0 0
      %2312 = vmatpush1.bf16.msra.mxu0 %v2302
      %2313 = vmatprep.subr.bf16.mxu0 0
      %2314 = vmatpush1.bf16.msra.mxu0 %v2301
      %2315 = vmatprep.subr.bf16.mxu0 0
      %2316 = vmatpush1.bf16.msra.mxu0 %v2300
      %2317 = vmatprep.subr.bf16.mxu0 0
      %2318 = vmatpush1.bf16.msra.mxu0 %v2299
      %2319 = vmatprep.subr.bf16.mxu0 0
      %2320 = vmatpush1.bf16.msra.mxu0 %v2298
      %2321 = vmatprep.subr.bf16.mxu0 0
      %2322 = vmatpush1.bf16.msra.mxu0 %v2297
      %2323 = vmatprep.subr.bf16.mxu0 0
      %2324 = vmatpush1.bf16.msra.mxu0 %v2296
      %2325 = vmatprep.subr.bf16.mxu0 0
      %2326 = vmatpush1.bf16.msra.mxu0 %v2295
      %2327 = vmatprep.subr.bf16.mxu0 0
      %2328 = vmatpush2.bf16.msra.mxu0 0
      %2329 = vmatprep.subr.bf16.mxu0 0
      %2330 = vmatpush2.bf16.msra.mxu0 0
      %2331 = vmatprep.subr.bf16.mxu0 0
      %2332 = vmatpush2.bf16.msra.mxu0 0
      %2333 = vmatprep.subr.bf16.mxu0 0
      %2334 = vmatpush2.bf16.msra.mxu0 0
      %2335 = vmatprep.subr.bf16.mxu0 0
      %2336 = vmatpush2.bf16.msra.mxu0 0
      %2337 = vmatprep.subr.bf16.mxu0 0
      %2338 = vmatpush2.bf16.msra.mxu0 0
      %2339 = vmatprep.subr.bf16.mxu0 0
      %2340 = vmatpush2.bf16.msra.mxu0 0
      %2341 = vmatprep.subr.bf16.mxu0 0
      %2342 = vmatpush2.bf16.msra.mxu0 0
      %2343 = vmatprep.mubr.bf16.mxu0 0
      %2344 = vmatmul.mubr.bf16.gmra.mxu0 %v2242
      %v2345 = vpop.f32.mrf.mxu0
      %v2346 = vadd.f32 0.0, %v2345
      %v2347 = vpop.f32.mrf.mxu0
      %v2348 = vpop.f32.mrf.mxu0
      %v2349 = vadd.f32 0.0, %v2348
      %v2350 = vpop.f32.mrf.mxu0
      %2351 = vmatprep.mubr.bf16.mxu0 0
      %2352 = vmatmul.mubr.bf16.gmra.mxu0 %v2243
      %v2353 = vpop.f32.mrf.mxu0
      %v2354 = vadd.f32 0.0, %v2353
      %v2355 = vpop.f32.mrf.mxu0
      %v2356 = vpop.f32.mrf.mxu0
      %v2357 = vadd.f32 0.0, %v2356
      %v2358 = vpop.f32.mrf.mxu0
      %2359 = vmatprep.mubr.bf16.mxu0 0
      %2360 = vmatmul.mubr.bf16.gmra.mxu0 %v2244
      %v2361 = vpop.f32.mrf.mxu0
      %v2362 = vadd.f32 0.0, %v2361
      %v2363 = vpop.f32.mrf.mxu0
      %v2364 = vpop.f32.mrf.mxu0
      %v2365 = vadd.f32 0.0, %v2364
      %v2366 = vpop.f32.mrf.mxu0
      %2367 = vmatprep.mubr.bf16.mxu0 0
      %2368 = vmatmul.mubr.bf16.gmra.mxu0 %v2245
      %v2369 = vpop.f32.mrf.mxu0
      %v2370 = vadd.f32 0.0, %v2369
      %v2371 = vpop.f32.mrf.mxu0
      %v2372 = vpop.f32.mrf.mxu0
      %v2373 = vadd.f32 0.0, %v2372
      %v2374 = vpop.f32.mrf.mxu0
      %2375 = vdwg.mxu0
      %v2392 = vunpack.c.l.b16 %v2218
      %v2393 = vunpack.c.l.b16 %v2219
      %v2394 = vunpack.c.l.b16 %v2220
      %v2395 = vunpack.c.l.b16 %v2221
      %v2396 = vunpack.c.l.b16 %v2222
      %v2397 = vunpack.c.l.b16 %v2223
      %v2398 = vunpack.c.l.b16 %v2224
      %v2399 = vunpack.c.l.b16 %v2225
      %v2400 = vunpack.c.l.b16 %v2226
      %v2401 = vunpack.c.l.b16 %v2227
      %v2402 = vunpack.c.l.b16 %v2228
      %v2403 = vunpack.c.l.b16 %v2229
      %v2404 = vunpack.c.l.b16 %v2230
      %v2405 = vunpack.c.l.b16 %v2231
      %v2406 = vunpack.c.l.b16 %v2232
      %v2407 = vunpack.c.l.b16 %v2233
      %v2408 = vpack.c.b16 %v2393, %v2392
      %v2409 = vpack.c.b16 %v2395, %v2394
      %v2410 = vpack.c.b16 %v2397, %v2396
      %v2411 = vpack.c.b16 %v2399, %v2398
      %v2412 = vpack.c.b16 %v2401, %v2400
      %v2413 = vpack.c.b16 %v2403, %v2402
      %v2414 = vpack.c.b16 %v2405, %v2404
      %v2415 = vpack.c.b16 %v2407, %v2406
      %2424 = vmatprep.subr.bf16.mxu0 0
      %2425 = vmatpush1.bf16.msra.mxu0 %v2415
      %2426 = vmatprep.subr.bf16.mxu0 0
      %2427 = vmatpush1.bf16.msra.mxu0 %v2414
      %2428 = vmatprep.subr.bf16.mxu0 0
      %2429 = vmatpush1.bf16.msra.mxu0 %v2413
      %2430 = vmatprep.subr.bf16.mxu0 0
      %2431 = vmatpush1.bf16.msra.mxu0 %v2412
      %2432 = vmatprep.subr.bf16.mxu0 0
      %2433 = vmatpush1.bf16.msra.mxu0 %v2411
      %2434 = vmatprep.subr.bf16.mxu0 0
      %2435 = vmatpush1.bf16.msra.mxu0 %v2410
      %2436 = vmatprep.subr.bf16.mxu0 0
      %2437 = vmatpush1.bf16.msra.mxu0 %v2409
      %2438 = vmatprep.subr.bf16.mxu0 0
      %2439 = vmatpush1.bf16.msra.mxu0 %v2408
      %2440 = vmatprep.subr.bf16.mxu0 0
      %2441 = vmatpush2.bf16.msra.mxu0 0
      %2442 = vmatprep.subr.bf16.mxu0 0
      %2443 = vmatpush2.bf16.msra.mxu0 0
      %2444 = vmatprep.subr.bf16.mxu0 0
      %2445 = vmatpush2.bf16.msra.mxu0 0
      %2446 = vmatprep.subr.bf16.mxu0 0
      %2447 = vmatpush2.bf16.msra.mxu0 0
      %2448 = vmatprep.subr.bf16.mxu0 0
      %2449 = vmatpush2.bf16.msra.mxu0 0
      %2450 = vmatprep.subr.bf16.mxu0 0
      %2451 = vmatpush2.bf16.msra.mxu0 0
      %2452 = vmatprep.subr.bf16.mxu0 0
      %2453 = vmatpush2.bf16.msra.mxu0 0
      %2454 = vmatprep.subr.bf16.mxu0 0
      %2455 = vmatpush2.bf16.msra.mxu0 0
      %2456 = vmatprep.mubr.bf16.mxu0 0
      %2457 = vmatmul.mubr.bf16.gmra.mxu0 %v2214
      %v2458 = vpop.f32.mrf.mxu0
      %v2459 = vadd.f32 %v2346, %v2458
      %v2460 = vpop.f32.mrf.mxu0
      %v2461 = vpop.f32.mrf.mxu0
      %v2462 = vadd.f32 %v2349, %v2461
      %v2463 = vpop.f32.mrf.mxu0
      %2464 = vmatprep.mubr.bf16.mxu0 0
      %2465 = vmatmul.mubr.bf16.gmra.mxu0 %v2215
      %v2466 = vpop.f32.mrf.mxu0
      %v2467 = vadd.f32 %v2354, %v2466
      %v2468 = vpop.f32.mrf.mxu0
      %v2469 = vpop.f32.mrf.mxu0
      %v2470 = vadd.f32 %v2357, %v2469
      %v2471 = vpop.f32.mrf.mxu0
      %2472 = vmatprep.mubr.bf16.mxu0 0
      %2473 = vmatmul.mubr.bf16.gmra.mxu0 %v2216
      %v2474 = vpop.f32.mrf.mxu0
      %v2475 = vadd.f32 %v2362, %v2474
      %v2476 = vpop.f32.mrf.mxu0
      %v2477 = vpop.f32.mrf.mxu0
      %v2478 = vadd.f32 %v2365, %v2477
      %v2479 = vpop.f32.mrf.mxu0
      %2480 = vmatprep.mubr.bf16.mxu0 0
      %2481 = vmatmul.mubr.bf16.gmra.mxu0 %v2217
      %v2482 = vpop.f32.mrf.mxu0
      %v2483 = vadd.f32 %v2370, %v2482
      %v2484 = vpop.f32.mrf.mxu0
      %v2485 = vpop.f32.mrf.mxu0
      %v2486 = vadd.f32 %v2373, %v2485
      %v2487 = vpop.f32.mrf.mxu0
      %2488 = vdwg.mxu0
      %v2489 = vld [vmem:[#allocation3 + $0x2] sm:$0xff]
      %v2490 = vld [vmem:[#allocation3 + $0x12] sm:$0xff]
      %v2491 = vld [vmem:[#allocation3 + $0x22] sm:$0xff]
      %v2492 = vld [vmem:[#allocation3 + $0x32] sm:$0xff]
      %v2493 = vld [vmem:[#allocation3 + $0x42] sm:$0xff]
      %v2494 = vld [vmem:[#allocation3 + $0x52] sm:$0xff]
      %v2495 = vld [vmem:[#allocation3 + $0x62] sm:$0xff]
      %v2496 = vld [vmem:[#allocation3 + $0x72] sm:$0xff]
      %v2497 = vpack.c.bf16 %v2490, %v2489
      %v2498 = vpack.c.bf16 %v2492, %v2491
      %v2499 = vpack.c.bf16 %v2494, %v2493
      %v2500 = vpack.c.bf16 %v2496, %v2495
      %s2501 = scalar_lea.vmem %s7, 128
      %v2502 = vld [vmem:[%s2501] sm:$0xf]
      %v2503 = vld [vmem:[%s2501 + $0x4] sm:$0xf]
      %v2504 = vld [vmem:[%s2501 + $0x8] sm:$0xf]
      %v2505 = vld [vmem:[%s2501 + $0xc] sm:$0xf]
      %v2506 = vld [vmem:[%s2501 + $0x10] sm:$0xf]
      %v2507 = vld [vmem:[%s2501 + $0x14] sm:$0xf]
      %v2508 = vld [vmem:[%s2501 + $0x18] sm:$0xf]
      %v2509 = vld [vmem:[%s2501 + $0x1c] sm:$0xf]
      %v2510 = vld [vmem:[%s2501 + $0x20] sm:$0xf]
      %v2511 = vld [vmem:[%s2501 + $0x24] sm:$0xf]
      %v2512 = vld [vmem:[%s2501 + $0x28] sm:$0xf]
      %v2513 = vld [vmem:[%s2501 + $0x2c] sm:$0xf]
      %v2514 = vld [vmem:[%s2501 + $0x30] sm:$0xf]
      %v2515 = vld [vmem:[%s2501 + $0x34] sm:$0xf]
      %v2516 = vld [vmem:[%s2501 + $0x38] sm:$0xf]
      %v2517 = vld [vmem:[%s2501 + $0x3c] sm:$0xf]
      %v2534 = vunpack.c.l.b16 %v2502
      %v2535 = vunpack.c.l.b16 %v2503
      %v2536 = vunpack.c.l.b16 %v2504
      %v2537 = vunpack.c.l.b16 %v2505
      %v2538 = vunpack.c.l.b16 %v2506
      %v2539 = vunpack.c.l.b16 %v2507
      %v2540 = vunpack.c.l.b16 %v2508
      %v2541 = vunpack.c.l.b16 %v2509
      %v2542 = vunpack.c.l.b16 %v2510
      %v2543 = vunpack.c.l.b16 %v2511
      %v2544 = vunpack.c.l.b16 %v2512
      %v2545 = vunpack.c.l.b16 %v2513
      %v2546 = vunpack.c.l.b16 %v2514
      %v2547 = vunpack.c.l.b16 %v2515
      %v2548 = vunpack.c.l.b16 %v2516
      %v2549 = vunpack.c.l.b16 %v2517
      %v2550 = vpack.c.b16 %v2535, %v2534
      %v2551 = vpack.c.b16 %v2537, %v2536
      %v2552 = vpack.c.b16 %v2539, %v2538
      %v2553 = vpack.c.b16 %v2541, %v2540
      %v2554 = vpack.c.b16 %v2543, %v2542
      %v2555 = vpack.c.b16 %v2545, %v2544
      %v2556 = vpack.c.b16 %v2547, %v2546
      %v2557 = vpack.c.b16 %v2549, %v2548
      %2566 = vmatprep.subr.bf16.mxu0 0
      %2567 = vmatpush1.bf16.msra.mxu0 %v2557
      %2568 = vmatprep.subr.bf16.mxu0 0
      %2569 = vmatpush1.bf16.msra.mxu0 %v2556
      %2570 = vmatprep.subr.bf16.mxu0 0
      %2571 = vmatpush1.bf16.msra.mxu0 %v2555
      %2572 = vmatprep.subr.bf16.mxu0 0
      %2573 = vmatpush1.bf16.msra.mxu0 %v2554
      %2574 = vmatprep.subr.bf16.mxu0 0
      %2575 = vmatpush1.bf16.msra.mxu0 %v2553
      %2576 = vmatprep.subr.bf16.mxu0 0
      %2577 = vmatpush1.bf16.msra.mxu0 %v2552
      %2578 = vmatprep.subr.bf16.mxu0 0
      %2579 = vmatpush1.bf16.msra.mxu0 %v2551
      %2580 = vmatprep.subr.bf16.mxu0 0
      %2581 = vmatpush1.bf16.msra.mxu0 %v2550
      %2582 = vmatprep.subr.bf16.mxu0 0
      %2583 = vmatpush2.bf16.msra.mxu0 0
      %2584 = vmatprep.subr.bf16.mxu0 0
      %2585 = vmatpush2.bf16.msra.mxu0 0
      %2586 = vmatprep.subr.bf16.mxu0 0
      %2587 = vmatpush2.bf16.msra.mxu0 0
      %2588 = vmatprep.subr.bf16.mxu0 0
      %2589 = vmatpush2.bf16.msra.mxu0 0
      %2590 = vmatprep.subr.bf16.mxu0 0
      %2591 = vmatpush2.bf16.msra.mxu0 0
      %2592 = vmatprep.subr.bf16.mxu0 0
      %2593 = vmatpush2.bf16.msra.mxu0 0
      %2594 = vmatprep.subr.bf16.mxu0 0
      %2595 = vmatpush2.bf16.msra.mxu0 0
      %2596 = vmatprep.subr.bf16.mxu0 0
      %2597 = vmatpush2.bf16.msra.mxu0 0
      %2598 = vmatprep.mubr.bf16.mxu0 0
      %2599 = vmatmul.mubr.bf16.gmra.mxu0 %v2497
      %v2600 = vpop.f32.mrf.mxu0
      %v2601 = vadd.f32 0.0, %v2600
      %v2602 = vpop.f32.mrf.mxu0
      %v2603 = vpop.f32.mrf.mxu0
      %v2604 = vadd.f32 0.0, %v2603
      %v2605 = vpop.f32.mrf.mxu0
      %2606 = vmatprep.mubr.bf16.mxu0 0
      %2607 = vmatmul.mubr.bf16.gmra.mxu0 %v2498
      %v2608 = vpop.f32.mrf.mxu0
      %v2609 = vadd.f32 0.0, %v2608
      %v2610 = vpop.f32.mrf.mxu0
      %v2611 = vpop.f32.mrf.mxu0
      %v2612 = vadd.f32 0.0, %v2611
      %v2613 = vpop.f32.mrf.mxu0
      %2614 = vmatprep.mubr.bf16.mxu0 0
      %2615 = vmatmul.mubr.bf16.gmra.mxu0 %v2499
      %v2616 = vpop.f32.mrf.mxu0
      %v2617 = vadd.f32 0.0, %v2616
      %v2618 = vpop.f32.mrf.mxu0
      %v2619 = vpop.f32.mrf.mxu0
      %v2620 = vadd.f32 0.0, %v2619
      %v2621 = vpop.f32.mrf.mxu0
      %2622 = vmatprep.mubr.bf16.mxu0 0
      %2623 = vmatmul.mubr.bf16.gmra.mxu0 %v2500
      %v2624 = vpop.f32.mrf.mxu0
      %v2625 = vadd.f32 0.0, %v2624
      %v2626 = vpop.f32.mrf.mxu0
      %v2627 = vpop.f32.mrf.mxu0
      %v2628 = vadd.f32 0.0, %v2627
      %v2629 = vpop.f32.mrf.mxu0
      %2630 = vdwg.mxu0
      %v2631 = vadd.f32 %v2459, %v2601
      %v2632 = vadd.f32 %v2462, %v2604
      %v2633 = vadd.f32 %v2467, %v2609
      %v2634 = vadd.f32 %v2470, %v2612
      %v2635 = vadd.f32 %v2475, %v2617
      %v2636 = vadd.f32 %v2478, %v2620
      %v2637 = vadd.f32 %v2483, %v2625
      %v2638 = vadd.f32 %v2486, %v2628
      %v2639 = vld [vmem:[%s616] sm:$0xff]
      %v2640 = vld [vmem:[%s616 + $0x10] sm:$0xff]
      %v2641 = vld [vmem:[%s616 + $0x20] sm:$0xff]
      %v2642 = vld [vmem:[%s616 + $0x30] sm:$0xff]
      %v2643 = vld [vmem:[%s616 + $0x40] sm:$0xff]
      %v2644 = vld [vmem:[%s616 + $0x50] sm:$0xff]
      %v2645 = vld [vmem:[%s616 + $0x60] sm:$0xff]
      %v2646 = vld [vmem:[%s616 + $0x70] sm:$0xff]
      %v2647 = vpack.c.bf16 %v2640, %v2639
      %v2648 = vpack.c.bf16 %v2642, %v2641
      %v2649 = vpack.c.bf16 %v2644, %v2643
      %v2650 = vpack.c.bf16 %v2646, %v2645
      %s2651 = scalar_lea.vmem %s7, 192
      %v2652 = vld [vmem:[%s2651] sm:$0xf]
      %v2653 = vld [vmem:[%s2651 + $0x4] sm:$0xf]
      %v2654 = vld [vmem:[%s2651 + $0x8] sm:$0xf]
      %v2655 = vld [vmem:[%s2651 + $0xc] sm:$0xf]
      %v2656 = vld [vmem:[%s2651 + $0x10] sm:$0xf]
      %v2657 = vld [vmem:[%s2651 + $0x14] sm:$0xf]
      %v2658 = vld [vmem:[%s2651 + $0x18] sm:$0xf]
      %v2659 = vld [vmem:[%s2651 + $0x1c] sm:$0xf]
      %v2660 = vld [vmem:[%s2651 + $0x20] sm:$0xf]
      %v2661 = vld [vmem:[%s2651 + $0x24] sm:$0xf]
      %v2662 = vld [vmem:[%s2651 + $0x28] sm:$0xf]
      %v2663 = vld [vmem:[%s2651 + $0x2c] sm:$0xf]
      %v2664 = vld [vmem:[%s2651 + $0x30] sm:$0xf]
      %v2665 = vld [vmem:[%s2651 + $0x34] sm:$0xf]
      %v2666 = vld [vmem:[%s2651 + $0x38] sm:$0xf]
      %v2667 = vld [vmem:[%s2651 + $0x3c] sm:$0xf]
      %v2684 = vunpack.c.l.b16 %v2652
      %v2685 = vunpack.c.l.b16 %v2653
      %v2686 = vunpack.c.l.b16 %v2654
      %v2687 = vunpack.c.l.b16 %v2655
      %v2688 = vunpack.c.l.b16 %v2656
      %v2689 = vunpack.c.l.b16 %v2657
      %v2690 = vunpack.c.l.b16 %v2658
      %v2691 = vunpack.c.l.b16 %v2659
      %v2692 = vunpack.c.l.b16 %v2660
      %v2693 = vunpack.c.l.b16 %v2661
      %v2694 = vunpack.c.l.b16 %v2662
      %v2695 = vunpack.c.l.b16 %v2663
      %v2696 = vunpack.c.l.b16 %v2664
      %v2697 = vunpack.c.l.b16 %v2665
      %v2698 = vunpack.c.l.b16 %v2666
      %v2699 = vunpack.c.l.b16 %v2667
      %v2700 = vpack.c.b16 %v2685, %v2684
      %v2701 = vpack.c.b16 %v2687, %v2686
      %v2702 = vpack.c.b16 %v2689, %v2688
      %v2703 = vpack.c.b16 %v2691, %v2690
      %v2704 = vpack.c.b16 %v2693, %v2692
      %v2705 = vpack.c.b16 %v2695, %v2694
      %v2706 = vpack.c.b16 %v2697, %v2696
      %v2707 = vpack.c.b16 %v2699, %v2698
      %2716 = vmatprep.subr.bf16.mxu0 0
      %2717 = vmatpush1.bf16.msra.mxu0 %v2707
      %2718 = vmatprep.subr.bf16.mxu0 0
      %2719 = vmatpush1.bf16.msra.mxu0 %v2706
      %2720 = vmatprep.subr.bf16.mxu0 0
      %2721 = vmatpush1.bf16.msra.mxu0 %v2705
      %2722 = vmatprep.subr.bf16.mxu0 0
      %2723 = vmatpush1.bf16.msra.mxu0 %v2704
      %2724 = vmatprep.subr.bf16.mxu0 0
      %2725 = vmatpush1.bf16.msra.mxu0 %v2703
      %2726 = vmatprep.subr.bf16.mxu0 0
      %2727 = vmatpush1.bf16.msra.mxu0 %v2702
      %2728 = vmatprep.subr.bf16.mxu0 0
      %2729 = vmatpush1.bf16.msra.mxu0 %v2701
      %2730 = vmatprep.subr.bf16.mxu0 0
      %2731 = vmatpush1.bf16.msra.mxu0 %v2700
      %2732 = vmatprep.subr.bf16.mxu0 0
      %2733 = vmatpush2.bf16.msra.mxu0 0
      %2734 = vmatprep.subr.bf16.mxu0 0
      %2735 = vmatpush2.bf16.msra.mxu0 0
      %2736 = vmatprep.subr.bf16.mxu0 0
      %2737 = vmatpush2.bf16.msra.mxu0 0
      %2738 = vmatprep.subr.bf16.mxu0 0
      %2739 = vmatpush2.bf16.msra.mxu0 0
      %2740 = vmatprep.subr.bf16.mxu0 0
      %2741 = vmatpush2.bf16.msra.mxu0 0
      %2742 = vmatprep.subr.bf16.mxu0 0
      %2743 = vmatpush2.bf16.msra.mxu0 0
      %2744 = vmatprep.subr.bf16.mxu0 0
      %2745 = vmatpush2.bf16.msra.mxu0 0
      %2746 = vmatprep.subr.bf16.mxu0 0
      %2747 = vmatpush2.bf16.msra.mxu0 0
      %2748 = vmatprep.mubr.bf16.mxu0 0
      %2749 = vmatmul.mubr.bf16.gmra.mxu0 %v2647
      %v2750 = vpop.f32.mrf.mxu0
      %v2751 = vadd.f32 0.0, %v2750
      %v2752 = vpop.f32.mrf.mxu0
      %v2753 = vpop.f32.mrf.mxu0
      %v2754 = vadd.f32 0.0, %v2753
      %v2755 = vpop.f32.mrf.mxu0
      %2756 = vmatprep.mubr.bf16.mxu0 0
      %2757 = vmatmul.mubr.bf16.gmra.mxu0 %v2648
      %v2758 = vpop.f32.mrf.mxu0
      %v2759 = vadd.f32 0.0, %v2758
      %v2760 = vpop.f32.mrf.mxu0
      %v2761 = vpop.f32.mrf.mxu0
      %v2762 = vadd.f32 0.0, %v2761
      %v2763 = vpop.f32.mrf.mxu0
      %2764 = vmatprep.mubr.bf16.mxu0 0
      %2765 = vmatmul.mubr.bf16.gmra.mxu0 %v2649
      %v2766 = vpop.f32.mrf.mxu0
      %v2767 = vadd.f32 0.0, %v2766
      %v2768 = vpop.f32.mrf.mxu0
      %v2769 = vpop.f32.mrf.mxu0
      %v2770 = vadd.f32 0.0, %v2769
      %v2771 = vpop.f32.mrf.mxu0
      %2772 = vmatprep.mubr.bf16.mxu0 0
      %2773 = vmatmul.mubr.bf16.gmra.mxu0 %v2650
      %v2774 = vpop.f32.mrf.mxu0
      %v2775 = vadd.f32 0.0, %v2774
      %v2776 = vpop.f32.mrf.mxu0
      %v2777 = vpop.f32.mrf.mxu0
      %v2778 = vadd.f32 0.0, %v2777
      %v2779 = vpop.f32.mrf.mxu0
      %2780 = vdwg.mxu0
      %v2781 = vadd.f32 %v2631, %v2751
      %v2782 = vadd.f32 %v2632, %v2754
      %v2783 = vadd.f32 %v2633, %v2759
      %v2784 = vadd.f32 %v2634, %v2762
      %v2785 = vadd.f32 %v2635, %v2767
      %v2786 = vadd.f32 %v2636, %v2770
      %v2787 = vadd.f32 %v2637, %v2775
      %v2788 = vadd.f32 %v2638, %v2778
      %v2789 = vld [vmem:[%s616 + $0x1] sm:$0xff]
      %v2790 = vld [vmem:[%s616 + $0x11] sm:$0xff]
      %v2791 = vld [vmem:[%s616 + $0x21] sm:$0xff]
      %v2792 = vld [vmem:[%s616 + $0x31] sm:$0xff]
      %v2793 = vld [vmem:[%s616 + $0x41] sm:$0xff]
      %v2794 = vld [vmem:[%s616 + $0x51] sm:$0xff]
      %v2795 = vld [vmem:[%s616 + $0x61] sm:$0xff]
      %v2796 = vld [vmem:[%s616 + $0x71] sm:$0xff]
      %v2797 = vpack.c.bf16 %v2790, %v2789
      %v2798 = vpack.c.bf16 %v2792, %v2791
      %v2799 = vpack.c.bf16 %v2794, %v2793
      %v2800 = vpack.c.bf16 %v2796, %v2795
      %s2801 = scalar_lea.vmem %s7, 256
      %v2802 = vld [vmem:[%s2801] sm:$0xf]
      %v2803 = vld [vmem:[%s2801 + $0x4] sm:$0xf]
      %v2804 = vld [vmem:[%s2801 + $0x8] sm:$0xf]
      %v2805 = vld [vmem:[%s2801 + $0xc] sm:$0xf]
      %v2806 = vld [vmem:[%s2801 + $0x10] sm:$0xf]
      %v2807 = vld [vmem:[%s2801 + $0x14] sm:$0xf]
      %v2808 = vld [vmem:[%s2801 + $0x18] sm:$0xf]
      %v2809 = vld [vmem:[%s2801 + $0x1c] sm:$0xf]
      %v2810 = vld [vmem:[%s2801 + $0x20] sm:$0xf]
      %v2811 = vld [vmem:[%s2801 + $0x24] sm:$0xf]
      %v2812 = vld [vmem:[%s2801 + $0x28] sm:$0xf]
      %v2813 = vld [vmem:[%s2801 + $0x2c] sm:$0xf]
      %v2814 = vld [vmem:[%s2801 + $0x30] sm:$0xf]
      %v2815 = vld [vmem:[%s2801 + $0x34] sm:$0xf]
      %v2816 = vld [vmem:[%s2801 + $0x38] sm:$0xf]
      %v2817 = vld [vmem:[%s2801 + $0x3c] sm:$0xf]
      %v2834 = vunpack.c.l.b16 %v2802
      %v2835 = vunpack.c.l.b16 %v2803
      %v2836 = vunpack.c.l.b16 %v2804
      %v2837 = vunpack.c.l.b16 %v2805
      %v2838 = vunpack.c.l.b16 %v2806
      %v2839 = vunpack.c.l.b16 %v2807
      %v2840 = vunpack.c.l.b16 %v2808
      %v2841 = vunpack.c.l.b16 %v2809
      %v2842 = vunpack.c.l.b16 %v2810
      %v2843 = vunpack.c.l.b16 %v2811
      %v2844 = vunpack.c.l.b16 %v2812
      %v2845 = vunpack.c.l.b16 %v2813
      %v2846 = vunpack.c.l.b16 %v2814
      %v2847 = vunpack.c.l.b16 %v2815
      %v2848 = vunpack.c.l.b16 %v2816
      %v2849 = vunpack.c.l.b16 %v2817
      %v2850 = vpack.c.b16 %v2835, %v2834
      %v2851 = vpack.c.b16 %v2837, %v2836
      %v2852 = vpack.c.b16 %v2839, %v2838
      %v2853 = vpack.c.b16 %v2841, %v2840
      %v2854 = vpack.c.b16 %v2843, %v2842
      %v2855 = vpack.c.b16 %v2845, %v2844
      %v2856 = vpack.c.b16 %v2847, %v2846
      %v2857 = vpack.c.b16 %v2849, %v2848
      %2866 = vmatprep.subr.bf16.mxu0 0
      %2867 = vmatpush1.bf16.msra.mxu0 %v2857
      %2868 = vmatprep.subr.bf16.mxu0 0
      %2869 = vmatpush1.bf16.msra.mxu0 %v2856
      %2870 = vmatprep.subr.bf16.mxu0 0
      %2871 = vmatpush1.bf16.msra.mxu0 %v2855
      %2872 = vmatprep.subr.bf16.mxu0 0
      %2873 = vmatpush1.bf16.msra.mxu0 %v2854
      %2874 = vmatprep.subr.bf16.mxu0 0
      %2875 = vmatpush1.bf16.msra.mxu0 %v2853
      %2876 = vmatprep.subr.bf16.mxu0 0
      %2877 = vmatpush1.bf16.msra.mxu0 %v2852
      %2878 = vmatprep.subr.bf16.mxu0 0
      %2879 = vmatpush1.bf16.msra.mxu0 %v2851
      %2880 = vmatprep.subr.bf16.mxu0 0
      %2881 = vmatpush1.bf16.msra.mxu0 %v2850
      %2882 = vmatprep.subr.bf16.mxu0 0
      %2883 = vmatpush2.bf16.msra.mxu0 0
      %2884 = vmatprep.subr.bf16.mxu0 0
      %2885 = vmatpush2.bf16.msra.mxu0 0
      %2886 = vmatprep.subr.bf16.mxu0 0
      %2887 = vmatpush2.bf16.msra.mxu0 0
      %2888 = vmatprep.subr.bf16.mxu0 0
      %2889 = vmatpush2.bf16.msra.mxu0 0
      %2890 = vmatprep.subr.bf16.mxu0 0
      %2891 = vmatpush2.bf16.msra.mxu0 0
      %2892 = vmatprep.subr.bf16.mxu0 0
      %2893 = vmatpush2.bf16.msra.mxu0 0
      %2894 = vmatprep.subr.bf16.mxu0 0
      %2895 = vmatpush2.bf16.msra.mxu0 0
      %2896 = vmatprep.subr.bf16.mxu0 0
      %2897 = vmatpush2.bf16.msra.mxu0 0
      %2898 = vmatprep.mubr.bf16.mxu0 0
      %2899 = vmatmul.mubr.bf16.gmra.mxu0 %v2797
      %v2900 = vpop.f32.mrf.mxu0
      %v2901 = vadd.f32 0.0, %v2900
      %v2902 = vpop.f32.mrf.mxu0
      %v2903 = vpop.f32.mrf.mxu0
      %v2904 = vadd.f32 0.0, %v2903
      %v2905 = vpop.f32.mrf.mxu0
      %2906 = vmatprep.mubr.bf16.mxu0 0
      %2907 = vmatmul.mubr.bf16.gmra.mxu0 %v2798
      %v2908 = vpop.f32.mrf.mxu0
      %v2909 = vadd.f32 0.0, %v2908
      %v2910 = vpop.f32.mrf.mxu0
      %v2911 = vpop.f32.mrf.mxu0
      %v2912 = vadd.f32 0.0, %v2911
      %v2913 = vpop.f32.mrf.mxu0
      %2914 = vmatprep.mubr.bf16.mxu0 0
      %2915 = vmatmul.mubr.bf16.gmra.mxu0 %v2799
      %v2916 = vpop.f32.mrf.mxu0
      %v2917 = vadd.f32 0.0, %v2916
      %v2918 = vpop.f32.mrf.mxu0
      %v2919 = vpop.f32.mrf.mxu0
      %v2920 = vadd.f32 0.0, %v2919
      %v2921 = vpop.f32.mrf.mxu0
      %2922 = vmatprep.mubr.bf16.mxu0 0
      %2923 = vmatmul.mubr.bf16.gmra.mxu0 %v2800
      %v2924 = vpop.f32.mrf.mxu0
      %v2925 = vadd.f32 0.0, %v2924
      %v2926 = vpop.f32.mrf.mxu0
      %v2927 = vpop.f32.mrf.mxu0
      %v2928 = vadd.f32 0.0, %v2927
      %v2929 = vpop.f32.mrf.mxu0
      %2930 = vdwg.mxu0
      %v2931 = vadd.f32 %v2781, %v2901
      %v2932 = vadd.f32 %v2782, %v2904
      %v2933 = vadd.f32 %v2783, %v2909
      %v2934 = vadd.f32 %v2784, %v2912
      %v2935 = vadd.f32 %v2785, %v2917
      %v2936 = vadd.f32 %v2786, %v2920
      %v2937 = vadd.f32 %v2787, %v2925
      %v2938 = vadd.f32 %v2788, %v2928
      %v2939 = vld [vmem:[%s616 + $0x2] sm:$0xff]
      %v2940 = vld [vmem:[%s616 + $0x12] sm:$0xff]
      %v2941 = vld [vmem:[%s616 + $0x22] sm:$0xff]
      %v2942 = vld [vmem:[%s616 + $0x32] sm:$0xff]
      %v2943 = vld [vmem:[%s616 + $0x42] sm:$0xff]
      %v2944 = vld [vmem:[%s616 + $0x52] sm:$0xff]
      %v2945 = vld [vmem:[%s616 + $0x62] sm:$0xff]
      %v2946 = vld [vmem:[%s616 + $0x72] sm:$0xff]
      %v2947 = vpack.c.bf16 %v2940, %v2939
      %v2948 = vpack.c.bf16 %v2942, %v2941
      %v2949 = vpack.c.bf16 %v2944, %v2943
      %v2950 = vpack.c.bf16 %v2946, %v2945
      %s2951 = scalar_lea.vmem %s7, 320
      %v2952 = vld [vmem:[%s2951] sm:$0xf]
      %v2953 = vld [vmem:[%s2951 + $0x4] sm:$0xf]
      %v2954 = vld [vmem:[%s2951 + $0x8] sm:$0xf]
      %v2955 = vld [vmem:[%s2951 + $0xc] sm:$0xf]
      %v2956 = vld [vmem:[%s2951 + $0x10] sm:$0xf]
      %v2957 = vld [vmem:[%s2951 + $0x14] sm:$0xf]
      %v2958 = vld [vmem:[%s2951 + $0x18] sm:$0xf]
      %v2959 = vld [vmem:[%s2951 + $0x1c] sm:$0xf]
      %v2960 = vld [vmem:[%s2951 + $0x20] sm:$0xf]
      %v2961 = vld [vmem:[%s2951 + $0x24] sm:$0xf]
      %v2962 = vld [vmem:[%s2951 + $0x28] sm:$0xf]
      %v2963 = vld [vmem:[%s2951 + $0x2c] sm:$0xf]
      %v2964 = vld [vmem:[%s2951 + $0x30] sm:$0xf]
      %v2965 = vld [vmem:[%s2951 + $0x34] sm:$0xf]
      %v2966 = vld [vmem:[%s2951 + $0x38] sm:$0xf]
      %v2967 = vld [vmem:[%s2951 + $0x3c] sm:$0xf]
      %v2984 = vunpack.c.l.b16 %v2952
      %v2985 = vunpack.c.l.b16 %v2953
      %v2986 = vunpack.c.l.b16 %v2954
      %v2987 = vunpack.c.l.b16 %v2955
      %v2988 = vunpack.c.l.b16 %v2956
      %v2989 = vunpack.c.l.b16 %v2957
      %v2990 = vunpack.c.l.b16 %v2958
      %v2991 = vunpack.c.l.b16 %v2959
      %v2992 = vunpack.c.l.b16 %v2960
      %v2993 = vunpack.c.l.b16 %v2961
      %v2994 = vunpack.c.l.b16 %v2962
      %v2995 = vunpack.c.l.b16 %v2963
      %v2996 = vunpack.c.l.b16 %v2964
      %v2997 = vunpack.c.l.b16 %v2965
      %v2998 = vunpack.c.l.b16 %v2966
      %v2999 = vunpack.c.l.b16 %v2967
      %v3000 = vpack.c.b16 %v2985, %v2984
      %v3001 = vpack.c.b16 %v2987, %v2986
      %v3002 = vpack.c.b16 %v2989, %v2988
      %v3003 = vpack.c.b16 %v2991, %v2990
      %v3004 = vpack.c.b16 %v2993, %v2992
      %v3005 = vpack.c.b16 %v2995, %v2994
      %v3006 = vpack.c.b16 %v2997, %v2996
      %v3007 = vpack.c.b16 %v2999, %v2998
      %3016 = vmatprep.subr.bf16.mxu0 0
      %3017 = vmatpush1.bf16.msra.mxu0 %v3007
      %3018 = vmatprep.subr.bf16.mxu0 0
      %3019 = vmatpush1.bf16.msra.mxu0 %v3006
      %3020 = vmatprep.subr.bf16.mxu0 0
      %3021 = vmatpush1.bf16.msra.mxu0 %v3005
      %3022 = vmatprep.subr.bf16.mxu0 0
      %3023 = vmatpush1.bf16.msra.mxu0 %v3004
      %3024 = vmatprep.subr.bf16.mxu0 0
      %3025 = vmatpush1.bf16.msra.mxu0 %v3003
      %3026 = vmatprep.subr.bf16.mxu0 0
      %3027 = vmatpush1.bf16.msra.mxu0 %v3002
      %3028 = vmatprep.subr.bf16.mxu0 0
      %3029 = vmatpush1.bf16.msra.mxu0 %v3001
      %3030 = vmatprep.subr.bf16.mxu0 0
      %3031 = vmatpush1.bf16.msra.mxu0 %v3000
      %3032 = vmatprep.subr.bf16.mxu0 0
      %3033 = vmatpush2.bf16.msra.mxu0 0
      %3034 = vmatprep.subr.bf16.mxu0 0
      %3035 = vmatpush2.bf16.msra.mxu0 0
      %3036 = vmatprep.subr.bf16.mxu0 0
      %3037 = vmatpush2.bf16.msra.mxu0 0
      %3038 = vmatprep.subr.bf16.mxu0 0
      %3039 = vmatpush2.bf16.msra.mxu0 0
      %3040 = vmatprep.subr.bf16.mxu0 0
      %3041 = vmatpush2.bf16.msra.mxu0 0
      %3042 = vmatprep.subr.bf16.mxu0 0
      %3043 = vmatpush2.bf16.msra.mxu0 0
      %3044 = vmatprep.subr.bf16.mxu0 0
      %3045 = vmatpush2.bf16.msra.mxu0 0
      %3046 = vmatprep.subr.bf16.mxu0 0
      %3047 = vmatpush2.bf16.msra.mxu0 0
      %3048 = vmatprep.mubr.bf16.mxu0 0
      %3049 = vmatmul.mubr.bf16.gmra.mxu0 %v2947
      %v3050 = vpop.f32.mrf.mxu0
      %v3051 = vadd.f32 0.0, %v3050
      %v3052 = vpop.f32.mrf.mxu0
      %v3053 = vpop.f32.mrf.mxu0
      %v3054 = vadd.f32 0.0, %v3053
      %v3055 = vpop.f32.mrf.mxu0
      %3056 = vmatprep.mubr.bf16.mxu0 0
      %3057 = vmatmul.mubr.bf16.gmra.mxu0 %v2948
      %v3058 = vpop.f32.mrf.mxu0
      %v3059 = vadd.f32 0.0, %v3058
      %v3060 = vpop.f32.mrf.mxu0
      %v3061 = vpop.f32.mrf.mxu0
      %v3062 = vadd.f32 0.0, %v3061
      %v3063 = vpop.f32.mrf.mxu0
      %3064 = vmatprep.mubr.bf16.mxu0 0
      %3065 = vmatmul.mubr.bf16.gmra.mxu0 %v2949
      %v3066 = vpop.f32.mrf.mxu0
      %v3067 = vadd.f32 0.0, %v3066
      %v3068 = vpop.f32.mrf.mxu0
      %v3069 = vpop.f32.mrf.mxu0
      %v3070 = vadd.f32 0.0, %v3069
      %v3071 = vpop.f32.mrf.mxu0
      %3072 = vmatprep.mubr.bf16.mxu0 0
      %3073 = vmatmul.mubr.bf16.gmra.mxu0 %v2950
      %v3074 = vpop.f32.mrf.mxu0
      %v3075 = vadd.f32 0.0, %v3074
      %v3076 = vpop.f32.mrf.mxu0
      %v3077 = vpop.f32.mrf.mxu0
      %v3078 = vadd.f32 0.0, %v3077
      %v3079 = vpop.f32.mrf.mxu0
      %3080 = vdwg.mxu0
      %v3081 = vadd.f32 %v2931, %v3051
      %v3082 = vadd.f32 %v2932, %v3054
      %v3083 = vadd.f32 %v2933, %v3059
      %v3084 = vadd.f32 %v2934, %v3062
      %v3085 = vadd.f32 %v2935, %v3067
      %v3086 = vadd.f32 %v2936, %v3070
      %v3087 = vadd.f32 %v2937, %v3075
      %v3088 = vadd.f32 %v2938, %v3078
      %v3089 = vld [vmem:[%s618] sm:$0xff]
      %v3090 = vld [vmem:[%s618 + $0x10] sm:$0xff]
      %v3091 = vld [vmem:[%s618 + $0x20] sm:$0xff]
      %v3092 = vld [vmem:[%s618 + $0x30] sm:$0xff]
      %v3093 = vld [vmem:[%s618 + $0x40] sm:$0xff]
      %v3094 = vld [vmem:[%s618 + $0x50] sm:$0xff]
      %v3095 = vld [vmem:[%s618 + $0x60] sm:$0xff]
      %v3096 = vld [vmem:[%s618 + $0x70] sm:$0xff]
      %v3097 = vpack.c.bf16 %v3090, %v3089
      %v3098 = vpack.c.bf16 %v3092, %v3091
      %v3099 = vpack.c.bf16 %v3094, %v3093
      %v3100 = vpack.c.bf16 %v3096, %v3095
      %s3101 = scalar_lea.vmem %s7, 384
      %v3102 = vld [vmem:[%s3101] sm:$0xf]
      %v3103 = vld [vmem:[%s3101 + $0x4] sm:$0xf]
      %v3104 = vld [vmem:[%s3101 + $0x8] sm:$0xf]
      %v3105 = vld [vmem:[%s3101 + $0xc] sm:$0xf]
      %v3106 = vld [vmem:[%s3101 + $0x10] sm:$0xf]
      %v3107 = vld [vmem:[%s3101 + $0x14] sm:$0xf]
      %v3108 = vld [vmem:[%s3101 + $0x18] sm:$0xf]
      %v3109 = vld [vmem:[%s3101 + $0x1c] sm:$0xf]
      %v3110 = vld [vmem:[%s3101 + $0x20] sm:$0xf]
      %v3111 = vld [vmem:[%s3101 + $0x24] sm:$0xf]
      %v3112 = vld [vmem:[%s3101 + $0x28] sm:$0xf]
      %v3113 = vld [vmem:[%s3101 + $0x2c] sm:$0xf]
      %v3114 = vld [vmem:[%s3101 + $0x30] sm:$0xf]
      %v3115 = vld [vmem:[%s3101 + $0x34] sm:$0xf]
      %v3116 = vld [vmem:[%s3101 + $0x38] sm:$0xf]
      %v3117 = vld [vmem:[%s3101 + $0x3c] sm:$0xf]
      %v3134 = vunpack.c.l.b16 %v3102
      %v3135 = vunpack.c.l.b16 %v3103
      %v3136 = vunpack.c.l.b16 %v3104
      %v3137 = vunpack.c.l.b16 %v3105
      %v3138 = vunpack.c.l.b16 %v3106
      %v3139 = vunpack.c.l.b16 %v3107
      %v3140 = vunpack.c.l.b16 %v3108
      %v3141 = vunpack.c.l.b16 %v3109
      %v3142 = vunpack.c.l.b16 %v3110
      %v3143 = vunpack.c.l.b16 %v3111
      %v3144 = vunpack.c.l.b16 %v3112
      %v3145 = vunpack.c.l.b16 %v3113
      %v3146 = vunpack.c.l.b16 %v3114
      %v3147 = vunpack.c.l.b16 %v3115
      %v3148 = vunpack.c.l.b16 %v3116
      %v3149 = vunpack.c.l.b16 %v3117
      %v3150 = vpack.c.b16 %v3135, %v3134
      %v3151 = vpack.c.b16 %v3137, %v3136
      %v3152 = vpack.c.b16 %v3139, %v3138
      %v3153 = vpack.c.b16 %v3141, %v3140
      %v3154 = vpack.c.b16 %v3143, %v3142
      %v3155 = vpack.c.b16 %v3145, %v3144
      %v3156 = vpack.c.b16 %v3147, %v3146
      %v3157 = vpack.c.b16 %v3149, %v3148
      %3166 = vmatprep.subr.bf16.mxu0 0
      %3167 = vmatpush1.bf16.msra.mxu0 %v3157
      %3168 = vmatprep.subr.bf16.mxu0 0
      %3169 = vmatpush1.bf16.msra.mxu0 %v3156
      %3170 = vmatprep.subr.bf16.mxu0 0
      %3171 = vmatpush1.bf16.msra.mxu0 %v3155
      %3172 = vmatprep.subr.bf16.mxu0 0
      %3173 = vmatpush1.bf16.msra.mxu0 %v3154
      %3174 = vmatprep.subr.bf16.mxu0 0
      %3175 = vmatpush1.bf16.msra.mxu0 %v3153
      %3176 = vmatprep.subr.bf16.mxu0 0
      %3177 = vmatpush1.bf16.msra.mxu0 %v3152
      %3178 = vmatprep.subr.bf16.mxu0 0
      %3179 = vmatpush1.bf16.msra.mxu0 %v3151
      %3180 = vmatprep.subr.bf16.mxu0 0
      %3181 = vmatpush1.bf16.msra.mxu0 %v3150
      %3182 = vmatprep.subr.bf16.mxu0 0
      %3183 = vmatpush2.bf16.msra.mxu0 0
      %3184 = vmatprep.subr.bf16.mxu0 0
      %3185 = vmatpush2.bf16.msra.mxu0 0
      %3186 = vmatprep.subr.bf16.mxu0 0
      %3187 = vmatpush2.bf16.msra.mxu0 0
      %3188 = vmatprep.subr.bf16.mxu0 0
      %3189 = vmatpush2.bf16.msra.mxu0 0
      %3190 = vmatprep.subr.bf16.mxu0 0
      %3191 = vmatpush2.bf16.msra.mxu0 0
      %3192 = vmatprep.subr.bf16.mxu0 0
      %3193 = vmatpush2.bf16.msra.mxu0 0
      %3194 = vmatprep.subr.bf16.mxu0 0
      %3195 = vmatpush2.bf16.msra.mxu0 0
      %3196 = vmatprep.subr.bf16.mxu0 0
      %3197 = vmatpush2.bf16.msra.mxu0 0
      %3198 = vmatprep.mubr.bf16.mxu0 0
      %3199 = vmatmul.mubr.bf16.gmra.mxu0 %v3097
      %v3200 = vpop.f32.mrf.mxu0
      %v3201 = vadd.f32 0.0, %v3200
      %v3202 = vpop.f32.mrf.mxu0
      %v3203 = vpop.f32.mrf.mxu0
      %v3204 = vadd.f32 0.0, %v3203
      %v3205 = vpop.f32.mrf.mxu0
      %3206 = vmatprep.mubr.bf16.mxu0 0
      %3207 = vmatmul.mubr.bf16.gmra.mxu0 %v3098
      %v3208 = vpop.f32.mrf.mxu0
      %v3209 = vadd.f32 0.0, %v3208
      %v3210 = vpop.f32.mrf.mxu0
      %v3211 = vpop.f32.mrf.mxu0
      %v3212 = vadd.f32 0.0, %v3211
      %v3213 = vpop.f32.mrf.mxu0
      %3214 = vmatprep.mubr.bf16.mxu0 0
      %3215 = vmatmul.mubr.bf16.gmra.mxu0 %v3099
      %v3216 = vpop.f32.mrf.mxu0
      %v3217 = vadd.f32 0.0, %v3216
      %v3218 = vpop.f32.mrf.mxu0
      %v3219 = vpop.f32.mrf.mxu0
      %v3220 = vadd.f32 0.0, %v3219
      %v3221 = vpop.f32.mrf.mxu0
      %3222 = vmatprep.mubr.bf16.mxu0 0
      %3223 = vmatmul.mubr.bf16.gmra.mxu0 %v3100
      %v3224 = vpop.f32.mrf.mxu0
      %v3225 = vadd.f32 0.0, %v3224
      %v3226 = vpop.f32.mrf.mxu0
      %v3227 = vpop.f32.mrf.mxu0
      %v3228 = vadd.f32 0.0, %v3227
      %v3229 = vpop.f32.mrf.mxu0
      %3230 = vdwg.mxu0
      %v3231 = vadd.f32 %v3081, %v3201
      %v3232 = vadd.f32 %v3082, %v3204
      %v3233 = vadd.f32 %v3083, %v3209
      %v3234 = vadd.f32 %v3084, %v3212
      %v3235 = vadd.f32 %v3085, %v3217
      %v3236 = vadd.f32 %v3086, %v3220
      %v3237 = vadd.f32 %v3087, %v3225
      %v3238 = vadd.f32 %v3088, %v3228
      %v3239 = vld [vmem:[%s618 + $0x1] sm:$0xff]
      %v3240 = vld [vmem:[%s618 + $0x11] sm:$0xff]
      %v3241 = vld [vmem:[%s618 + $0x21] sm:$0xff]
      %v3242 = vld [vmem:[%s618 + $0x31] sm:$0xff]
      %v3243 = vld [vmem:[%s618 + $0x41] sm:$0xff]
      %v3244 = vld [vmem:[%s618 + $0x51] sm:$0xff]
      %v3245 = vld [vmem:[%s618 + $0x61] sm:$0xff]
      %v3246 = vld [vmem:[%s618 + $0x71] sm:$0xff]
      %v3247 = vpack.c.bf16 %v3240, %v3239
      %v3248 = vpack.c.bf16 %v3242, %v3241
      %v3249 = vpack.c.bf16 %v3244, %v3243
      %v3250 = vpack.c.bf16 %v3246, %v3245
      %s3251 = scalar_lea.vmem %s7, 448
      %v3252 = vld [vmem:[%s3251] sm:$0xf]
      %v3253 = vld [vmem:[%s3251 + $0x4] sm:$0xf]
      %v3254 = vld [vmem:[%s3251 + $0x8] sm:$0xf]
      %v3255 = vld [vmem:[%s3251 + $0xc] sm:$0xf]
      %v3256 = vld [vmem:[%s3251 + $0x10] sm:$0xf]
      %v3257 = vld [vmem:[%s3251 + $0x14] sm:$0xf]
      %v3258 = vld [vmem:[%s3251 + $0x18] sm:$0xf]
      %v3259 = vld [vmem:[%s3251 + $0x1c] sm:$0xf]
      %v3260 = vld [vmem:[%s3251 + $0x20] sm:$0xf]
      %v3261 = vld [vmem:[%s3251 + $0x24] sm:$0xf]
      %v3262 = vld [vmem:[%s3251 + $0x28] sm:$0xf]
      %v3263 = vld [vmem:[%s3251 + $0x2c] sm:$0xf]
      %v3264 = vld [vmem:[%s3251 + $0x30] sm:$0xf]
      %v3265 = vld [vmem:[%s3251 + $0x34] sm:$0xf]
      %v3266 = vld [vmem:[%s3251 + $0x38] sm:$0xf]
      %v3267 = vld [vmem:[%s3251 + $0x3c] sm:$0xf]
      %v3284 = vunpack.c.l.b16 %v3252
      %v3285 = vunpack.c.l.b16 %v3253
      %v3286 = vunpack.c.l.b16 %v3254
      %v3287 = vunpack.c.l.b16 %v3255
      %v3288 = vunpack.c.l.b16 %v3256
      %v3289 = vunpack.c.l.b16 %v3257
      %v3290 = vunpack.c.l.b16 %v3258
      %v3291 = vunpack.c.l.b16 %v3259
      %v3292 = vunpack.c.l.b16 %v3260
      %v3293 = vunpack.c.l.b16 %v3261
      %v3294 = vunpack.c.l.b16 %v3262
      %v3295 = vunpack.c.l.b16 %v3263
      %v3296 = vunpack.c.l.b16 %v3264
      %v3297 = vunpack.c.l.b16 %v3265
      %v3298 = vunpack.c.l.b16 %v3266
      %v3299 = vunpack.c.l.b16 %v3267
      %v3300 = vpack.c.b16 %v3285, %v3284
      %v3301 = vpack.c.b16 %v3287, %v3286
      %v3302 = vpack.c.b16 %v3289, %v3288
      %v3303 = vpack.c.b16 %v3291, %v3290
      %v3304 = vpack.c.b16 %v3293, %v3292
      %v3305 = vpack.c.b16 %v3295, %v3294
      %v3306 = vpack.c.b16 %v3297, %v3296
      %v3307 = vpack.c.b16 %v3299, %v3298
      %3316 = vmatprep.subr.bf16.mxu0 0
      %3317 = vmatpush1.bf16.msra.mxu0 %v3307
      %3318 = vmatprep.subr.bf16.mxu0 0
      %3319 = vmatpush1.bf16.msra.mxu0 %v3306
      %3320 = vmatprep.subr.bf16.mxu0 0
      %3321 = vmatpush1.bf16.msra.mxu0 %v3305
      %3322 = vmatprep.subr.bf16.mxu0 0
      %3323 = vmatpush1.bf16.msra.mxu0 %v3304
      %3324 = vmatprep.subr.bf16.mxu0 0
      %3325 = vmatpush1.bf16.msra.mxu0 %v3303
      %3326 = vmatprep.subr.bf16.mxu0 0
      %3327 = vmatpush1.bf16.msra.mxu0 %v3302
      %3328 = vmatprep.subr.bf16.mxu0 0
      %3329 = vmatpush1.bf16.msra.mxu0 %v3301
      %3330 = vmatprep.subr.bf16.mxu0 0
      %3331 = vmatpush1.bf16.msra.mxu0 %v3300
      %3332 = vmatprep.subr.bf16.mxu0 0
      %3333 = vmatpush2.bf16.msra.mxu0 0
      %3334 = vmatprep.subr.bf16.mxu0 0
      %3335 = vmatpush2.bf16.msra.mxu0 0
      %3336 = vmatprep.subr.bf16.mxu0 0
      %3337 = vmatpush2.bf16.msra.mxu0 0
      %3338 = vmatprep.subr.bf16.mxu0 0
      %3339 = vmatpush2.bf16.msra.mxu0 0
      %3340 = vmatprep.subr.bf16.mxu0 0
      %3341 = vmatpush2.bf16.msra.mxu0 0
      %3342 = vmatprep.subr.bf16.mxu0 0
      %3343 = vmatpush2.bf16.msra.mxu0 0
      %3344 = vmatprep.subr.bf16.mxu0 0
      %3345 = vmatpush2.bf16.msra.mxu0 0
      %3346 = vmatprep.subr.bf16.mxu0 0
      %3347 = vmatpush2.bf16.msra.mxu0 0
      %3348 = vmatprep.mubr.bf16.mxu0 0
      %3349 = vmatmul.mubr.bf16.gmra.mxu0 %v3247
      %v3350 = vpop.f32.mrf.mxu0
      %v3351 = vadd.f32 0.0, %v3350
      %v3352 = vpop.f32.mrf.mxu0
      %v3353 = vpop.f32.mrf.mxu0
      %v3354 = vadd.f32 0.0, %v3353
      %v3355 = vpop.f32.mrf.mxu0
      %3356 = vmatprep.mubr.bf16.mxu0 0
      %3357 = vmatmul.mubr.bf16.gmra.mxu0 %v3248
      %v3358 = vpop.f32.mrf.mxu0
      %v3359 = vadd.f32 0.0, %v3358
      %v3360 = vpop.f32.mrf.mxu0
      %v3361 = vpop.f32.mrf.mxu0
      %v3362 = vadd.f32 0.0, %v3361
      %v3363 = vpop.f32.mrf.mxu0
      %3364 = vmatprep.mubr.bf16.mxu0 0
      %3365 = vmatmul.mubr.bf16.gmra.mxu0 %v3249
      %v3366 = vpop.f32.mrf.mxu0
      %v3367 = vadd.f32 0.0, %v3366
      %v3368 = vpop.f32.mrf.mxu0
      %v3369 = vpop.f32.mrf.mxu0
      %v3370 = vadd.f32 0.0, %v3369
      %v3371 = vpop.f32.mrf.mxu0
      %3372 = vmatprep.mubr.bf16.mxu0 0
      %3373 = vmatmul.mubr.bf16.gmra.mxu0 %v3250
      %v3374 = vpop.f32.mrf.mxu0
      %v3375 = vadd.f32 0.0, %v3374
      %v3376 = vpop.f32.mrf.mxu0
      %v3377 = vpop.f32.mrf.mxu0
      %v3378 = vadd.f32 0.0, %v3377
      %v3379 = vpop.f32.mrf.mxu0
      %3380 = vdwg.mxu0
      %v3381 = vadd.f32 %v3231, %v3351
      %v3382 = vadd.f32 %v3232, %v3354
      %v3383 = vadd.f32 %v3233, %v3359
      %v3384 = vadd.f32 %v3234, %v3362
      %v3385 = vadd.f32 %v3235, %v3367
      %v3386 = vadd.f32 %v3236, %v3370
      %v3387 = vadd.f32 %v3237, %v3375
      %v3388 = vadd.f32 %v3238, %v3378
      %v3389 = vld [vmem:[%s618 + $0x2] sm:$0xff]
      %v3390 = vld [vmem:[%s618 + $0x12] sm:$0xff]
      %v3391 = vld [vmem:[%s618 + $0x22] sm:$0xff]
      %v3392 = vld [vmem:[%s618 + $0x32] sm:$0xff]
      %v3393 = vld [vmem:[%s618 + $0x42] sm:$0xff]
      %v3394 = vld [vmem:[%s618 + $0x52] sm:$0xff]
      %v3395 = vld [vmem:[%s618 + $0x62] sm:$0xff]
      %v3396 = vld [vmem:[%s618 + $0x72] sm:$0xff]
      %v3397 = vpack.c.bf16 %v3390, %v3389
      %v3398 = vpack.c.bf16 %v3392, %v3391
      %v3399 = vpack.c.bf16 %v3394, %v3393
      %v3400 = vpack.c.bf16 %v3396, %v3395
      %s3401 = scalar_lea.vmem %s7, 512
      %v3402 = vld [vmem:[%s3401] sm:$0xf]
      %v3403 = vld [vmem:[%s3401 + $0x4] sm:$0xf]
      %v3404 = vld [vmem:[%s3401 + $0x8] sm:$0xf]
      %v3405 = vld [vmem:[%s3401 + $0xc] sm:$0xf]
      %v3406 = vld [vmem:[%s3401 + $0x10] sm:$0xf]
      %v3407 = vld [vmem:[%s3401 + $0x14] sm:$0xf]
      %v3408 = vld [vmem:[%s3401 + $0x18] sm:$0xf]
      %v3409 = vld [vmem:[%s3401 + $0x1c] sm:$0xf]
      %v3410 = vld [vmem:[%s3401 + $0x20] sm:$0xf]
      %v3411 = vld [vmem:[%s3401 + $0x24] sm:$0xf]
      %v3412 = vld [vmem:[%s3401 + $0x28] sm:$0xf]
      %v3413 = vld [vmem:[%s3401 + $0x2c] sm:$0xf]
      %v3414 = vld [vmem:[%s3401 + $0x30] sm:$0xf]
      %v3415 = vld [vmem:[%s3401 + $0x34] sm:$0xf]
      %v3416 = vld [vmem:[%s3401 + $0x38] sm:$0xf]
      %v3417 = vld [vmem:[%s3401 + $0x3c] sm:$0xf]
      %v3434 = vunpack.c.l.b16 %v3402
      %v3435 = vunpack.c.l.b16 %v3403
      %v3436 = vunpack.c.l.b16 %v3404
      %v3437 = vunpack.c.l.b16 %v3405
      %v3438 = vunpack.c.l.b16 %v3406
      %v3439 = vunpack.c.l.b16 %v3407
      %v3440 = vunpack.c.l.b16 %v3408
      %v3441 = vunpack.c.l.b16 %v3409
      %v3442 = vunpack.c.l.b16 %v3410
      %v3443 = vunpack.c.l.b16 %v3411
      %v3444 = vunpack.c.l.b16 %v3412
      %v3445 = vunpack.c.l.b16 %v3413
      %v3446 = vunpack.c.l.b16 %v3414
      %v3447 = vunpack.c.l.b16 %v3415
      %v3448 = vunpack.c.l.b16 %v3416
      %v3449 = vunpack.c.l.b16 %v3417
      %v3450 = vpack.c.b16 %v3435, %v3434
      %v3451 = vpack.c.b16 %v3437, %v3436
      %v3452 = vpack.c.b16 %v3439, %v3438
      %v3453 = vpack.c.b16 %v3441, %v3440
      %v3454 = vpack.c.b16 %v3443, %v3442
      %v3455 = vpack.c.b16 %v3445, %v3444
      %v3456 = vpack.c.b16 %v3447, %v3446
      %v3457 = vpack.c.b16 %v3449, %v3448
      %3466 = vmatprep.subr.bf16.mxu0 0
      %3467 = vmatpush1.bf16.msra.mxu0 %v3457
      %3468 = vmatprep.subr.bf16.mxu0 0
      %3469 = vmatpush1.bf16.msra.mxu0 %v3456
      %3470 = vmatprep.subr.bf16.mxu0 0
      %3471 = vmatpush1.bf16.msra.mxu0 %v3455
      %3472 = vmatprep.subr.bf16.mxu0 0
      %3473 = vmatpush1.bf16.msra.mxu0 %v3454
      %3474 = vmatprep.subr.bf16.mxu0 0
      %3475 = vmatpush1.bf16.msra.mxu0 %v3453
      %3476 = vmatprep.subr.bf16.mxu0 0
      %3477 = vmatpush1.bf16.msra.mxu0 %v3452
      %3478 = vmatprep.subr.bf16.mxu0 0
      %3479 = vmatpush1.bf16.msra.mxu0 %v3451
      %3480 = vmatprep.subr.bf16.mxu0 0
      %3481 = vmatpush1.bf16.msra.mxu0 %v3450
      %3482 = vmatprep.subr.bf16.mxu0 0
      %3483 = vmatpush2.bf16.msra.mxu0 0
      %3484 = vmatprep.subr.bf16.mxu0 0
      %3485 = vmatpush2.bf16.msra.mxu0 0
      %3486 = vmatprep.subr.bf16.mxu0 0
      %3487 = vmatpush2.bf16.msra.mxu0 0
      %3488 = vmatprep.subr.bf16.mxu0 0
      %3489 = vmatpush2.bf16.msra.mxu0 0
      %3490 = vmatprep.subr.bf16.mxu0 0
      %3491 = vmatpush2.bf16.msra.mxu0 0
      %3492 = vmatprep.subr.bf16.mxu0 0
      %3493 = vmatpush2.bf16.msra.mxu0 0
      %3494 = vmatprep.subr.bf16.mxu0 0
      %3495 = vmatpush2.bf16.msra.mxu0 0
      %3496 = vmatprep.subr.bf16.mxu0 0
      %3497 = vmatpush2.bf16.msra.mxu0 0
      %3498 = vmatprep.mubr.bf16.mxu0 0
      %3499 = vmatmul.mubr.bf16.gmra.mxu0 %v3397
      %v3500 = vpop.f32.mrf.mxu0
      %v3501 = vadd.f32 0.0, %v3500
      %v3502 = vpop.f32.mrf.mxu0
      %v3503 = vpop.f32.mrf.mxu0
      %v3504 = vadd.f32 0.0, %v3503
      %v3505 = vpop.f32.mrf.mxu0
      %3506 = vmatprep.mubr.bf16.mxu0 0
      %3507 = vmatmul.mubr.bf16.gmra.mxu0 %v3398
      %v3508 = vpop.f32.mrf.mxu0
      %v3509 = vadd.f32 0.0, %v3508
      %v3510 = vpop.f32.mrf.mxu0
      %v3511 = vpop.f32.mrf.mxu0
      %v3512 = vadd.f32 0.0, %v3511
      %v3513 = vpop.f32.mrf.mxu0
      %3514 = vmatprep.mubr.bf16.mxu0 0
      %3515 = vmatmul.mubr.bf16.gmra.mxu0 %v3399
      %v3516 = vpop.f32.mrf.mxu0
      %v3517 = vadd.f32 0.0, %v3516
      %v3518 = vpop.f32.mrf.mxu0
      %v3519 = vpop.f32.mrf.mxu0
      %v3520 = vadd.f32 0.0, %v3519
      %v3521 = vpop.f32.mrf.mxu0
      %3522 = vmatprep.mubr.bf16.mxu0 0
      %3523 = vmatmul.mubr.bf16.gmra.mxu0 %v3400
      %v3524 = vpop.f32.mrf.mxu0
      %v3525 = vadd.f32 0.0, %v3524
      %v3526 = vpop.f32.mrf.mxu0
      %v3527 = vpop.f32.mrf.mxu0
      %v3528 = vadd.f32 0.0, %v3527
      %v3529 = vpop.f32.mrf.mxu0
      %3530 = vdwg.mxu0
      %v3531 = vadd.f32 %v3381, %v3501
      %v3532 = vadd.f32 %v3382, %v3504
      %v3533 = vadd.f32 %v3383, %v3509
      %v3534 = vadd.f32 %v3384, %v3512
      %v3535 = vadd.f32 %v3385, %v3517
      %v3536 = vadd.f32 %v3386, %v3520
      %v3537 = vadd.f32 %v3387, %v3525
      %v3538 = vadd.f32 %v3388, %v3528
      %v3539 = vld [vmem:[%s8] sm:$0x1]
      %v3541 = vlaneseq
      %v3542 = vshrl.u32 %v3541, 7
      %v3543 = vsub.s32 0, %v3542
      %v3544 = vrot.slane %v3539, %v3543
      %v3546 = vadd.f32 %v3531, %v3544
      %v3547 = vadd.f32 %v3532, %v3544
      %v3548 = vadd.f32 %v3533, %v3544
      %v3549 = vadd.f32 %v3534, %v3544
      %v3550 = vadd.f32 %v3535, %v3544
      %v3551 = vadd.f32 %v3536, %v3544
      %v3552 = vadd.f32 %v3537, %v3544
      %v3553 = vadd.f32 %v3538, %v3544
      %v3554 = vmax.f32 %v3546, 0.0
      %v3555 = vmax.f32 %v3547, 0.0
      %v3556 = vmax.f32 %v3548, 0.0
      %v3557 = vmax.f32 %v3549, 0.0
      %v3558 = vmax.f32 %v3550, 0.0
      %v3559 = vmax.f32 %v3551, 0.0
      %v3560 = vmax.f32 %v3552, 0.0
      %v3561 = vmax.f32 %v3553, 0.0
      %v3562 = vpack.c.bf16 %v3555, %v3554
      %v3563 = vpack.c.bf16 %v3557, %v3556
      %v3564 = vpack.c.bf16 %v3559, %v3558
      %v3565 = vpack.c.bf16 %v3561, %v3560
      %v3570 = vunpack.c.l.b16 %v3562
      %v3571 = vunpack.c.h.b16 %v3562
      %v3572 = vunpack.c.l.b16 %v3563
      %v3573 = vunpack.c.h.b16 %v3563
      %v3574 = vunpack.c.l.b16 %v3564
      %v3575 = vunpack.c.h.b16 %v3564
      %v3576 = vunpack.c.l.b16 %v3565
      %v3577 = vunpack.c.h.b16 %v3565
      %v3578 = vpack.c.b16 %v3570, %v3570
      %v3579 = vpack.c.b16 %v3571, %v3571
      %v3580 = vpack.c.b16 %v3572, %v3572
      %v3581 = vpack.c.b16 %v3573, %v3573
      %v3582 = vpack.c.b16 %v3574, %v3574
      %v3583 = vpack.c.b16 %v3575, %v3575
      %v3584 = vpack.c.b16 %v3576, %v3576
      %v3585 = vpack.c.b16 %v3577, %v3577
      %3586 = vrot.lane.b32.xlu0 %v3578, 64
      %v3587 = vpop.permute.xlu0 %3586
      %3588 = vrot.lane.b32.xlu0 %v3579, 64
      %v3589 = vpop.permute.xlu0 %3588
      %3590 = vrot.lane.b32.xlu0 %v3580, 64
      %v3591 = vpop.permute.xlu0 %3590
      %3592 = vrot.lane.b32.xlu0 %v3581, 64
      %v3593 = vpop.permute.xlu0 %3592
      %3594 = vrot.lane.b32.xlu0 %v3582, 64
      %v3595 = vpop.permute.xlu0 %3594
      %3596 = vrot.lane.b32.xlu0 %v3583, 64
      %v3597 = vpop.permute.xlu0 %3596
      %3598 = vrot.lane.b32.xlu0 %v3584, 64
      %v3599 = vpop.permute.xlu0 %3598
      %3600 = vrot.lane.b32.xlu0 %v3585, 64
      %v3601 = vpop.permute.xlu0 %3600
      %vm3610 = vcmask 781824
      %3611 = vst.msk [vmem:[#allocation2] sm:$0xf] %vm3610, %v3587
      %3612 = vst.msk [vmem:[#allocation2 + $0x4] sm:$0xf] %vm3610, %v3589
      %3613 = vst.msk [vmem:[#allocation2 + $0x8] sm:$0xf] %vm3610, %v3591
      %3614 = vst.msk [vmem:[#allocation2 + $0xc] sm:$0xf] %vm3610, %v3593
      %3615 = vst.msk [vmem:[#allocation2 + $0x10] sm:$0xf] %vm3610, %v3595
      %3616 = vst.msk [vmem:[#allocation2 + $0x14] sm:$0xf] %vm3610, %v3597
      %3617 = vst.msk [vmem:[#allocation2 + $0x18] sm:$0xf] %vm3610, %v3599
      %3618 = vst.msk [vmem:[#allocation2 + $0x1c] sm:$0xf] %vm3610, %v3601
      %v3619 = vld [vmem:[#allocation2] sm:$0xf]
      %v3620 = vld [vmem:[#allocation2 + $0x4] sm:$0xf]
      %v3621 = vld [vmem:[#allocation2 + $0x8] sm:$0xf]
      %v3622 = vld [vmem:[#allocation2 + $0xc] sm:$0xf]
      %v3623 = vld [vmem:[#allocation2 + $0x10] sm:$0xf]
      %v3624 = vld [vmem:[#allocation2 + $0x14] sm:$0xf]
      %v3625 = vld [vmem:[#allocation2 + $0x18] sm:$0xf]
      %v3626 = vld [vmem:[#allocation2 + $0x1c] sm:$0xf]
      %v3627 = vld [vmem:[%s9] sm:$0xf]
      %v3628 = vld [vmem:[%s9 + $0x4] sm:$0xf]
      %v3629 = vld [vmem:[%s9 + $0x8] sm:$0xf]
      %v3630 = vld [vmem:[%s9 + $0xc] sm:$0xf]
      %v3631 = vld [vmem:[%s9 + $0x10] sm:$0xf]
      %v3632 = vld [vmem:[%s9 + $0x14] sm:$0xf]
      %v3633 = vld [vmem:[%s9 + $0x18] sm:$0xf]
      %v3634 = vld [vmem:[%s9 + $0x1c] sm:$0xf]
      %v3635 = vld [vmem:[%s9 + $0x20] sm:$0xf]
      %v3636 = vld [vmem:[%s9 + $0x24] sm:$0xf]
      %v3637 = vld [vmem:[%s9 + $0x28] sm:$0xf]
      %v3638 = vld [vmem:[%s9 + $0x2c] sm:$0xf]
      %v3639 = vld [vmem:[%s10] sm:$0x1]
      %v3641 = vlaneseq
      %v3642 = vshrl.u32 %v3641, 7
      %v3643 = vsub.s32 0, %v3642
      %v3644 = vrot.slane %v3639, %v3643
      %v3654 = vunpack.c.l.b16 %v3619
      %v3655 = vunpack.c.l.b16 %v3620
      %v3656 = vunpack.c.l.b16 %v3621
      %v3657 = vunpack.c.l.b16 %v3622
      %v3658 = vunpack.c.l.b16 %v3623
      %v3659 = vunpack.c.l.b16 %v3624
      %v3660 = vunpack.c.l.b16 %v3625
      %v3661 = vunpack.c.l.b16 %v3626
      %v3662 = vpack.c.b16 %v3655, %v3654
      %v3663 = vpack.c.b16 %v3657, %v3656
      %v3664 = vpack.c.b16 %v3659, %v3658
      %v3665 = vpack.c.b16 %v3661, %v3660
      %v3678 = vunpack.c.l.b16 %v3627
      %v3679 = vunpack.c.l.b16 %v3628
      %v3680 = vunpack.c.l.b16 %v3629
      %v3681 = vunpack.c.l.b16 %v3630
      %v3682 = vunpack.c.l.b16 %v3631
      %v3683 = vunpack.c.l.b16 %v3632
      %v3684 = vunpack.c.l.b16 %v3633
      %v3685 = vunpack.c.l.b16 %v3634
      %v3686 = vunpack.c.l.b16 %v3635
      %v3687 = vunpack.c.l.b16 %v3636
      %v3688 = vunpack.c.l.b16 %v3637
      %v3689 = vunpack.c.l.b16 %v3638
      %v3690 = vpack.c.b16 %v3679, %v3678
      %v3691 = vpack.c.b16 %v3681, %v3680
      %v3692 = vpack.c.b16 %v3683, %v3682
      %v3693 = vpack.c.b16 %v3685, %v3684
      %v3694 = vpack.c.b16 %v3687, %v3686
      %v3695 = vpack.c.b16 %v3689, %v3688
      %vm3702 = vcmask 785408
      %v3704 = vsel %vm3702, %v3662, 0
      %v3707 = vsel %vm3702, %v3663, 0
      %v3710 = vsel %vm3702, %v3664, 0
      %v3713 = vsel %vm3702, %v3665, 0
      %3715 = vmatprep.subr.bf16.mxu0 0
      %3716 = vmatpush1.bf16.msra.mxu0 0
      %3717 = vmatprep.subr.bf16.mxu0 0
      %3718 = vmatpush1.bf16.msra.mxu0 0
      %3719 = vmatprep.subr.bf16.mxu0 0
      %3720 = vmatpush1.bf16.msra.mxu0 %v3695
      %3721 = vmatprep.subr.bf16.mxu0 0
      %3722 = vmatpush1.bf16.msra.mxu0 %v3694
      %3723 = vmatprep.subr.bf16.mxu0 0
      %3724 = vmatpush1.bf16.msra.mxu0 %v3693
      %3725 = vmatprep.subr.bf16.mxu0 0
      %3726 = vmatpush1.bf16.msra.mxu0 %v3692
      %3727 = vmatprep.subr.bf16.mxu0 0
      %3728 = vmatpush1.bf16.msra.mxu0 %v3691
      %3729 = vmatprep.subr.bf16.mxu0 0
      %3730 = vmatpush1.bf16.msra.mxu0 %v3690
      %3731 = vmatprep.subr.bf16.mxu0 0
      %3732 = vmatpush2.bf16.msra.mxu0 0
      %3733 = vmatprep.subr.bf16.mxu0 0
      %3734 = vmatpush2.bf16.msra.mxu0 0
      %3735 = vmatprep.subr.bf16.mxu0 0
      %3736 = vmatpush2.bf16.msra.mxu0 0
      %3737 = vmatprep.subr.bf16.mxu0 0
      %3738 = vmatpush2.bf16.msra.mxu0 0
      %3739 = vmatprep.subr.bf16.mxu0 0
      %3740 = vmatpush2.bf16.msra.mxu0 0
      %3741 = vmatprep.subr.bf16.mxu0 0
      %3742 = vmatpush2.bf16.msra.mxu0 0
      %3743 = vmatprep.subr.bf16.mxu0 0
      %3744 = vmatpush2.bf16.msra.mxu0 0
      %3745 = vmatprep.subr.bf16.mxu0 0
      %3746 = vmatpush2.bf16.msra.mxu0 0
      %3747 = vmatprep.mubr.bf16.mxu0 0
      %3748 = vmatmul.mubr.bf16.gmra.mxu0 %v3704
      %v3749 = vpop.f32.mrf.mxu0
      %v3750 = vadd.f32 %v3644, %v3749
      %v3751 = vpop.f32.mrf.mxu0
      %v3752 = vpop.f32.mrf.mxu0
      %v3753 = vadd.f32 %v3644, %v3752
      %v3754 = vpop.f32.mrf.mxu0
      %3755 = vmatprep.mubr.bf16.mxu0 0
      %3756 = vmatmul.mubr.bf16.gmra.mxu0 %v3707
      %v3757 = vpop.f32.mrf.mxu0
      %v3758 = vadd.f32 %v3644, %v3757
      %v3759 = vpop.f32.mrf.mxu0
      %v3760 = vpop.f32.mrf.mxu0
      %v3761 = vadd.f32 %v3644, %v3760
      %v3762 = vpop.f32.mrf.mxu0
      %3763 = vmatprep.mubr.bf16.mxu0 0
      %3764 = vmatmul.mubr.bf16.gmra.mxu0 %v3710
      %v3765 = vpop.f32.mrf.mxu0
      %v3766 = vadd.f32 %v3644, %v3765
      %v3767 = vpop.f32.mrf.mxu0
      %v3768 = vpop.f32.mrf.mxu0
      %v3769 = vadd.f32 %v3644, %v3768
      %v3770 = vpop.f32.mrf.mxu0
      %3771 = vmatprep.mubr.bf16.mxu0 0
      %3772 = vmatmul.mubr.bf16.gmra.mxu0 %v3713
      %v3773 = vpop.f32.mrf.mxu0
      %v3774 = vadd.f32 %v3644, %v3773
      %v3775 = vpop.f32.mrf.mxu0
      %v3776 = vpop.f32.mrf.mxu0
      %v3777 = vadd.f32 %v3644, %v3776
      %v3778 = vpop.f32.mrf.mxu0
      %3779 = vdwg.mxu0
      %v3780 = vmax.f32 %v3750, 0.0
      %v3781 = vmax.f32 %v3753, 0.0
      %v3782 = vmax.f32 %v3758, 0.0
      %v3783 = vmax.f32 %v3761, 0.0
      %v3784 = vmax.f32 %v3766, 0.0
      %v3785 = vmax.f32 %v3769, 0.0
      %v3786 = vmax.f32 %v3774, 0.0
      %v3787 = vmax.f32 %v3777, 0.0
      %3788 = vst [vmem:[%s616 + $0x1] sm:$0xff] %v3780
      %3789 = vst [vmem:[%s618 + $0x1] sm:$0xff] %v3781
      %3790 = vst [vmem:[%s620 + $0x1] sm:$0xff] %v3782
      %3791 = vst [vmem:[%s622 + $0x1] sm:$0xff] %v3783
      %3792 = vst [vmem:[%s624 + $0x1] sm:$0xff] %v3784
      %3793 = vst [vmem:[%s626 + $0x1] sm:$0xff] %v3785
      %3794 = vst [vmem:[%s628 + $0x1] sm:$0xff] %v3786
      %3795 = vst [vmem:[%s630 + $0x1] sm:$0xff] %v3787
      %v3796 = vld [vmem:[#allocation3] sm:$0xff]
      %v3797 = vld [vmem:[#allocation3 + $0x10] sm:$0xff]
      %v3798 = vld [vmem:[#allocation3 + $0x20] sm:$0xff]
      %v3799 = vld [vmem:[#allocation3 + $0x30] sm:$0xff]
      %v3800 = vld [vmem:[#allocation3 + $0x40] sm:$0xff]
      %v3801 = vld [vmem:[#allocation3 + $0x50] sm:$0xff]
      %v3802 = vld [vmem:[#allocation3 + $0x60] sm:$0xff]
      %v3803 = vld [vmem:[#allocation3 + $0x70] sm:$0xff]
      %v3804 = vpack.c.bf16 %v3797, %v3796
      %v3805 = vpack.c.bf16 %v3799, %v3798
      %v3806 = vpack.c.bf16 %v3801, %v3800
      %v3807 = vpack.c.bf16 %v3803, %v3802
      %v3808 = vld [vmem:[%s11] sm:$0xf]
      %v3809 = vld [vmem:[%s11 + $0x4] sm:$0xf]
      %v3810 = vld [vmem:[%s11 + $0x8] sm:$0xf]
      %v3811 = vld [vmem:[%s11 + $0xc] sm:$0xf]
      %v3812 = vld [vmem:[%s11 + $0x10] sm:$0xf]
      %v3813 = vld [vmem:[%s11 + $0x14] sm:$0xf]
      %v3814 = vld [vmem:[%s11 + $0x18] sm:$0xf]
      %v3815 = vld [vmem:[%s11 + $0x1c] sm:$0xf]
      %v3816 = vld [vmem:[%s11 + $0x20] sm:$0xf]
      %v3817 = vld [vmem:[%s11 + $0x24] sm:$0xf]
      %v3818 = vld [vmem:[%s11 + $0x28] sm:$0xf]
      %v3819 = vld [vmem:[%s11 + $0x2c] sm:$0xf]
      %v3820 = vld [vmem:[%s11 + $0x30] sm:$0xf]
      %v3821 = vld [vmem:[%s11 + $0x34] sm:$0xf]
      %v3822 = vld [vmem:[%s11 + $0x38] sm:$0xf]
      %v3823 = vld [vmem:[%s11 + $0x3c] sm:$0xf]
      %v3824 = vld [vmem:[#allocation3 + $0x1] sm:$0xff]
      %v3825 = vld [vmem:[#allocation3 + $0x11] sm:$0xff]
      %v3826 = vld [vmem:[#allocation3 + $0x21] sm:$0xff]
      %v3827 = vld [vmem:[#allocation3 + $0x31] sm:$0xff]
      %v3828 = vld [vmem:[#allocation3 + $0x41] sm:$0xff]
      %v3829 = vld [vmem:[#allocation3 + $0x51] sm:$0xff]
      %v3830 = vld [vmem:[#allocation3 + $0x61] sm:$0xff]
      %v3831 = vld [vmem:[#allocation3 + $0x71] sm:$0xff]
      %v3832 = vpack.c.bf16 %v3825, %v3824
      %v3833 = vpack.c.bf16 %v3827, %v3826
      %v3834 = vpack.c.bf16 %v3829, %v3828
      %v3835 = vpack.c.bf16 %v3831, %v3830
      %s3836 = scalar_lea.vmem %s11, 64
      %v3837 = vld [vmem:[%s3836] sm:$0xf]
      %v3838 = vld [vmem:[%s3836 + $0x4] sm:$0xf]
      %v3839 = vld [vmem:[%s3836 + $0x8] sm:$0xf]
      %v3840 = vld [vmem:[%s3836 + $0xc] sm:$0xf]
      %v3841 = vld [vmem:[%s3836 + $0x10] sm:$0xf]
      %v3842 = vld [vmem:[%s3836 + $0x14] sm:$0xf]
      %v3843 = vld [vmem:[%s3836 + $0x18] sm:$0xf]
      %v3844 = vld [vmem:[%s3836 + $0x1c] sm:$0xf]
      %v3845 = vld [vmem:[%s3836 + $0x20] sm:$0xf]
      %v3846 = vld [vmem:[%s3836 + $0x24] sm:$0xf]
      %v3847 = vld [vmem:[%s3836 + $0x28] sm:$0xf]
      %v3848 = vld [vmem:[%s3836 + $0x2c] sm:$0xf]
      %v3849 = vld [vmem:[%s3836 + $0x30] sm:$0xf]
      %v3850 = vld [vmem:[%s3836 + $0x34] sm:$0xf]
      %v3851 = vld [vmem:[%s3836 + $0x38] sm:$0xf]
      %v3852 = vld [vmem:[%s3836 + $0x3c] sm:$0xf]
      %v3869 = vunpack.c.l.b16 %v3837
      %v3870 = vunpack.c.l.b16 %v3838
      %v3871 = vunpack.c.l.b16 %v3839
      %v3872 = vunpack.c.l.b16 %v3840
      %v3873 = vunpack.c.l.b16 %v3841
      %v3874 = vunpack.c.l.b16 %v3842
      %v3875 = vunpack.c.l.b16 %v3843
      %v3876 = vunpack.c.l.b16 %v3844
      %v3877 = vunpack.c.l.b16 %v3845
      %v3878 = vunpack.c.l.b16 %v3846
      %v3879 = vunpack.c.l.b16 %v3847
      %v3880 = vunpack.c.l.b16 %v3848
      %v3881 = vunpack.c.l.b16 %v3849
      %v3882 = vunpack.c.l.b16 %v3850
      %v3883 = vunpack.c.l.b16 %v3851
      %v3884 = vunpack.c.l.b16 %v3852
      %v3885 = vpack.c.b16 %v3870, %v3869
      %v3886 = vpack.c.b16 %v3872, %v3871
      %v3887 = vpack.c.b16 %v3874, %v3873
      %v3888 = vpack.c.b16 %v3876, %v3875
      %v3889 = vpack.c.b16 %v3878, %v3877
      %v3890 = vpack.c.b16 %v3880, %v3879
      %v3891 = vpack.c.b16 %v3882, %v3881
      %v3892 = vpack.c.b16 %v3884, %v3883
      %3901 = vmatprep.subr.bf16.mxu0 0
      %3902 = vmatpush1.bf16.msra.mxu0 %v3892
      %3903 = vmatprep.subr.bf16.mxu0 0
      %3904 = vmatpush1.bf16.msra.mxu0 %v3891
      %3905 = vmatprep.subr.bf16.mxu0 0
      %3906 = vmatpush1.bf16.msra.mxu0 %v3890
      %3907 = vmatprep.subr.bf16.mxu0 0
      %3908 = vmatpush1.bf16.msra.mxu0 %v3889
      %3909 = vmatprep.subr.bf16.mxu0 0
      %3910 = vmatpush1.bf16.msra.mxu0 %v3888
      %3911 = vmatprep.subr.bf16.mxu0 0
      %3912 = vmatpush1.bf16.msra.mxu0 %v3887
      %3913 = vmatprep.subr.bf16.mxu0 0
      %3914 = vmatpush1.bf16.msra.mxu0 %v3886
      %3915 = vmatprep.subr.bf16.mxu0 0
      %3916 = vmatpush1.bf16.msra.mxu0 %v3885
      %3917 = vmatprep.subr.bf16.mxu0 0
      %3918 = vmatpush2.bf16.msra.mxu0 0
      %3919 = vmatprep.subr.bf16.mxu0 0
      %3920 = vmatpush2.bf16.msra.mxu0 0
      %3921 = vmatprep.subr.bf16.mxu0 0
      %3922 = vmatpush2.bf16.msra.mxu0 0
      %3923 = vmatprep.subr.bf16.mxu0 0
      %3924 = vmatpush2.bf16.msra.mxu0 0
      %3925 = vmatprep.subr.bf16.mxu0 0
      %3926 = vmatpush2.bf16.msra.mxu0 0
      %3927 = vmatprep.subr.bf16.mxu0 0
      %3928 = vmatpush2.bf16.msra.mxu0 0
      %3929 = vmatprep.subr.bf16.mxu0 0
      %3930 = vmatpush2.bf16.msra.mxu0 0
      %3931 = vmatprep.subr.bf16.mxu0 0
      %3932 = vmatpush2.bf16.msra.mxu0 0
      %3933 = vmatprep.mubr.bf16.mxu0 0
      %3934 = vmatmul.mubr.bf16.gmra.mxu0 %v3832
      %v3935 = vpop.f32.mrf.mxu0
      %v3936 = vadd.f32 0.0, %v3935
      %v3937 = vpop.f32.mrf.mxu0
      %v3938 = vpop.f32.mrf.mxu0
      %v3939 = vadd.f32 0.0, %v3938
      %v3940 = vpop.f32.mrf.mxu0
      %3941 = vmatprep.mubr.bf16.mxu0 0
      %3942 = vmatmul.mubr.bf16.gmra.mxu0 %v3833
      %v3943 = vpop.f32.mrf.mxu0
      %v3944 = vadd.f32 0.0, %v3943
      %v3945 = vpop.f32.mrf.mxu0
      %v3946 = vpop.f32.mrf.mxu0
      %v3947 = vadd.f32 0.0, %v3946
      %v3948 = vpop.f32.mrf.mxu0
      %3949 = vmatprep.mubr.bf16.mxu0 0
      %3950 = vmatmul.mubr.bf16.gmra.mxu0 %v3834
      %v3951 = vpop.f32.mrf.mxu0
      %v3952 = vadd.f32 0.0, %v3951
      %v3953 = vpop.f32.mrf.mxu0
      %v3954 = vpop.f32.mrf.mxu0
      %v3955 = vadd.f32 0.0, %v3954
      %v3956 = vpop.f32.mrf.mxu0
      %3957 = vmatprep.mubr.bf16.mxu0 0
      %3958 = vmatmul.mubr.bf16.gmra.mxu0 %v3835
      %v3959 = vpop.f32.mrf.mxu0
      %v3960 = vadd.f32 0.0, %v3959
      %v3961 = vpop.f32.mrf.mxu0
      %v3962 = vpop.f32.mrf.mxu0
      %v3963 = vadd.f32 0.0, %v3962
      %v3964 = vpop.f32.mrf.mxu0
      %3965 = vdwg.mxu0
      %v3982 = vunpack.c.l.b16 %v3808
      %v3983 = vunpack.c.l.b16 %v3809
      %v3984 = vunpack.c.l.b16 %v3810
      %v3985 = vunpack.c.l.b16 %v3811
      %v3986 = vunpack.c.l.b16 %v3812
      %v3987 = vunpack.c.l.b16 %v3813
      %v3988 = vunpack.c.l.b16 %v3814
      %v3989 = vunpack.c.l.b16 %v3815
      %v3990 = vunpack.c.l.b16 %v3816
      %v3991 = vunpack.c.l.b16 %v3817
      %v3992 = vunpack.c.l.b16 %v3818
      %v3993 = vunpack.c.l.b16 %v3819
      %v3994 = vunpack.c.l.b16 %v3820
      %v3995 = vunpack.c.l.b16 %v3821
      %v3996 = vunpack.c.l.b16 %v3822
      %v3997 = vunpack.c.l.b16 %v3823
      %v3998 = vpack.c.b16 %v3983, %v3982
      %v3999 = vpack.c.b16 %v3985, %v3984
      %v4000 = vpack.c.b16 %v3987, %v3986
      %v4001 = vpack.c.b16 %v3989, %v3988
      %v4002 = vpack.c.b16 %v3991, %v3990
      %v4003 = vpack.c.b16 %v3993, %v3992
      %v4004 = vpack.c.b16 %v3995, %v3994
      %v4005 = vpack.c.b16 %v3997, %v3996
      %4014 = vmatprep.subr.bf16.mxu0 0
      %4015 = vmatpush1.bf16.msra.mxu0 %v4005
      %4016 = vmatprep.subr.bf16.mxu0 0
      %4017 = vmatpush1.bf16.msra.mxu0 %v4004
      %4018 = vmatprep.subr.bf16.mxu0 0
      %4019 = vmatpush1.bf16.msra.mxu0 %v4003
      %4020 = vmatprep.subr.bf16.mxu0 0
      %4021 = vmatpush1.bf16.msra.mxu0 %v4002
      %4022 = vmatprep.subr.bf16.mxu0 0
      %4023 = vmatpush1.bf16.msra.mxu0 %v4001
      %4024 = vmatprep.subr.bf16.mxu0 0
      %4025 = vmatpush1.bf16.msra.mxu0 %v4000
      %4026 = vmatprep.subr.bf16.mxu0 0
      %4027 = vmatpush1.bf16.msra.mxu0 %v3999
      %4028 = vmatprep.subr.bf16.mxu0 0
      %4029 = vmatpush1.bf16.msra.mxu0 %v3998
      %4030 = vmatprep.subr.bf16.mxu0 0
      %4031 = vmatpush2.bf16.msra.mxu0 0
      %4032 = vmatprep.subr.bf16.mxu0 0
      %4033 = vmatpush2.bf16.msra.mxu0 0
      %4034 = vmatprep.subr.bf16.mxu0 0
      %4035 = vmatpush2.bf16.msra.mxu0 0
      %4036 = vmatprep.subr.bf16.mxu0 0
      %4037 = vmatpush2.bf16.msra.mxu0 0
      %4038 = vmatprep.subr.bf16.mxu0 0
      %4039 = vmatpush2.bf16.msra.mxu0 0
      %4040 = vmatprep.subr.bf16.mxu0 0
      %4041 = vmatpush2.bf16.msra.mxu0 0
      %4042 = vmatprep.subr.bf16.mxu0 0
      %4043 = vmatpush2.bf16.msra.mxu0 0
      %4044 = vmatprep.subr.bf16.mxu0 0
      %4045 = vmatpush2.bf16.msra.mxu0 0
      %4046 = vmatprep.mubr.bf16.mxu0 0
      %4047 = vmatmul.mubr.bf16.gmra.mxu0 %v3804
      %v4048 = vpop.f32.mrf.mxu0
      %v4049 = vadd.f32 %v3936, %v4048
      %v4050 = vpop.f32.mrf.mxu0
      %v4051 = vpop.f32.mrf.mxu0
      %v4052 = vadd.f32 %v3939, %v4051
      %v4053 = vpop.f32.mrf.mxu0
      %4054 = vmatprep.mubr.bf16.mxu0 0
      %4055 = vmatmul.mubr.bf16.gmra.mxu0 %v3805
      %v4056 = vpop.f32.mrf.mxu0
      %v4057 = vadd.f32 %v3944, %v4056
      %v4058 = vpop.f32.mrf.mxu0
      %v4059 = vpop.f32.mrf.mxu0
      %v4060 = vadd.f32 %v3947, %v4059
      %v4061 = vpop.f32.mrf.mxu0
      %4062 = vmatprep.mubr.bf16.mxu0 0
      %4063 = vmatmul.mubr.bf16.gmra.mxu0 %v3806
      %v4064 = vpop.f32.mrf.mxu0
      %v4065 = vadd.f32 %v3952, %v4064
      %v4066 = vpop.f32.mrf.mxu0
      %v4067 = vpop.f32.mrf.mxu0
      %v4068 = vadd.f32 %v3955, %v4067
      %v4069 = vpop.f32.mrf.mxu0
      %4070 = vmatprep.mubr.bf16.mxu0 0
      %4071 = vmatmul.mubr.bf16.gmra.mxu0 %v3807
      %v4072 = vpop.f32.mrf.mxu0
      %v4073 = vadd.f32 %v3960, %v4072
      %v4074 = vpop.f32.mrf.mxu0
      %v4075 = vpop.f32.mrf.mxu0
      %v4076 = vadd.f32 %v3963, %v4075
      %v4077 = vpop.f32.mrf.mxu0
      %4078 = vdwg.mxu0
      %v4079 = vld [vmem:[#allocation3 + $0x2] sm:$0xff]
      %v4080 = vld [vmem:[#allocation3 + $0x12] sm:$0xff]
      %v4081 = vld [vmem:[#allocation3 + $0x22] sm:$0xff]
      %v4082 = vld [vmem:[#allocation3 + $0x32] sm:$0xff]
      %v4083 = vld [vmem:[#allocation3 + $0x42] sm:$0xff]
      %v4084 = vld [vmem:[#allocation3 + $0x52] sm:$0xff]
      %v4085 = vld [vmem:[#allocation3 + $0x62] sm:$0xff]
      %v4086 = vld [vmem:[#allocation3 + $0x72] sm:$0xff]
      %v4087 = vpack.c.bf16 %v4080, %v4079
      %v4088 = vpack.c.bf16 %v4082, %v4081
      %v4089 = vpack.c.bf16 %v4084, %v4083
      %v4090 = vpack.c.bf16 %v4086, %v4085
      %s4091 = scalar_lea.vmem %s11, 128
      %v4092 = vld [vmem:[%s4091] sm:$0xf]
      %v4093 = vld [vmem:[%s4091 + $0x4] sm:$0xf]
      %v4094 = vld [vmem:[%s4091 + $0x8] sm:$0xf]
      %v4095 = vld [vmem:[%s4091 + $0xc] sm:$0xf]
      %v4096 = vld [vmem:[%s4091 + $0x10] sm:$0xf]
      %v4097 = vld [vmem:[%s4091 + $0x14] sm:$0xf]
      %v4098 = vld [vmem:[%s4091 + $0x18] sm:$0xf]
      %v4099 = vld [vmem:[%s4091 + $0x1c] sm:$0xf]
      %v4100 = vld [vmem:[%s4091 + $0x20] sm:$0xf]
      %v4101 = vld [vmem:[%s4091 + $0x24] sm:$0xf]
      %v4102 = vld [vmem:[%s4091 + $0x28] sm:$0xf]
      %v4103 = vld [vmem:[%s4091 + $0x2c] sm:$0xf]
      %v4104 = vld [vmem:[%s4091 + $0x30] sm:$0xf]
      %v4105 = vld [vmem:[%s4091 + $0x34] sm:$0xf]
      %v4106 = vld [vmem:[%s4091 + $0x38] sm:$0xf]
      %v4107 = vld [vmem:[%s4091 + $0x3c] sm:$0xf]
      %v4124 = vunpack.c.l.b16 %v4092
      %v4125 = vunpack.c.l.b16 %v4093
      %v4126 = vunpack.c.l.b16 %v4094
      %v4127 = vunpack.c.l.b16 %v4095
      %v4128 = vunpack.c.l.b16 %v4096
      %v4129 = vunpack.c.l.b16 %v4097
      %v4130 = vunpack.c.l.b16 %v4098
      %v4131 = vunpack.c.l.b16 %v4099
      %v4132 = vunpack.c.l.b16 %v4100
      %v4133 = vunpack.c.l.b16 %v4101
      %v4134 = vunpack.c.l.b16 %v4102
      %v4135 = vunpack.c.l.b16 %v4103
      %v4136 = vunpack.c.l.b16 %v4104
      %v4137 = vunpack.c.l.b16 %v4105
      %v4138 = vunpack.c.l.b16 %v4106
      %v4139 = vunpack.c.l.b16 %v4107
      %v4140 = vpack.c.b16 %v4125, %v4124
      %v4141 = vpack.c.b16 %v4127, %v4126
      %v4142 = vpack.c.b16 %v4129, %v4128
      %v4143 = vpack.c.b16 %v4131, %v4130
      %v4144 = vpack.c.b16 %v4133, %v4132
      %v4145 = vpack.c.b16 %v4135, %v4134
      %v4146 = vpack.c.b16 %v4137, %v4136
      %v4147 = vpack.c.b16 %v4139, %v4138
      %4156 = vmatprep.subr.bf16.mxu0 0
      %4157 = vmatpush1.bf16.msra.mxu0 %v4147
      %4158 = vmatprep.subr.bf16.mxu0 0
      %4159 = vmatpush1.bf16.msra.mxu0 %v4146
      %4160 = vmatprep.subr.bf16.mxu0 0
      %4161 = vmatpush1.bf16.msra.mxu0 %v4145
      %4162 = vmatprep.subr.bf16.mxu0 0
      %4163 = vmatpush1.bf16.msra.mxu0 %v4144
      %4164 = vmatprep.subr.bf16.mxu0 0
      %4165 = vmatpush1.bf16.msra.mxu0 %v4143
      %4166 = vmatprep.subr.bf16.mxu0 0
      %4167 = vmatpush1.bf16.msra.mxu0 %v4142
      %4168 = vmatprep.subr.bf16.mxu0 0
      %4169 = vmatpush1.bf16.msra.mxu0 %v4141
      %4170 = vmatprep.subr.bf16.mxu0 0
      %4171 = vmatpush1.bf16.msra.mxu0 %v4140
      %4172 = vmatprep.subr.bf16.mxu0 0
      %4173 = vmatpush2.bf16.msra.mxu0 0
      %4174 = vmatprep.subr.bf16.mxu0 0
      %4175 = vmatpush2.bf16.msra.mxu0 0
      %4176 = vmatprep.subr.bf16.mxu0 0
      %4177 = vmatpush2.bf16.msra.mxu0 0
      %4178 = vmatprep.subr.bf16.mxu0 0
      %4179 = vmatpush2.bf16.msra.mxu0 0
      %4180 = vmatprep.subr.bf16.mxu0 0
      %4181 = vmatpush2.bf16.msra.mxu0 0
      %4182 = vmatprep.subr.bf16.mxu0 0
      %4183 = vmatpush2.bf16.msra.mxu0 0
      %4184 = vmatprep.subr.bf16.mxu0 0
      %4185 = vmatpush2.bf16.msra.mxu0 0
      %4186 = vmatprep.subr.bf16.mxu0 0
      %4187 = vmatpush2.bf16.msra.mxu0 0
      %4188 = vmatprep.mubr.bf16.mxu0 0
      %4189 = vmatmul.mubr.bf16.gmra.mxu0 %v4087
      %v4190 = vpop.f32.mrf.mxu0
      %v4191 = vadd.f32 0.0, %v4190
      %v4192 = vpop.f32.mrf.mxu0
      %v4193 = vpop.f32.mrf.mxu0
      %v4194 = vadd.f32 0.0, %v4193
      %v4195 = vpop.f32.mrf.mxu0
      %4196 = vmatprep.mubr.bf16.mxu0 0
      %4197 = vmatmul.mubr.bf16.gmra.mxu0 %v4088
      %v4198 = vpop.f32.mrf.mxu0
      %v4199 = vadd.f32 0.0, %v4198
      %v4200 = vpop.f32.mrf.mxu0
      %v4201 = vpop.f32.mrf.mxu0
      %v4202 = vadd.f32 0.0, %v4201
      %v4203 = vpop.f32.mrf.mxu0
      %4204 = vmatprep.mubr.bf16.mxu0 0
      %4205 = vmatmul.mubr.bf16.gmra.mxu0 %v4089
      %v4206 = vpop.f32.mrf.mxu0
      %v4207 = vadd.f32 0.0, %v4206
      %v4208 = vpop.f32.mrf.mxu0
      %v4209 = vpop.f32.mrf.mxu0
      %v4210 = vadd.f32 0.0, %v4209
      %v4211 = vpop.f32.mrf.mxu0
      %4212 = vmatprep.mubr.bf16.mxu0 0
      %4213 = vmatmul.mubr.bf16.gmra.mxu0 %v4090
      %v4214 = vpop.f32.mrf.mxu0
      %v4215 = vadd.f32 0.0, %v4214
      %v4216 = vpop.f32.mrf.mxu0
      %v4217 = vpop.f32.mrf.mxu0
      %v4218 = vadd.f32 0.0, %v4217
      %v4219 = vpop.f32.mrf.mxu0
      %4220 = vdwg.mxu0
      %v4221 = vadd.f32 %v4049, %v4191
      %v4222 = vadd.f32 %v4052, %v4194
      %v4223 = vadd.f32 %v4057, %v4199
      %v4224 = vadd.f32 %v4060, %v4202
      %v4225 = vadd.f32 %v4065, %v4207
      %v4226 = vadd.f32 %v4068, %v4210
      %v4227 = vadd.f32 %v4073, %v4215
      %v4228 = vadd.f32 %v4076, %v4218
      %v4229 = vld [vmem:[%s616] sm:$0xff]
      %v4230 = vld [vmem:[%s616 + $0x10] sm:$0xff]
      %v4231 = vld [vmem:[%s616 + $0x20] sm:$0xff]
      %v4232 = vld [vmem:[%s616 + $0x30] sm:$0xff]
      %v4233 = vld [vmem:[%s616 + $0x40] sm:$0xff]
      %v4234 = vld [vmem:[%s616 + $0x50] sm:$0xff]
      %v4235 = vld [vmem:[%s616 + $0x60] sm:$0xff]
      %v4236 = vld [vmem:[%s616 + $0x70] sm:$0xff]
      %v4237 = vpack.c.bf16 %v4230, %v4229
      %v4238 = vpack.c.bf16 %v4232, %v4231
      %v4239 = vpack.c.bf16 %v4234, %v4233
      %v4240 = vpack.c.bf16 %v4236, %v4235
      %s4241 = scalar_lea.vmem %s11, 192
      %v4242 = vld [vmem:[%s4241] sm:$0xf]
      %v4243 = vld [vmem:[%s4241 + $0x4] sm:$0xf]
      %v4244 = vld [vmem:[%s4241 + $0x8] sm:$0xf]
      %v4245 = vld [vmem:[%s4241 + $0xc] sm:$0xf]
      %v4246 = vld [vmem:[%s4241 + $0x10] sm:$0xf]
      %v4247 = vld [vmem:[%s4241 + $0x14] sm:$0xf]
      %v4248 = vld [vmem:[%s4241 + $0x18] sm:$0xf]
      %v4249 = vld [vmem:[%s4241 + $0x1c] sm:$0xf]
      %v4250 = vld [vmem:[%s4241 + $0x20] sm:$0xf]
      %v4251 = vld [vmem:[%s4241 + $0x24] sm:$0xf]
      %v4252 = vld [vmem:[%s4241 + $0x28] sm:$0xf]
      %v4253 = vld [vmem:[%s4241 + $0x2c] sm:$0xf]
      %v4254 = vld [vmem:[%s4241 + $0x30] sm:$0xf]
      %v4255 = vld [vmem:[%s4241 + $0x34] sm:$0xf]
      %v4256 = vld [vmem:[%s4241 + $0x38] sm:$0xf]
      %v4257 = vld [vmem:[%s4241 + $0x3c] sm:$0xf]
      %v4274 = vunpack.c.l.b16 %v4242
      %v4275 = vunpack.c.l.b16 %v4243
      %v4276 = vunpack.c.l.b16 %v4244
      %v4277 = vunpack.c.l.b16 %v4245
      %v4278 = vunpack.c.l.b16 %v4246
      %v4279 = vunpack.c.l.b16 %v4247
      %v4280 = vunpack.c.l.b16 %v4248
      %v4281 = vunpack.c.l.b16 %v4249
      %v4282 = vunpack.c.l.b16 %v4250
      %v4283 = vunpack.c.l.b16 %v4251
      %v4284 = vunpack.c.l.b16 %v4252
      %v4285 = vunpack.c.l.b16 %v4253
      %v4286 = vunpack.c.l.b16 %v4254
      %v4287 = vunpack.c.l.b16 %v4255
      %v4288 = vunpack.c.l.b16 %v4256
      %v4289 = vunpack.c.l.b16 %v4257
      %v4290 = vpack.c.b16 %v4275, %v4274
      %v4291 = vpack.c.b16 %v4277, %v4276
      %v4292 = vpack.c.b16 %v4279, %v4278
      %v4293 = vpack.c.b16 %v4281, %v4280
      %v4294 = vpack.c.b16 %v4283, %v4282
      %v4295 = vpack.c.b16 %v4285, %v4284
      %v4296 = vpack.c.b16 %v4287, %v4286
      %v4297 = vpack.c.b16 %v4289, %v4288
      %4306 = vmatprep.subr.bf16.mxu0 0
      %4307 = vmatpush1.bf16.msra.mxu0 %v4297
      %4308 = vmatprep.subr.bf16.mxu0 0
      %4309 = vmatpush1.bf16.msra.mxu0 %v4296
      %4310 = vmatprep.subr.bf16.mxu0 0
      %4311 = vmatpush1.bf16.msra.mxu0 %v4295
      %4312 = vmatprep.subr.bf16.mxu0 0
      %4313 = vmatpush1.bf16.msra.mxu0 %v4294
      %4314 = vmatprep.subr.bf16.mxu0 0
      %4315 = vmatpush1.bf16.msra.mxu0 %v4293
      %4316 = vmatprep.subr.bf16.mxu0 0
      %4317 = vmatpush1.bf16.msra.mxu0 %v4292
      %4318 = vmatprep.subr.bf16.mxu0 0
      %4319 = vmatpush1.bf16.msra.mxu0 %v4291
      %4320 = vmatprep.subr.bf16.mxu0 0
      %4321 = vmatpush1.bf16.msra.mxu0 %v4290
      %4322 = vmatprep.subr.bf16.mxu0 0
      %4323 = vmatpush2.bf16.msra.mxu0 0
      %4324 = vmatprep.subr.bf16.mxu0 0
      %4325 = vmatpush2.bf16.msra.mxu0 0
      %4326 = vmatprep.subr.bf16.mxu0 0
      %4327 = vmatpush2.bf16.msra.mxu0 0
      %4328 = vmatprep.subr.bf16.mxu0 0
      %4329 = vmatpush2.bf16.msra.mxu0 0
      %4330 = vmatprep.subr.bf16.mxu0 0
      %4331 = vmatpush2.bf16.msra.mxu0 0
      %4332 = vmatprep.subr.bf16.mxu0 0
      %4333 = vmatpush2.bf16.msra.mxu0 0
      %4334 = vmatprep.subr.bf16.mxu0 0
      %4335 = vmatpush2.bf16.msra.mxu0 0
      %4336 = vmatprep.subr.bf16.mxu0 0
      %4337 = vmatpush2.bf16.msra.mxu0 0
      %4338 = vmatprep.mubr.bf16.mxu0 0
      %4339 = vmatmul.mubr.bf16.gmra.mxu0 %v4237
      %v4340 = vpop.f32.mrf.mxu0
      %v4341 = vadd.f32 0.0, %v4340
      %v4342 = vpop.f32.mrf.mxu0
      %v4343 = vpop.f32.mrf.mxu0
      %v4344 = vadd.f32 0.0, %v4343
      %v4345 = vpop.f32.mrf.mxu0
      %4346 = vmatprep.mubr.bf16.mxu0 0
      %4347 = vmatmul.mubr.bf16.gmra.mxu0 %v4238
      %v4348 = vpop.f32.mrf.mxu0
      %v4349 = vadd.f32 0.0, %v4348
      %v4350 = vpop.f32.mrf.mxu0
      %v4351 = vpop.f32.mrf.mxu0
      %v4352 = vadd.f32 0.0, %v4351
      %v4353 = vpop.f32.mrf.mxu0
      %4354 = vmatprep.mubr.bf16.mxu0 0
      %4355 = vmatmul.mubr.bf16.gmra.mxu0 %v4239
      %v4356 = vpop.f32.mrf.mxu0
      %v4357 = vadd.f32 0.0, %v4356
      %v4358 = vpop.f32.mrf.mxu0
      %v4359 = vpop.f32.mrf.mxu0
      %v4360 = vadd.f32 0.0, %v4359
      %v4361 = vpop.f32.mrf.mxu0
      %4362 = vmatprep.mubr.bf16.mxu0 0
      %4363 = vmatmul.mubr.bf16.gmra.mxu0 %v4240
      %v4364 = vpop.f32.mrf.mxu0
      %v4365 = vadd.f32 0.0, %v4364
      %v4366 = vpop.f32.mrf.mxu0
      %v4367 = vpop.f32.mrf.mxu0
      %v4368 = vadd.f32 0.0, %v4367
      %v4369 = vpop.f32.mrf.mxu0
      %4370 = vdwg.mxu0
      %v4371 = vadd.f32 %v4221, %v4341
      %v4372 = vadd.f32 %v4222, %v4344
      %v4373 = vadd.f32 %v4223, %v4349
      %v4374 = vadd.f32 %v4224, %v4352
      %v4375 = vadd.f32 %v4225, %v4357
      %v4376 = vadd.f32 %v4226, %v4360
      %v4377 = vadd.f32 %v4227, %v4365
      %v4378 = vadd.f32 %v4228, %v4368
      %v4379 = vld [vmem:[%s616 + $0x1] sm:$0xff]
      %v4380 = vld [vmem:[%s616 + $0x11] sm:$0xff]
      %v4381 = vld [vmem:[%s616 + $0x21] sm:$0xff]
      %v4382 = vld [vmem:[%s616 + $0x31] sm:$0xff]
      %v4383 = vld [vmem:[%s616 + $0x41] sm:$0xff]
      %v4384 = vld [vmem:[%s616 + $0x51] sm:$0xff]
      %v4385 = vld [vmem:[%s616 + $0x61] sm:$0xff]
      %v4386 = vld [vmem:[%s616 + $0x71] sm:$0xff]
      %v4387 = vpack.c.bf16 %v4380, %v4379
      %v4388 = vpack.c.bf16 %v4382, %v4381
      %v4389 = vpack.c.bf16 %v4384, %v4383
      %v4390 = vpack.c.bf16 %v4386, %v4385
      %s4391 = scalar_lea.vmem %s11, 256
      %v4392 = vld [vmem:[%s4391] sm:$0xf]
      %v4393 = vld [vmem:[%s4391 + $0x4] sm:$0xf]
      %v4394 = vld [vmem:[%s4391 + $0x8] sm:$0xf]
      %v4395 = vld [vmem:[%s4391 + $0xc] sm:$0xf]
      %v4396 = vld [vmem:[%s4391 + $0x10] sm:$0xf]
      %v4397 = vld [vmem:[%s4391 + $0x14] sm:$0xf]
      %v4398 = vld [vmem:[%s4391 + $0x18] sm:$0xf]
      %v4399 = vld [vmem:[%s4391 + $0x1c] sm:$0xf]
      %v4400 = vld [vmem:[%s4391 + $0x20] sm:$0xf]
      %v4401 = vld [vmem:[%s4391 + $0x24] sm:$0xf]
      %v4402 = vld [vmem:[%s4391 + $0x28] sm:$0xf]
      %v4403 = vld [vmem:[%s4391 + $0x2c] sm:$0xf]
      %v4404 = vld [vmem:[%s4391 + $0x30] sm:$0xf]
      %v4405 = vld [vmem:[%s4391 + $0x34] sm:$0xf]
      %v4406 = vld [vmem:[%s4391 + $0x38] sm:$0xf]
      %v4407 = vld [vmem:[%s4391 + $0x3c] sm:$0xf]
      %v4424 = vunpack.c.l.b16 %v4392
      %v4425 = vunpack.c.l.b16 %v4393
      %v4426 = vunpack.c.l.b16 %v4394
      %v4427 = vunpack.c.l.b16 %v4395
      %v4428 = vunpack.c.l.b16 %v4396
      %v4429 = vunpack.c.l.b16 %v4397
      %v4430 = vunpack.c.l.b16 %v4398
      %v4431 = vunpack.c.l.b16 %v4399
      %v4432 = vunpack.c.l.b16 %v4400
      %v4433 = vunpack.c.l.b16 %v4401
      %v4434 = vunpack.c.l.b16 %v4402
      %v4435 = vunpack.c.l.b16 %v4403
      %v4436 = vunpack.c.l.b16 %v4404
      %v4437 = vunpack.c.l.b16 %v4405
      %v4438 = vunpack.c.l.b16 %v4406
      %v4439 = vunpack.c.l.b16 %v4407
      %v4440 = vpack.c.b16 %v4425, %v4424
      %v4441 = vpack.c.b16 %v4427, %v4426
      %v4442 = vpack.c.b16 %v4429, %v4428
      %v4443 = vpack.c.b16 %v4431, %v4430
      %v4444 = vpack.c.b16 %v4433, %v4432
      %v4445 = vpack.c.b16 %v4435, %v4434
      %v4446 = vpack.c.b16 %v4437, %v4436
      %v4447 = vpack.c.b16 %v4439, %v4438
      %4456 = vmatprep.subr.bf16.mxu0 0
      %4457 = vmatpush1.bf16.msra.mxu0 %v4447
      %4458 = vmatprep.subr.bf16.mxu0 0
      %4459 = vmatpush1.bf16.msra.mxu0 %v4446
      %4460 = vmatprep.subr.bf16.mxu0 0
      %4461 = vmatpush1.bf16.msra.mxu0 %v4445
      %4462 = vmatprep.subr.bf16.mxu0 0
      %4463 = vmatpush1.bf16.msra.mxu0 %v4444
      %4464 = vmatprep.subr.bf16.mxu0 0
      %4465 = vmatpush1.bf16.msra.mxu0 %v4443
      %4466 = vmatprep.subr.bf16.mxu0 0
      %4467 = vmatpush1.bf16.msra.mxu0 %v4442
      %4468 = vmatprep.subr.bf16.mxu0 0
      %4469 = vmatpush1.bf16.msra.mxu0 %v4441
      %4470 = vmatprep.subr.bf16.mxu0 0
      %4471 = vmatpush1.bf16.msra.mxu0 %v4440
      %4472 = vmatprep.subr.bf16.mxu0 0
      %4473 = vmatpush2.bf16.msra.mxu0 0
      %4474 = vmatprep.subr.bf16.mxu0 0
      %4475 = vmatpush2.bf16.msra.mxu0 0
      %4476 = vmatprep.subr.bf16.mxu0 0
      %4477 = vmatpush2.bf16.msra.mxu0 0
      %4478 = vmatprep.subr.bf16.mxu0 0
      %4479 = vmatpush2.bf16.msra.mxu0 0
      %4480 = vmatprep.subr.bf16.mxu0 0
      %4481 = vmatpush2.bf16.msra.mxu0 0
      %4482 = vmatprep.subr.bf16.mxu0 0
      %4483 = vmatpush2.bf16.msra.mxu0 0
      %4484 = vmatprep.subr.bf16.mxu0 0
      %4485 = vmatpush2.bf16.msra.mxu0 0
      %4486 = vmatprep.subr.bf16.mxu0 0
      %4487 = vmatpush2.bf16.msra.mxu0 0
      %4488 = vmatprep.mubr.bf16.mxu0 0
      %4489 = vmatmul.mubr.bf16.gmra.mxu0 %v4387
      %v4490 = vpop.f32.mrf.mxu0
      %v4491 = vadd.f32 0.0, %v4490
      %v4492 = vpop.f32.mrf.mxu0
      %v4493 = vpop.f32.mrf.mxu0
      %v4494 = vadd.f32 0.0, %v4493
      %v4495 = vpop.f32.mrf.mxu0
      %4496 = vmatprep.mubr.bf16.mxu0 0
      %4497 = vmatmul.mubr.bf16.gmra.mxu0 %v4388
      %v4498 = vpop.f32.mrf.mxu0
      %v4499 = vadd.f32 0.0, %v4498
      %v4500 = vpop.f32.mrf.mxu0
      %v4501 = vpop.f32.mrf.mxu0
      %v4502 = vadd.f32 0.0, %v4501
      %v4503 = vpop.f32.mrf.mxu0
      %4504 = vmatprep.mubr.bf16.mxu0 0
      %4505 = vmatmul.mubr.bf16.gmra.mxu0 %v4389
      %v4506 = vpop.f32.mrf.mxu0
      %v4507 = vadd.f32 0.0, %v4506
      %v4508 = vpop.f32.mrf.mxu0
      %v4509 = vpop.f32.mrf.mxu0
      %v4510 = vadd.f32 0.0, %v4509
      %v4511 = vpop.f32.mrf.mxu0
      %4512 = vmatprep.mubr.bf16.mxu0 0
      %4513 = vmatmul.mubr.bf16.gmra.mxu0 %v4390
      %v4514 = vpop.f32.mrf.mxu0
      %v4515 = vadd.f32 0.0, %v4514
      %v4516 = vpop.f32.mrf.mxu0
      %v4517 = vpop.f32.mrf.mxu0
      %v4518 = vadd.f32 0.0, %v4517
      %v4519 = vpop.f32.mrf.mxu0
      %4520 = vdwg.mxu0
      %v4521 = vadd.f32 %v4371, %v4491
      %v4522 = vadd.f32 %v4372, %v4494
      %v4523 = vadd.f32 %v4373, %v4499
      %v4524 = vadd.f32 %v4374, %v4502
      %v4525 = vadd.f32 %v4375, %v4507
      %v4526 = vadd.f32 %v4376, %v4510
      %v4527 = vadd.f32 %v4377, %v4515
      %v4528 = vadd.f32 %v4378, %v4518
      %v4529 = vld [vmem:[%s616 + $0x2] sm:$0xff]
      %v4530 = vld [vmem:[%s616 + $0x12] sm:$0xff]
      %v4531 = vld [vmem:[%s616 + $0x22] sm:$0xff]
      %v4532 = vld [vmem:[%s616 + $0x32] sm:$0xff]
      %v4533 = vld [vmem:[%s616 + $0x42] sm:$0xff]
      %v4534 = vld [vmem:[%s616 + $0x52] sm:$0xff]
      %v4535 = vld [vmem:[%s616 + $0x62] sm:$0xff]
      %v4536 = vld [vmem:[%s616 + $0x72] sm:$0xff]
      %v4537 = vpack.c.bf16 %v4530, %v4529
      %v4538 = vpack.c.bf16 %v4532, %v4531
      %v4539 = vpack.c.bf16 %v4534, %v4533
      %v4540 = vpack.c.bf16 %v4536, %v4535
      %s4541 = scalar_lea.vmem %s11, 320
      %v4542 = vld [vmem:[%s4541] sm:$0xf]
      %v4543 = vld [vmem:[%s4541 + $0x4] sm:$0xf]
      %v4544 = vld [vmem:[%s4541 + $0x8] sm:$0xf]
      %v4545 = vld [vmem:[%s4541 + $0xc] sm:$0xf]
      %v4546 = vld [vmem:[%s4541 + $0x10] sm:$0xf]
      %v4547 = vld [vmem:[%s4541 + $0x14] sm:$0xf]
      %v4548 = vld [vmem:[%s4541 + $0x18] sm:$0xf]
      %v4549 = vld [vmem:[%s4541 + $0x1c] sm:$0xf]
      %v4550 = vld [vmem:[%s4541 + $0x20] sm:$0xf]
      %v4551 = vld [vmem:[%s4541 + $0x24] sm:$0xf]
      %v4552 = vld [vmem:[%s4541 + $0x28] sm:$0xf]
      %v4553 = vld [vmem:[%s4541 + $0x2c] sm:$0xf]
      %v4554 = vld [vmem:[%s4541 + $0x30] sm:$0xf]
      %v4555 = vld [vmem:[%s4541 + $0x34] sm:$0xf]
      %v4556 = vld [vmem:[%s4541 + $0x38] sm:$0xf]
      %v4557 = vld [vmem:[%s4541 + $0x3c] sm:$0xf]
      %v4574 = vunpack.c.l.b16 %v4542
      %v4575 = vunpack.c.l.b16 %v4543
      %v4576 = vunpack.c.l.b16 %v4544
      %v4577 = vunpack.c.l.b16 %v4545
      %v4578 = vunpack.c.l.b16 %v4546
      %v4579 = vunpack.c.l.b16 %v4547
      %v4580 = vunpack.c.l.b16 %v4548
      %v4581 = vunpack.c.l.b16 %v4549
      %v4582 = vunpack.c.l.b16 %v4550
      %v4583 = vunpack.c.l.b16 %v4551
      %v4584 = vunpack.c.l.b16 %v4552
      %v4585 = vunpack.c.l.b16 %v4553
      %v4586 = vunpack.c.l.b16 %v4554
      %v4587 = vunpack.c.l.b16 %v4555
      %v4588 = vunpack.c.l.b16 %v4556
      %v4589 = vunpack.c.l.b16 %v4557
      %v4590 = vpack.c.b16 %v4575, %v4574
      %v4591 = vpack.c.b16 %v4577, %v4576
      %v4592 = vpack.c.b16 %v4579, %v4578
      %v4593 = vpack.c.b16 %v4581, %v4580
      %v4594 = vpack.c.b16 %v4583, %v4582
      %v4595 = vpack.c.b16 %v4585, %v4584
      %v4596 = vpack.c.b16 %v4587, %v4586
      %v4597 = vpack.c.b16 %v4589, %v4588
      %4606 = vmatprep.subr.bf16.mxu0 0
      %4607 = vmatpush1.bf16.msra.mxu0 %v4597
      %4608 = vmatprep.subr.bf16.mxu0 0
      %4609 = vmatpush1.bf16.msra.mxu0 %v4596
      %4610 = vmatprep.subr.bf16.mxu0 0
      %4611 = vmatpush1.bf16.msra.mxu0 %v4595
      %4612 = vmatprep.subr.bf16.mxu0 0
      %4613 = vmatpush1.bf16.msra.mxu0 %v4594
      %4614 = vmatprep.subr.bf16.mxu0 0
      %4615 = vmatpush1.bf16.msra.mxu0 %v4593
      %4616 = vmatprep.subr.bf16.mxu0 0
      %4617 = vmatpush1.bf16.msra.mxu0 %v4592
      %4618 = vmatprep.subr.bf16.mxu0 0
      %4619 = vmatpush1.bf16.msra.mxu0 %v4591
      %4620 = vmatprep.subr.bf16.mxu0 0
      %4621 = vmatpush1.bf16.msra.mxu0 %v4590
      %4622 = vmatprep.subr.bf16.mxu0 0
      %4623 = vmatpush2.bf16.msra.mxu0 0
      %4624 = vmatprep.subr.bf16.mxu0 0
      %4625 = vmatpush2.bf16.msra.mxu0 0
      %4626 = vmatprep.subr.bf16.mxu0 0
      %4627 = vmatpush2.bf16.msra.mxu0 0
      %4628 = vmatprep.subr.bf16.mxu0 0
      %4629 = vmatpush2.bf16.msra.mxu0 0
      %4630 = vmatprep.subr.bf16.mxu0 0
      %4631 = vmatpush2.bf16.msra.mxu0 0
      %4632 = vmatprep.subr.bf16.mxu0 0
      %4633 = vmatpush2.bf16.msra.mxu0 0
      %4634 = vmatprep.subr.bf16.mxu0 0
      %4635 = vmatpush2.bf16.msra.mxu0 0
      %4636 = vmatprep.subr.bf16.mxu0 0
      %4637 = vmatpush2.bf16.msra.mxu0 0
      %4638 = vmatprep.mubr.bf16.mxu0 0
      %4639 = vmatmul.mubr.bf16.gmra.mxu0 %v4537
      %v4640 = vpop.f32.mrf.mxu0
      %v4641 = vadd.f32 0.0, %v4640
      %v4642 = vpop.f32.mrf.mxu0
      %v4643 = vpop.f32.mrf.mxu0
      %v4644 = vadd.f32 0.0, %v4643
      %v4645 = vpop.f32.mrf.mxu0
      %4646 = vmatprep.mubr.bf16.mxu0 0
      %4647 = vmatmul.mubr.bf16.gmra.mxu0 %v4538
      %v4648 = vpop.f32.mrf.mxu0
      %v4649 = vadd.f32 0.0, %v4648
      %v4650 = vpop.f32.mrf.mxu0
      %v4651 = vpop.f32.mrf.mxu0
      %v4652 = vadd.f32 0.0, %v4651
      %v4653 = vpop.f32.mrf.mxu0
      %4654 = vmatprep.mubr.bf16.mxu0 0
      %4655 = vmatmul.mubr.bf16.gmra.mxu0 %v4539
      %v4656 = vpop.f32.mrf.mxu0
      %v4657 = vadd.f32 0.0, %v4656
      %v4658 = vpop.f32.mrf.mxu0
      %v4659 = vpop.f32.mrf.mxu0
      %v4660 = vadd.f32 0.0, %v4659
      %v4661 = vpop.f32.mrf.mxu0
      %4662 = vmatprep.mubr.bf16.mxu0 0
      %4663 = vmatmul.mubr.bf16.gmra.mxu0 %v4540
      %v4664 = vpop.f32.mrf.mxu0
      %v4665 = vadd.f32 0.0, %v4664
      %v4666 = vpop.f32.mrf.mxu0
      %v4667 = vpop.f32.mrf.mxu0
      %v4668 = vadd.f32 0.0, %v4667
      %v4669 = vpop.f32.mrf.mxu0
      %4670 = vdwg.mxu0
      %v4671 = vadd.f32 %v4521, %v4641
      %v4672 = vadd.f32 %v4522, %v4644
      %v4673 = vadd.f32 %v4523, %v4649
      %v4674 = vadd.f32 %v4524, %v4652
      %v4675 = vadd.f32 %v4525, %v4657
      %v4676 = vadd.f32 %v4526, %v4660
      %v4677 = vadd.f32 %v4527, %v4665
      %v4678 = vadd.f32 %v4528, %v4668
      %v4679 = vld [vmem:[%s618] sm:$0xff]
      %v4680 = vld [vmem:[%s618 + $0x10] sm:$0xff]
      %v4681 = vld [vmem:[%s618 + $0x20] sm:$0xff]
      %v4682 = vld [vmem:[%s618 + $0x30] sm:$0xff]
      %v4683 = vld [vmem:[%s618 + $0x40] sm:$0xff]
      %v4684 = vld [vmem:[%s618 + $0x50] sm:$0xff]
      %v4685 = vld [vmem:[%s618 + $0x60] sm:$0xff]
      %v4686 = vld [vmem:[%s618 + $0x70] sm:$0xff]
      %v4687 = vpack.c.bf16 %v4680, %v4679
      %v4688 = vpack.c.bf16 %v4682, %v4681
      %v4689 = vpack.c.bf16 %v4684, %v4683
      %v4690 = vpack.c.bf16 %v4686, %v4685
      %s4691 = scalar_lea.vmem %s11, 384
      %v4692 = vld [vmem:[%s4691] sm:$0xf]
      %v4693 = vld [vmem:[%s4691 + $0x4] sm:$0xf]
      %v4694 = vld [vmem:[%s4691 + $0x8] sm:$0xf]
      %v4695 = vld [vmem:[%s4691 + $0xc] sm:$0xf]
      %v4696 = vld [vmem:[%s4691 + $0x10] sm:$0xf]
      %v4697 = vld [vmem:[%s4691 + $0x14] sm:$0xf]
      %v4698 = vld [vmem:[%s4691 + $0x18] sm:$0xf]
      %v4699 = vld [vmem:[%s4691 + $0x1c] sm:$0xf]
      %v4700 = vld [vmem:[%s4691 + $0x20] sm:$0xf]
      %v4701 = vld [vmem:[%s4691 + $0x24] sm:$0xf]
      %v4702 = vld [vmem:[%s4691 + $0x28] sm:$0xf]
      %v4703 = vld [vmem:[%s4691 + $0x2c] sm:$0xf]
      %v4704 = vld [vmem:[%s4691 + $0x30] sm:$0xf]
      %v4705 = vld [vmem:[%s4691 + $0x34] sm:$0xf]
      %v4706 = vld [vmem:[%s4691 + $0x38] sm:$0xf]
      %v4707 = vld [vmem:[%s4691 + $0x3c] sm:$0xf]
      %v4724 = vunpack.c.l.b16 %v4692
      %v4725 = vunpack.c.l.b16 %v4693
      %v4726 = vunpack.c.l.b16 %v4694
      %v4727 = vunpack.c.l.b16 %v4695
      %v4728 = vunpack.c.l.b16 %v4696
      %v4729 = vunpack.c.l.b16 %v4697
      %v4730 = vunpack.c.l.b16 %v4698
      %v4731 = vunpack.c.l.b16 %v4699
      %v4732 = vunpack.c.l.b16 %v4700
      %v4733 = vunpack.c.l.b16 %v4701
      %v4734 = vunpack.c.l.b16 %v4702
      %v4735 = vunpack.c.l.b16 %v4703
      %v4736 = vunpack.c.l.b16 %v4704
      %v4737 = vunpack.c.l.b16 %v4705
      %v4738 = vunpack.c.l.b16 %v4706
      %v4739 = vunpack.c.l.b16 %v4707
      %v4740 = vpack.c.b16 %v4725, %v4724
      %v4741 = vpack.c.b16 %v4727, %v4726
      %v4742 = vpack.c.b16 %v4729, %v4728
      %v4743 = vpack.c.b16 %v4731, %v4730
      %v4744 = vpack.c.b16 %v4733, %v4732
      %v4745 = vpack.c.b16 %v4735, %v4734
      %v4746 = vpack.c.b16 %v4737, %v4736
      %v4747 = vpack.c.b16 %v4739, %v4738
      %4756 = vmatprep.subr.bf16.mxu0 0
      %4757 = vmatpush1.bf16.msra.mxu0 %v4747
      %4758 = vmatprep.subr.bf16.mxu0 0
      %4759 = vmatpush1.bf16.msra.mxu0 %v4746
      %4760 = vmatprep.subr.bf16.mxu0 0
      %4761 = vmatpush1.bf16.msra.mxu0 %v4745
      %4762 = vmatprep.subr.bf16.mxu0 0
      %4763 = vmatpush1.bf16.msra.mxu0 %v4744
      %4764 = vmatprep.subr.bf16.mxu0 0
      %4765 = vmatpush1.bf16.msra.mxu0 %v4743
      %4766 = vmatprep.subr.bf16.mxu0 0
      %4767 = vmatpush1.bf16.msra.mxu0 %v4742
      %4768 = vmatprep.subr.bf16.mxu0 0
      %4769 = vmatpush1.bf16.msra.mxu0 %v4741
      %4770 = vmatprep.subr.bf16.mxu0 0
      %4771 = vmatpush1.bf16.msra.mxu0 %v4740
      %4772 = vmatprep.subr.bf16.mxu0 0
      %4773 = vmatpush2.bf16.msra.mxu0 0
      %4774 = vmatprep.subr.bf16.mxu0 0
      %4775 = vmatpush2.bf16.msra.mxu0 0
      %4776 = vmatprep.subr.bf16.mxu0 0
      %4777 = vmatpush2.bf16.msra.mxu0 0
      %4778 = vmatprep.subr.bf16.mxu0 0
      %4779 = vmatpush2.bf16.msra.mxu0 0
      %4780 = vmatprep.subr.bf16.mxu0 0
      %4781 = vmatpush2.bf16.msra.mxu0 0
      %4782 = vmatprep.subr.bf16.mxu0 0
      %4783 = vmatpush2.bf16.msra.mxu0 0
      %4784 = vmatprep.subr.bf16.mxu0 0
      %4785 = vmatpush2.bf16.msra.mxu0 0
      %4786 = vmatprep.subr.bf16.mxu0 0
      %4787 = vmatpush2.bf16.msra.mxu0 0
      %4788 = vmatprep.mubr.bf16.mxu0 0
      %4789 = vmatmul.mubr.bf16.gmra.mxu0 %v4687
      %v4790 = vpop.f32.mrf.mxu0
      %v4791 = vadd.f32 0.0, %v4790
      %v4792 = vpop.f32.mrf.mxu0
      %v4793 = vpop.f32.mrf.mxu0
      %v4794 = vadd.f32 0.0, %v4793
      %v4795 = vpop.f32.mrf.mxu0
      %4796 = vmatprep.mubr.bf16.mxu0 0
      %4797 = vmatmul.mubr.bf16.gmra.mxu0 %v4688
      %v4798 = vpop.f32.mrf.mxu0
      %v4799 = vadd.f32 0.0, %v4798
      %v4800 = vpop.f32.mrf.mxu0
      %v4801 = vpop.f32.mrf.mxu0
      %v4802 = vadd.f32 0.0, %v4801
      %v4803 = vpop.f32.mrf.mxu0
      %4804 = vmatprep.mubr.bf16.mxu0 0
      %4805 = vmatmul.mubr.bf16.gmra.mxu0 %v4689
      %v4806 = vpop.f32.mrf.mxu0
      %v4807 = vadd.f32 0.0, %v4806
      %v4808 = vpop.f32.mrf.mxu0
      %v4809 = vpop.f32.mrf.mxu0
      %v4810 = vadd.f32 0.0, %v4809
      %v4811 = vpop.f32.mrf.mxu0
      %4812 = vmatprep.mubr.bf16.mxu0 0
      %4813 = vmatmul.mubr.bf16.gmra.mxu0 %v4690
      %v4814 = vpop.f32.mrf.mxu0
      %v4815 = vadd.f32 0.0, %v4814
      %v4816 = vpop.f32.mrf.mxu0
      %v4817 = vpop.f32.mrf.mxu0
      %v4818 = vadd.f32 0.0, %v4817
      %v4819 = vpop.f32.mrf.mxu0
      %4820 = vdwg.mxu0
      %v4821 = vadd.f32 %v4671, %v4791
      %v4822 = vadd.f32 %v4672, %v4794
      %v4823 = vadd.f32 %v4673, %v4799
      %v4824 = vadd.f32 %v4674, %v4802
      %v4825 = vadd.f32 %v4675, %v4807
      %v4826 = vadd.f32 %v4676, %v4810
      %v4827 = vadd.f32 %v4677, %v4815
      %v4828 = vadd.f32 %v4678, %v4818
      %v4829 = vld [vmem:[%s618 + $0x1] sm:$0xff]
      %v4830 = vld [vmem:[%s618 + $0x11] sm:$0xff]
      %v4831 = vld [vmem:[%s618 + $0x21] sm:$0xff]
      %v4832 = vld [vmem:[%s618 + $0x31] sm:$0xff]
      %v4833 = vld [vmem:[%s618 + $0x41] sm:$0xff]
      %v4834 = vld [vmem:[%s618 + $0x51] sm:$0xff]
      %v4835 = vld [vmem:[%s618 + $0x61] sm:$0xff]
      %v4836 = vld [vmem:[%s618 + $0x71] sm:$0xff]
      %v4837 = vpack.c.bf16 %v4830, %v4829
      %v4838 = vpack.c.bf16 %v4832, %v4831
      %v4839 = vpack.c.bf16 %v4834, %v4833
      %v4840 = vpack.c.bf16 %v4836, %v4835
      %s4841 = scalar_lea.vmem %s11, 448
      %v4842 = vld [vmem:[%s4841] sm:$0xf]
      %v4843 = vld [vmem:[%s4841 + $0x4] sm:$0xf]
      %v4844 = vld [vmem:[%s4841 + $0x8] sm:$0xf]
      %v4845 = vld [vmem:[%s4841 + $0xc] sm:$0xf]
      %v4846 = vld [vmem:[%s4841 + $0x10] sm:$0xf]
      %v4847 = vld [vmem:[%s4841 + $0x14] sm:$0xf]
      %v4848 = vld [vmem:[%s4841 + $0x18] sm:$0xf]
      %v4849 = vld [vmem:[%s4841 + $0x1c] sm:$0xf]
      %v4850 = vld [vmem:[%s4841 + $0x20] sm:$0xf]
      %v4851 = vld [vmem:[%s4841 + $0x24] sm:$0xf]
      %v4852 = vld [vmem:[%s4841 + $0x28] sm:$0xf]
      %v4853 = vld [vmem:[%s4841 + $0x2c] sm:$0xf]
      %v4854 = vld [vmem:[%s4841 + $0x30] sm:$0xf]
      %v4855 = vld [vmem:[%s4841 + $0x34] sm:$0xf]
      %v4856 = vld [vmem:[%s4841 + $0x38] sm:$0xf]
      %v4857 = vld [vmem:[%s4841 + $0x3c] sm:$0xf]
      %v4874 = vunpack.c.l.b16 %v4842
      %v4875 = vunpack.c.l.b16 %v4843
      %v4876 = vunpack.c.l.b16 %v4844
      %v4877 = vunpack.c.l.b16 %v4845
      %v4878 = vunpack.c.l.b16 %v4846
      %v4879 = vunpack.c.l.b16 %v4847
      %v4880 = vunpack.c.l.b16 %v4848
      %v4881 = vunpack.c.l.b16 %v4849
      %v4882 = vunpack.c.l.b16 %v4850
      %v4883 = vunpack.c.l.b16 %v4851
      %v4884 = vunpack.c.l.b16 %v4852
      %v4885 = vunpack.c.l.b16 %v4853
      %v4886 = vunpack.c.l.b16 %v4854
      %v4887 = vunpack.c.l.b16 %v4855
      %v4888 = vunpack.c.l.b16 %v4856
      %v4889 = vunpack.c.l.b16 %v4857
      %v4890 = vpack.c.b16 %v4875, %v4874
      %v4891 = vpack.c.b16 %v4877, %v4876
      %v4892 = vpack.c.b16 %v4879, %v4878
      %v4893 = vpack.c.b16 %v4881, %v4880
      %v4894 = vpack.c.b16 %v4883, %v4882
      %v4895 = vpack.c.b16 %v4885, %v4884
      %v4896 = vpack.c.b16 %v4887, %v4886
      %v4897 = vpack.c.b16 %v4889, %v4888
      %4906 = vmatprep.subr.bf16.mxu0 0
      %4907 = vmatpush1.bf16.msra.mxu0 %v4897
      %4908 = vmatprep.subr.bf16.mxu0 0
      %4909 = vmatpush1.bf16.msra.mxu0 %v4896
      %4910 = vmatprep.subr.bf16.mxu0 0
      %4911 = vmatpush1.bf16.msra.mxu0 %v4895
      %4912 = vmatprep.subr.bf16.mxu0 0
      %4913 = vmatpush1.bf16.msra.mxu0 %v4894
      %4914 = vmatprep.subr.bf16.mxu0 0
      %4915 = vmatpush1.bf16.msra.mxu0 %v4893
      %4916 = vmatprep.subr.bf16.mxu0 0
      %4917 = vmatpush1.bf16.msra.mxu0 %v4892
      %4918 = vmatprep.subr.bf16.mxu0 0
      %4919 = vmatpush1.bf16.msra.mxu0 %v4891
      %4920 = vmatprep.subr.bf16.mxu0 0
      %4921 = vmatpush1.bf16.msra.mxu0 %v4890
      %4922 = vmatprep.subr.bf16.mxu0 0
      %4923 = vmatpush2.bf16.msra.mxu0 0
      %4924 = vmatprep.subr.bf16.mxu0 0
      %4925 = vmatpush2.bf16.msra.mxu0 0
      %4926 = vmatprep.subr.bf16.mxu0 0
      %4927 = vmatpush2.bf16.msra.mxu0 0
      %4928 = vmatprep.subr.bf16.mxu0 0
      %4929 = vmatpush2.bf16.msra.mxu0 0
      %4930 = vmatprep.subr.bf16.mxu0 0
      %4931 = vmatpush2.bf16.msra.mxu0 0
      %4932 = vmatprep.subr.bf16.mxu0 0
      %4933 = vmatpush2.bf16.msra.mxu0 0
      %4934 = vmatprep.subr.bf16.mxu0 0
      %4935 = vmatpush2.bf16.msra.mxu0 0
      %4936 = vmatprep.subr.bf16.mxu0 0
      %4937 = vmatpush2.bf16.msra.mxu0 0
      %4938 = vmatprep.mubr.bf16.mxu0 0
      %4939 = vmatmul.mubr.bf16.gmra.mxu0 %v4837
      %v4940 = vpop.f32.mrf.mxu0
      %v4941 = vadd.f32 0.0, %v4940
      %v4942 = vpop.f32.mrf.mxu0
      %v4943 = vpop.f32.mrf.mxu0
      %v4944 = vadd.f32 0.0, %v4943
      %v4945 = vpop.f32.mrf.mxu0
      %4946 = vmatprep.mubr.bf16.mxu0 0
      %4947 = vmatmul.mubr.bf16.gmra.mxu0 %v4838
      %v4948 = vpop.f32.mrf.mxu0
      %v4949 = vadd.f32 0.0, %v4948
      %v4950 = vpop.f32.mrf.mxu0
      %v4951 = vpop.f32.mrf.mxu0
      %v4952 = vadd.f32 0.0, %v4951
      %v4953 = vpop.f32.mrf.mxu0
      %4954 = vmatprep.mubr.bf16.mxu0 0
      %4955 = vmatmul.mubr.bf16.gmra.mxu0 %v4839
      %v4956 = vpop.f32.mrf.mxu0
      %v4957 = vadd.f32 0.0, %v4956
      %v4958 = vpop.f32.mrf.mxu0
      %v4959 = vpop.f32.mrf.mxu0
      %v4960 = vadd.f32 0.0, %v4959
      %v4961 = vpop.f32.mrf.mxu0
      %4962 = vmatprep.mubr.bf16.mxu0 0
      %4963 = vmatmul.mubr.bf16.gmra.mxu0 %v4840
      %v4964 = vpop.f32.mrf.mxu0
      %v4965 = vadd.f32 0.0, %v4964
      %v4966 = vpop.f32.mrf.mxu0
      %v4967 = vpop.f32.mrf.mxu0
      %v4968 = vadd.f32 0.0, %v4967
      %v4969 = vpop.f32.mrf.mxu0
      %4970 = vdwg.mxu0
      %v4971 = vadd.f32 %v4821, %v4941
      %v4972 = vadd.f32 %v4822, %v4944
      %v4973 = vadd.f32 %v4823, %v4949
      %v4974 = vadd.f32 %v4824, %v4952
      %v4975 = vadd.f32 %v4825, %v4957
      %v4976 = vadd.f32 %v4826, %v4960
      %v4977 = vadd.f32 %v4827, %v4965
      %v4978 = vadd.f32 %v4828, %v4968
      %v4979 = vld [vmem:[%s618 + $0x2] sm:$0xff]
      %v4980 = vld [vmem:[%s618 + $0x12] sm:$0xff]
      %v4981 = vld [vmem:[%s618 + $0x22] sm:$0xff]
      %v4982 = vld [vmem:[%s618 + $0x32] sm:$0xff]
      %v4983 = vld [vmem:[%s618 + $0x42] sm:$0xff]
      %v4984 = vld [vmem:[%s618 + $0x52] sm:$0xff]
      %v4985 = vld [vmem:[%s618 + $0x62] sm:$0xff]
      %v4986 = vld [vmem:[%s618 + $0x72] sm:$0xff]
      %v4987 = vpack.c.bf16 %v4980, %v4979
      %v4988 = vpack.c.bf16 %v4982, %v4981
      %v4989 = vpack.c.bf16 %v4984, %v4983
      %v4990 = vpack.c.bf16 %v4986, %v4985
      %s4991 = scalar_lea.vmem %s11, 512
      %v4992 = vld [vmem:[%s4991] sm:$0xf]
      %v4993 = vld [vmem:[%s4991 + $0x4] sm:$0xf]
      %v4994 = vld [vmem:[%s4991 + $0x8] sm:$0xf]
      %v4995 = vld [vmem:[%s4991 + $0xc] sm:$0xf]
      %v4996 = vld [vmem:[%s4991 + $0x10] sm:$0xf]
      %v4997 = vld [vmem:[%s4991 + $0x14] sm:$0xf]
      %v4998 = vld [vmem:[%s4991 + $0x18] sm:$0xf]
      %v4999 = vld [vmem:[%s4991 + $0x1c] sm:$0xf]
      %v5000 = vld [vmem:[%s4991 + $0x20] sm:$0xf]
      %v5001 = vld [vmem:[%s4991 + $0x24] sm:$0xf]
      %v5002 = vld [vmem:[%s4991 + $0x28] sm:$0xf]
      %v5003 = vld [vmem:[%s4991 + $0x2c] sm:$0xf]
      %v5004 = vld [vmem:[%s4991 + $0x30] sm:$0xf]
      %v5005 = vld [vmem:[%s4991 + $0x34] sm:$0xf]
      %v5006 = vld [vmem:[%s4991 + $0x38] sm:$0xf]
      %v5007 = vld [vmem:[%s4991 + $0x3c] sm:$0xf]
      %v5024 = vunpack.c.l.b16 %v4992
      %v5025 = vunpack.c.l.b16 %v4993
      %v5026 = vunpack.c.l.b16 %v4994
      %v5027 = vunpack.c.l.b16 %v4995
      %v5028 = vunpack.c.l.b16 %v4996
      %v5029 = vunpack.c.l.b16 %v4997
      %v5030 = vunpack.c.l.b16 %v4998
      %v5031 = vunpack.c.l.b16 %v4999
      %v5032 = vunpack.c.l.b16 %v5000
      %v5033 = vunpack.c.l.b16 %v5001
      %v5034 = vunpack.c.l.b16 %v5002
      %v5035 = vunpack.c.l.b16 %v5003
      %v5036 = vunpack.c.l.b16 %v5004
      %v5037 = vunpack.c.l.b16 %v5005
      %v5038 = vunpack.c.l.b16 %v5006
      %v5039 = vunpack.c.l.b16 %v5007
      %v5040 = vpack.c.b16 %v5025, %v5024
      %v5041 = vpack.c.b16 %v5027, %v5026
      %v5042 = vpack.c.b16 %v5029, %v5028
      %v5043 = vpack.c.b16 %v5031, %v5030
      %v5044 = vpack.c.b16 %v5033, %v5032
      %v5045 = vpack.c.b16 %v5035, %v5034
      %v5046 = vpack.c.b16 %v5037, %v5036
      %v5047 = vpack.c.b16 %v5039, %v5038
      %5056 = vmatprep.subr.bf16.mxu0 0
      %5057 = vmatpush1.bf16.msra.mxu0 %v5047
      %5058 = vmatprep.subr.bf16.mxu0 0
      %5059 = vmatpush1.bf16.msra.mxu0 %v5046
      %5060 = vmatprep.subr.bf16.mxu0 0
      %5061 = vmatpush1.bf16.msra.mxu0 %v5045
      %5062 = vmatprep.subr.bf16.mxu0 0
      %5063 = vmatpush1.bf16.msra.mxu0 %v5044
      %5064 = vmatprep.subr.bf16.mxu0 0
      %5065 = vmatpush1.bf16.msra.mxu0 %v5043
      %5066 = vmatprep.subr.bf16.mxu0 0
      %5067 = vmatpush1.bf16.msra.mxu0 %v5042
      %5068 = vmatprep.subr.bf16.mxu0 0
      %5069 = vmatpush1.bf16.msra.mxu0 %v5041
      %5070 = vmatprep.subr.bf16.mxu0 0
      %5071 = vmatpush1.bf16.msra.mxu0 %v5040
      %5072 = vmatprep.subr.bf16.mxu0 0
      %5073 = vmatpush2.bf16.msra.mxu0 0
      %5074 = vmatprep.subr.bf16.mxu0 0
      %5075 = vmatpush2.bf16.msra.mxu0 0
      %5076 = vmatprep.subr.bf16.mxu0 0
      %5077 = vmatpush2.bf16.msra.mxu0 0
      %5078 = vmatprep.subr.bf16.mxu0 0
      %5079 = vmatpush2.bf16.msra.mxu0 0
      %5080 = vmatprep.subr.bf16.mxu0 0
      %5081 = vmatpush2.bf16.msra.mxu0 0
      %5082 = vmatprep.subr.bf16.mxu0 0
      %5083 = vmatpush2.bf16.msra.mxu0 0
      %5084 = vmatprep.subr.bf16.mxu0 0
      %5085 = vmatpush2.bf16.msra.mxu0 0
      %5086 = vmatprep.subr.bf16.mxu0 0
      %5087 = vmatpush2.bf16.msra.mxu0 0
      %5088 = vmatprep.mubr.bf16.mxu0 0
      %5089 = vmatmul.mubr.bf16.gmra.mxu0 %v4987
      %v5090 = vpop.f32.mrf.mxu0
      %v5091 = vadd.f32 0.0, %v5090
      %v5092 = vpop.f32.mrf.mxu0
      %v5093 = vpop.f32.mrf.mxu0
      %v5094 = vadd.f32 0.0, %v5093
      %v5095 = vpop.f32.mrf.mxu0
      %5096 = vmatprep.mubr.bf16.mxu0 0
      %5097 = vmatmul.mubr.bf16.gmra.mxu0 %v4988
      %v5098 = vpop.f32.mrf.mxu0
      %v5099 = vadd.f32 0.0, %v5098
      %v5100 = vpop.f32.mrf.mxu0
      %v5101 = vpop.f32.mrf.mxu0
      %v5102 = vadd.f32 0.0, %v5101
      %v5103 = vpop.f32.mrf.mxu0
      %5104 = vmatprep.mubr.bf16.mxu0 0
      %5105 = vmatmul.mubr.bf16.gmra.mxu0 %v4989
      %v5106 = vpop.f32.mrf.mxu0
      %v5107 = vadd.f32 0.0, %v5106
      %v5108 = vpop.f32.mrf.mxu0
      %v5109 = vpop.f32.mrf.mxu0
      %v5110 = vadd.f32 0.0, %v5109
      %v5111 = vpop.f32.mrf.mxu0
      %5112 = vmatprep.mubr.bf16.mxu0 0
      %5113 = vmatmul.mubr.bf16.gmra.mxu0 %v4990
      %v5114 = vpop.f32.mrf.mxu0
      %v5115 = vadd.f32 0.0, %v5114
      %v5116 = vpop.f32.mrf.mxu0
      %v5117 = vpop.f32.mrf.mxu0
      %v5118 = vadd.f32 0.0, %v5117
      %v5119 = vpop.f32.mrf.mxu0
      %5120 = vdwg.mxu0
      %v5121 = vadd.f32 %v4971, %v5091
      %v5122 = vadd.f32 %v4972, %v5094
      %v5123 = vadd.f32 %v4973, %v5099
      %v5124 = vadd.f32 %v4974, %v5102
      %v5125 = vadd.f32 %v4975, %v5107
      %v5126 = vadd.f32 %v4976, %v5110
      %v5127 = vadd.f32 %v4977, %v5115
      %v5128 = vadd.f32 %v4978, %v5118
      %v5129 = vld [vmem:[%s12] sm:$0x1]
      %v5131 = vlaneseq
      %v5132 = vshrl.u32 %v5131, 7
      %v5133 = vsub.s32 0, %v5132
      %v5134 = vrot.slane %v5129, %v5133
      %v5136 = vadd.f32 %v5121, %v5134
      %v5137 = vadd.f32 %v5122, %v5134
      %v5138 = vadd.f32 %v5123, %v5134
      %v5139 = vadd.f32 %v5124, %v5134
      %v5140 = vadd.f32 %v5125, %v5134
      %v5141 = vadd.f32 %v5126, %v5134
      %v5142 = vadd.f32 %v5127, %v5134
      %v5143 = vadd.f32 %v5128, %v5134
      %v5144 = vmax.f32 %v5136, 0.0
      %v5145 = vmax.f32 %v5137, 0.0
      %v5146 = vmax.f32 %v5138, 0.0
      %v5147 = vmax.f32 %v5139, 0.0
      %v5148 = vmax.f32 %v5140, 0.0
      %v5149 = vmax.f32 %v5141, 0.0
      %v5150 = vmax.f32 %v5142, 0.0
      %v5151 = vmax.f32 %v5143, 0.0
      %5152 = vst.msk [vmem:[%s440] sm:$0xff] %vm530, %v5144
      %5153 = vst.msk [vmem:[%s440 + $0x8] sm:$0xff] %vm530, %v5145
      %5154 = vst.msk [vmem:[%s440 + $0x10] sm:$0xff] %vm530, %v5146
      %5155 = vst.msk [vmem:[%s440 + $0x18] sm:$0xff] %vm530, %v5147
      %5156 = vst.msk [vmem:[%s440 + $0x20] sm:$0xff] %vm530, %v5148
      %5157 = vst.msk [vmem:[%s440 + $0x28] sm:$0xff] %vm530, %v5149
      %5158 = vst.msk [vmem:[%s440 + $0x30] sm:$0xff] %vm530, %v5150
      %5159 = vst.msk [vmem:[%s440 + $0x38] sm:$0xff] %vm530, %v5151
      %p5160 = scmp.lt.s32.totalorder %s24, 1
      %s5161 = scalar_select %p5160, %s24, 1
      %s5162 = smul.addr %s5161, 8
      %s5163 = smul.addr %s5162, 8
      %s5164 = scalar_lea.vmem %s13, %s5163
      // Predicated region
      $region73: #{dense_block_forward.1} parent=71 // pred_check
        %p5165 = pneg %p320
      $region74: #{dense_block_forward.1} parent=71 // pred_check_branch
        %5167 = sbr.rel (%p5165) target = $region76
      $region75: #{dense_block_forward.1} parent=71 // pred_region
        _
      $region76: #{dense_block_forward.1} parent=71 // pred_fallthru
        _
    $region72: #{dense_block_forward.1} parent=5 // pred_fallthru
      _
    %p5168 = scmp.le.s32.totalorder 2, %s19
    // Predicated region
    $region77: #{dense_block_forward.1} parent=5 // pred_check
      %p5169 = pneg %p5168
    $region78: #{dense_block_forward.1} parent=5 // pred_check_branch
      %5171 = sbr.rel (%p5169) target = $region80
    $region79: #{dense_block_forward.1} parent=5 // pred_region
      %s5172 = ssub.s32 %s19, 2
      // Predicated region
      $region81: #{dense_block_forward.1} parent=79 // pred_check
        %p5173 = pneg %p326
      $region82: #{dense_block_forward.1} parent=79 // pred_check_branch
        %5175 = sbr.rel (%p5173) target = $region84
      $region83: #{dense_block_forward.1} parent=79 // pred_region
        %p5176 = scmp.lt.s32.totalorder %s25, 1
        %s5177 = scalar_select %p5176, %s25, 1
        %s5178 = smul.addr %s5177, 8
        %s5179 = smul.addr %s5178, 8
        %s5180 = scalar_lea.vmem %s13, %s5179
      $region84: #{dense_block_forward.1} parent=79 // pred_fallthru
        _
    $region80: #{dense_block_forward.1} parent=5 // pred_fallthru
      _
  $region6: #{dense_block_forward.1} parent=0 // loop_footer
    %s23 = sadd.s32 1, %s19
  $region7: #{dense_block_forward.1} parent=0 // loop_footer_branch
    %18 = sbr.rel target = $region3
  $region8: #{dense_block_forward.1} parent=0 // loop_exit
    _

</llo_original>
